<compile_context>
chip_gen: v5e
topology: v5e:2x2
jax: 0.10.0
libtpu: 0.0.40
codegen_flags: <defaults>
</compile_context>

<pallas_src>
import math
import functools

import jax
import jax.numpy as jnp
from jax.experimental import pallas as pl
from jax.experimental.pallas import tpu as pltpu

LN_EPS = 1e-5                      # PyTorch nn.LayerNorm default
MXU_DTYPE = jnp.bfloat16           # MXU input dtype; set to jnp.float32 for exact parity


# ------------------------------ small helpers -------------------------------

def _round_up(n, m):
    return ((n + m - 1) // m) * m


def _vmem_capacity_bytes():
    try:
        return int(pltpu.get_tpu_info().vmem_capacity_bytes)
    except Exception:
        return 64 * 1024 * 1024    # conservative default: v7x per-TensorCore VMEM


def _compiler_params(dimension_semantics, tile_bytes):
    cap = _vmem_capacity_bytes()
    limit = int(min(0.8 * cap, max(32 * 2 ** 20, 3 * int(tile_bytes))))
    return pltpu.CompilerParams(dimension_semantics=dimension_semantics,
                                vmem_limit_bytes=limit)


def _pick_seq_tile(s, max_tile=128):
    """Largest tile <= max_tile dividing s and a multiple of 8, else full s."""
    if s <= max_tile:
        return s
    for t in range(max_tile, 7, -8):
        if s % t == 0:
            return t
    return s


def _pick_ff_tile(d_ff, max_tile=512):
    """d_ff contraction tile: a multiple of 128 dividing d_ff, else full d_ff."""
    if d_ff <= max_tile:
        return d_ff
    for t in range(max_tile, 127, -128):
        if d_ff % t == 0:
            return t
    return d_ff   # TODO(synk): pad d_ff instead of falling back to an untiled K axis.


def _const_block(shape):
    """Constant-index block: fetched once, single-buffered (saves VMEM)."""
    nd = len(shape)
    idx = lambda *_: (0,) * nd
    try:
        return pl.BlockSpec(shape, idx, pipeline_mode=pl.Buffered(1))
    except Exception:   # pipeline_mode not available in this JAX build
        return pl.BlockSpec(shape, idx)


# ----------------------------- Pallas kernels ------------------------------

def _embed_pe_kernel(e_ref, pe_ref, o_ref, *, scale):
    # TokenEmbedding scale (sqrt(d_model)) + positional-encoding add (f32).
    o_ref[...] = e_ref[...] * scale + pe_ref[...]


def _layernorm(z, g, b):
    mu = jnp.mean(z, axis=-1, keepdims=True)
    var = jnp.mean(jnp.square(z - mu), axis=-1, keepdims=True)
    return (z - mu) * jax.lax.rsqrt(var + LN_EPS) * g + b


def _mha_ln_kernel(*refs, num_heads, tq, self_attention):
    """Fused MHA + residual + LayerNorm for one (batch, query-tile) grid point.

    Heads are batched along a leading H axis (weights pre-split per head in the
    wrapper), so there are no lane slices or lane concatenates in the kernel.
    """
    if self_attention:
        (x_ref, bias_ref, wq_ref, bq_ref, wkv_ref, bkv_ref,
         wo_ref, bo_ref, g_ref, b_ref, o_ref) = refs
        x_full = x_ref[0]                         # (S, D): K/V source, DMA'd once per b
        if x_full.shape[0] == tq:
            xq = x_full
        else:
            q0 = pl.multiple_of(pl.program_id(1) * tq, tq)
            xq = jax.lax.dynamic_slice_in_dim(x_full, q0, tq, axis=0)
        xkv = x_full
    else:
        (xq_ref, xkv_ref, bias_ref, wq_ref, bq_ref, wkv_ref, bkv_ref,
         wo_ref, bo_ref, g_ref, b_ref, o_ref) = refs
        xq = xq_ref[0]                            # (tq, D) query rows / residual
        xkv = xkv_ref[0]                          # (Sk, D)

    H = num_heads
    xq16 = xq.astype(MXU_DTYPE)
    xkv16 = xkv.astype(MXU_DTYPE)
    qb = jnp.broadcast_to(xq16[None], (H,) + xq16.shape)          # (H,  tq, D)
    kvb = jnp.broadcast_to(xkv16[None], (2 * H,) + xkv16.shape)   # (2H, Sk, D)

    # Head-batched projections (1/sqrt(dk) is folded into wq/bq at init time).
    q = jnp.einsum('hqm,hmd->hqd', qb, wq_ref[...],
                   preferred_element_type=jnp.float32) + bq_ref[...]
    kv = jnp.einsum('hkm,hmd->hkd', kvb, wkv_ref[...],
                    preferred_element_type=jnp.float32) + bkv_ref[...]
    k = kv[:H]
    v = kv[H:]

    # Scores + additive mask bias (0 / -1e9); softmax in f32, exact divide.
    s = jnp.einsum('hqd,hkd->hqk', q.astype(MXU_DTYPE), k.astype(MXU_DTYPE),
                   preferred_element_type=jnp.float32)
    s = s + bias_ref[...][None]
    m = jnp.max(s, axis=-1, keepdims=True)
    e = jnp.exp(s - m)
    p = e / jnp.sum(e, axis=-1, keepdims=True)

    ctx = jnp.einsum('hqk,hkd->hqd', p.astype(MXU_DTYPE), v.astype(MXU_DTYPE),
                     preferred_element_type=jnp.float32)
    # Output projection: head-batched matmul then a major-axis sum over heads
    # (lane-dense (tq, D) result; no lane concatenate).
    proj = jnp.einsum('hqd,hdm->hqm', ctx.astype(MXU_DTYPE), wo_ref[...],
                      preferred_element_type=jnp.float32)
    proj = jnp.sum(proj, axis=0) + bo_ref[...]

    o_ref[0] = _layernorm(xq + proj, g_ref[...], b_ref[...])


def _ffn_ln_kernel(x_ref, w1_ref, b1_ref, w2_ref, b2_ref, g_ref, b_ref,
                   o_ref, acc_ref):
    """Fused FFN (linear1 -> ReLU -> linear2) + residual + LayerNorm.

    Grid is (row tiles, d_ff tiles); the d_ff axis accumulates into an f32 VMEM
    scratch so the full w1 / w2 never have to be resident at once.
    """
    kk = pl.program_id(1)

    @pl.when(kk == 0)
    def _():
        acc_ref[...] = jnp.zeros_like(acc_ref)

    x = x_ref[...]                                                   # (rt, D) f32
    h = jnp.dot(x.astype(MXU_DTYPE), w1_ref[...],
                preferred_element_type=jnp.float32) + b1_ref[...]
    h = jnp.maximum(h, 0.0)                                          # ReLU in f32
    acc_ref[...] += jnp.dot(h.astype(MXU_DTYPE), w2_ref[...],
                            preferred_element_type=jnp.float32)

    @pl.when(kk == pl.num_programs(1) - 1)
    def _():
        y = acc_ref[...] + b2_ref[...]
        o_ref[...] = _layernorm(x + y, g_ref[...], b_ref[...])


# ----------------------------- Pallas wrappers ------------------------------

def embed_scale_add_pe(emb, pe, d_model):
    """x = emb * sqrt(d_model) + pe  (tiled; pos_enc is NOT broadcast over batch)."""
    B, S, D = emb.shape
    st = _pick_seq_tile(S, 256)
    kern = functools.partial(_embed_pe_kernel, scale=math.sqrt(d_model))
    tile_bytes = 4 * 3 * st * D
    return pl.pallas_call(
        kern,
        out_shape=jax.ShapeDtypeStruct((B, S, D), jnp.float32),
        grid=(B, S // st),
        in_specs=[
            pl.BlockSpec((1, st, D), lambda b, i: (b, i, 0)),
            pl.BlockSpec((st, D), lambda b, i: (i, 0)),
        ],
        out_specs=pl.BlockSpec((1, st, D), lambda b, i: (b, i, 0)),
        compiler_params=_compiler_params(("parallel", "parallel"), tile_bytes),
        cost_estimate=pl.CostEstimate(
            flops=int(2 * B * S * D), transcendentals=0,
            bytes_accessed=int(4 * (2 * B * S * D + S * D))),
    )(emb, pe)


def mha_block(p, xq, xkv, mask_bias, gamma, beta, num_heads, *, self_attention):
    """LayerNorm(xq + MultiHeadAttention(xq, xkv, xkv, mask)) — one fused kernel."""
    B, Sq, D = xq.shape
    Sk = xkv.shape[1]
    H = num_heads
    dk = D // H
    tq = _pick_seq_tile(Sq, 128)
    grid = (B, Sq // tq)

    kern = functools.partial(_mha_ln_kernel, num_heads=H, tq=tq,
                             self_attention=self_attention)

    weight_specs = [
        _const_block((H, D, dk)),        # wq  (bf16, 1/sqrt(dk) folded in)
        _const_block((H, 1, dk)),        # bq
        _const_block((2 * H, D, dk)),    # wkv (K|V fused along the head axis)
        _const_block((2 * H, 1, dk)),    # bkv
        _const_block((H, dk, D)),        # wo
        _const_block((1, D)),            # bo
        _const_block((1, D)),            # ln gamma
        _const_block((1, D)),            # ln beta
    ]
    mask_spec = pl.BlockSpec((tq, Sk), lambda b, qi: (qi, 0))

    if self_attention:
        # One activation input, DMA'd once per batch element; query rows are
        # sliced in-kernel (removes the redundant xkv HBM->VMEM transfer).
        in_specs = [pl.BlockSpec((1, Sq, D), lambda b, qi: (b, 0, 0)),
                    mask_spec] + weight_specs
        args = (xq, mask_bias)
    else:
        in_specs = [pl.BlockSpec((1, tq, D), lambda b, qi: (b, qi, 0)),
                    pl.BlockSpec((1, Sk, D), lambda b, qi: (b, 0, 0)),
                    mask_spec] + weight_specs
        args = (xq, xkv, mask_bias)

    args = args + (p["wq"], p["bq"], p["wkv"], p["bkv"], p["wo"], p["bo"],
                   gamma, beta)

    tile_bytes = (4 * (Sq * D + Sk * D + 2 * tq * D)      # activations (f32)
                  + 2 * 4 * H * D * dk                    # weights (bf16)
                  + 4 * (H + 1) * tq * Sk                 # mask + scores
                  + 4 * 4 * H * tq * dk + 4 * 2 * H * Sk * dk)
    flops = 2 * B * (2 * Sq * D * D + 2 * Sk * D * D + 2 * Sq * Sk * D)
    return pl.pallas_call(
        kern,
        out_shape=jax.ShapeDtypeStruct((B, Sq, D), jnp.float32),
        grid=grid,
        in_specs=in_specs,
        out_specs=pl.BlockSpec((1, tq, D), lambda b, qi: (b, qi, 0)),
        compiler_params=_compiler_params(("parallel", "parallel"), tile_bytes),
        cost_estimate=pl.CostEstimate(
            flops=int(flops),
            transcendentals=int(B * H * Sq * Sk),
            bytes_accessed=int(4 * B * (2 * Sq * D + Sk * D)
                               + 2 * 4 * D * D + 4 * Sq * Sk)),
    )(*args)


def ffn_block(x, w1, b1, w2, b2, gamma, beta):
    """LayerNorm(x + FFN(x)) — row-tiled, d_ff-K-tiled with an f32 accumulator."""
    B, S, D = x.shape
    N = B * S
    d_ff = w1.shape[1]

    cap = _vmem_capacity_bytes()
    max_rt = 512 if cap >= 96 * 2 ** 20 else 256   # bigger row tiles on 128-MiB parts
    rt = min(max_rt, _round_up(N, 8))
    n_pad = _round_up(N, rt)
    kt = _pick_ff_tile(d_ff)

    x2 = x.reshape(N, D)
    if n_pad != N:
        x2 = jnp.pad(x2, ((0, n_pad - N), (0, 0)))  # padded rows discarded below

    tile_bytes = 4 * (3 * rt * D + rt * kt) + 2 * (2 * D * kt)
    out = pl.pallas_call(
        _ffn_ln_kernel,
        out_shape=jax.ShapeDtypeStruct((n_pad, D), jnp.float32),
        grid=(n_pad // rt, d_ff // kt),              # reduction axis last
        in_specs=[
            pl.BlockSpec((rt, D), lambda i, kk: (i, 0)),     # x (also residual)
            pl.BlockSpec((D, kt), lambda i, kk: (0, kk)),    # w1 (bf16)
            pl.BlockSpec((1, kt), lambda i, kk: (0, kk)),    # b1
            pl.BlockSpec((kt, D), lambda i, kk: (kk, 0)),    # w2 (bf16)
            _const_block((1, D)),                            # b2
            _const_block((1, D)),                            # ln gamma
            _const_block((1, D)),                            # ln beta
        ],
        out_specs=pl.BlockSpec((rt, D), lambda i, kk: (i, 0)),
        scratch_shapes=[pltpu.VMEM((rt, D), jnp.float32)],
        compiler_params=_compiler_params(("parallel", "arbitrary"), tile_bytes),
        cost_estimate=pl.CostEstimate(
            flops=int(4 * N * D * d_ff), transcendentals=0,
            bytes_accessed=int(4 * 2 * N * D + 2 * 2 * D * d_ff)),
    )(x2, w1, b1, w2, b2, gamma, beta)
    if n_pad != N:
        out = out[:N]
    return out.reshape(B, S, D)


# ----------------------------- Model assembly -------------------------------

def _mask_bias(mask, sq, sk):
    """Additive attention bias: 0 where attended, -1e9 where masked.

    Matches PyTorch's masked_fill(mask == 0, -1e9) after softmax (masked entries
    underflow to exactly 0 either way).  Mask is shared across batch and heads.
    """
    if mask is None:
        return jnp.zeros((sq, sk), jnp.float32)
    m = jnp.asarray(mask)
    if m.ndim > 2:
        if any(d != 1 for d in m.shape[:-2]):
            # TODO(synk): batch-/head-dependent masks need a per-batch bias block.
            raise NotImplementedError(
                "batch-/head-dependent attention masks are not supported")
        m = m.reshape(m.shape[-2:])
    m = jnp.broadcast_to(m, (sq, sk))
    return jnp.where(m == 0, jnp.float32(-1e9), jnp.float32(0.0))


def decoder_layer(p, x, enc_output, tgt_bias, mem_bias, num_heads):
    x = mha_block(p["self_attn"], x, x, tgt_bias, p["ln1_g"], p["ln1_b"],
                  num_heads, self_attention=True)
    x = mha_block(p["cross_attn"], x, enc_output, mem_bias, p["ln2_g"], p["ln2_b"],
                  num_heads, self_attention=False)
    x = ffn_block(x, p["ff_w1"], p["ff_b1"], p["ff_w2"], p["ff_b2"],
                  p["ln3_g"], p["ln3_b"])
    return x


def decoder_forward(params, tgt, enc_output, tgt_mask, memory_mask, num_heads):
    B, S = tgt.shape
    D = params["token_emb"].shape[1]
    Sk = enc_output.shape[1]

    # Embedding lookup stays in XLA glue (gather); scale + PE add run in Pallas.
    emb = jnp.take(params["token_emb"], tgt, axis=0)          # (B, S, D)
    x = embed_scale_add_pe(emb, params["pos_enc"][:S], D)
    # Dropout after pos_enc / inside layers: eval mode -> identity.

    tgt_bias = _mask_bias(tgt_mask, S, S)
    mem_bias = _mask_bias(memory_mask, S, Sk)
    enc_output = jnp.asarray(enc_output, jnp.float32)

    for lp in params["layers"]:
        x = decoder_layer(lp, x, enc_output, tgt_bias, mem_bias, num_heads)
    return x


# ----------------------------- Parameter init -------------------------------

def _init_linear(key, din, dout):
    kw, kb = jax.random.split(key)
    bound = 1.0 / math.sqrt(din)
    w = jax.random.uniform(kw, (din, dout), jnp.float32, -bound, bound)
    b = jax.random.uniform(kb, (1, dout), jnp.float32, -bound, bound)
    return w, b


def _init_mha(key, d_model, num_heads):
    dk = d_model // num_heads
    scale = 1.0 / math.sqrt(dk)
    kq, kk, kv, ko = jax.random.split(key, 4)
    wq, bq = _init_linear(kq, d_model, d_model)
    wk, bk = _init_linear(kk, d_model, d_model)
    wv, bv = _init_linear(kv, d_model, d_model)
    wo, bo = _init_linear(ko, d_model, d_model)

    def head_split(w, b):     # (D, D), (1, D) -> (H, D, dk), (H, 1, dk)
        wh = w.reshape(d_model, num_heads, dk).transpose(1, 0, 2)
        bh = b.reshape(1, num_heads, dk).transpose(1, 0, 2)
        return wh, bh

    wq_h, bq_h = head_split(wq * scale, bq * scale)   # fold 1/sqrt(dk) into Q proj
    wk_h, bk_h = head_split(wk, bk)
    wv_h, bv_h = head_split(wv, bv)

    return {
        "wq": wq_h.astype(MXU_DTYPE), "bq": bq_h,
        "wkv": jnp.concatenate([wk_h, wv_h], axis=0).astype(MXU_DTYPE),
        "bkv": jnp.concatenate([bk_h, bv_h], axis=0),
        "wo": wo.reshape(num_heads, dk, d_model).astype(MXU_DTYPE),
        "bo": bo,
    }


def _sinusoidal_pe(max_len, d_model):
    pos = jnp.arange(max_len, dtype=jnp.float32)[:, None]
    i = jnp.arange(0, d_model, 2, dtype=jnp.float32)[None, :]
    div = jnp.exp(-math.log(10000.0) * i / d_model)
    pe = jnp.zeros((max_len, d_model), jnp.float32)
    pe = pe.at[:, 0::2].set(jnp.sin(pos * div))
    pe = pe.at[:, 1::2].set(jnp.cos(pos * div))
    return pe


def init_decoder_params(key, vocab_size, d_model, num_heads, d_ff, num_layers,
                        max_len=512):
    keys = jax.random.split(key, num_layers + 1)
    params = {
        "token_emb": jax.random.normal(keys[0], (vocab_size, d_model), jnp.float32),
        "pos_enc": _sinusoidal_pe(max_len, d_model),
        "layers": [],
    }
    for l in range(num_layers):
        lk = jax.random.split(keys[l + 1], 4)
        w1, b1 = _init_linear(lk[2], d_model, d_ff)
        w2, b2 = _init_linear(lk[3], d_ff, d_model)
        params["layers"].append({
            "self_attn": _init_mha(lk[0], d_model, num_heads),
            "cross_attn": _init_mha(lk[1], d_model, num_heads),
            "ff_w1": w1.astype(MXU_DTYPE), "ff_b1": b1,
            "ff_w2": w2.astype(MXU_DTYPE), "ff_b2": b2,
            "ln1_g": jnp.ones((1, d_model), jnp.float32),
            "ln1_b": jnp.zeros((1, d_model), jnp.float32),
            "ln2_g": jnp.ones((1, d_model), jnp.float32),
            "ln2_b": jnp.zeros((1, d_model), jnp.float32),
            "ln3_g": jnp.ones((1, d_model), jnp.float32),
            "ln3_b": jnp.zeros((1, d_model), jnp.float32),
        })
    return params


# ----------------------------------- Main ------------------------------------

if __name__ == "__main__":
    vocab_size, d_model, num_heads, d_ff, num_layers = 50, 32, 4, 64, 2
    B, tgt_len, src_len = 2, 8, 8

    key = jax.random.PRNGKey(0)
    k_params, k_tgt, k_enc = jax.random.split(key, 3)

    params = init_decoder_params(k_params, vocab_size, d_model, num_heads,
                                 d_ff, num_layers)

    tgt = jax.random.randint(k_tgt, (B, tgt_len), 0, vocab_size)
    enc_output = jax.random.normal(k_enc, (B, src_len, d_model), jnp.float32)

    # Causal self-attention mask (PyTorch convention: 0 => masked out), shared
    # across batch and heads, so a single 2-D mask suffices.
    tgt_mask = jnp.tril(jnp.ones((tgt_len, tgt_len), jnp.float32))
    memory_mask = None

    fwd = jax.jit(decoder_forward, static_argnames=("num_heads",))
    out = fwd(params, tgt, enc_output, tgt_mask, memory_mask, num_heads=num_heads)
    out = jax.block_until_ready(out)
    assert out.shape == (B, tgt_len, d_model)
    print("KERNEL_OK")
</pallas_src>

<mosaic_0001>
module attributes {stable_mosaic.version = 11 : i64} {
  func.func @_embed_pe_kernel(%arg0: i32, %arg1: i32, %arg2: memref<1x8x32xf32, #tpu.memory_space<vmem>>, %arg3: memref<8x32xf32, #tpu.memory_space<vmem>>, %arg4: memref<1x8x32xf32, #tpu.memory_space<vmem>>) attributes {dimension_semantics = [#tpu.dimension_semantics<parallel>, #tpu.dimension_semantics<parallel>], iteration_bounds = array<i64: 2, 1>, scalar_prefetch = 0 : i64, scratch_operands = 0 : i64, tpu.core_type = #tpu.core_type<tc>, window_params = [{transform_indices = @transform_0, window_bounds = array<i64: 1, 8, 32>}, {transform_indices = @transform_1, window_bounds = array<i64: 8, 32>}, {transform_indices = @transform_2, window_bounds = array<i64: 1, 8, 32>}]} {
    %c0 = arith.constant 0 : index
    %c0_0 = arith.constant 0 : index
    %c0_1 = arith.constant 0 : index
    %0 = vector.load %arg2[%c0, %c0_0, %c0_1] : memref<1x8x32xf32, #tpu.memory_space<vmem>>, vector<1x8x32xf32>
    %cst = arith.constant 5.65685415 : f32
    %1 = vector.broadcast %cst : f32 to vector<1x8x32xf32>
    %2 = arith.mulf %0, %1 : vector<1x8x32xf32>
    %c0_2 = arith.constant 0 : index
    %c0_3 = arith.constant 0 : index
    %3 = vector.load %arg3[%c0_2, %c0_3] : memref<8x32xf32, #tpu.memory_space<vmem>>, vector<8x32xf32>
    %4 = vector.shape_cast %3 : vector<8x32xf32> to vector<1x8x32xf32>
    %5 = arith.addf %2, %4 : vector<1x8x32xf32>
    %c0_4 = arith.constant 0 : index
    %c0_5 = arith.constant 0 : index
    %c0_6 = arith.constant 0 : index
    %6 = vector.load %arg4[%c0_4, %c0_5, %c0_6] : memref<1x8x32xf32, #tpu.memory_space<vmem>>, vector<1x8x32xf32>
    tpu.vector_store %arg4[%c0_4, %c0_5, %c0_6], %5 {strides = array<i32>} : memref<1x8x32xf32, #tpu.memory_space<vmem>>, vector<1x8x32xf32>,
    return
  }
  func.func @transform_0(%arg0: i32, %arg1: i32) -> (i32, i32, i32) {
    %c0_i32 = arith.constant 0 : i32
    %c0_i32_0 = arith.constant 0 : i32
    return %arg0, %arg1, %c0_i32 : i32, i32, i32
  }
  func.func @transform_1(%arg0: i32, %arg1: i32) -> (i32, i32) {
    %c0_i32 = arith.constant 0 : i32
    %c0_i32_0 = arith.constant 0 : i32
    return %arg1, %c0_i32 : i32, i32
  }
  func.func @transform_2(%arg0: i32, %arg1: i32) -> (i32, i32, i32) {
    %c0_i32 = arith.constant 0 : i32
    %c0_i32_0 = arith.constant 0 : i32
    return %arg0, %arg1, %c0_i32 : i32, i32, i32
  }
}

module attributes {stable_mosaic.version = 11 : i64} {
  func.func @_mha_ln_kernel(%arg0: i32, %arg1: i32, %arg2: memref<1x8x32xf32, #tpu.memory_space<vmem>>, %arg3: memref<8x8xf32, #tpu.memory_space<vmem>>, %arg4: memref<4x32x8xbf16, #tpu.memory_space<vmem>>, %arg5: memref<4x1x8xf32, #tpu.memory_space<vmem>>, %arg6: memref<8x32x8xbf16, #tpu.memory_space<vmem>>, %arg7: memref<8x1x8xf32, #tpu.memory_space<vmem>>, %arg8: memref<4x8x32xbf16, #tpu.memory_space<vmem>>, %arg9: memref<1x32xf32, #tpu.memory_space<vmem>>, %arg10: memref<1x32xf32, #tpu.memory_space<vmem>>, %arg11: memref<1x32xf32, #tpu.memory_space<vmem>>, %arg12: memref<1x8x32xf32, #tpu.memory_space<vmem>>) attributes {dimension_semantics = [#tpu.dimension_semantics<parallel>, #tpu.dimension_semantics<parallel>], iteration_bounds = array<i64: 2, 1>, scalar_prefetch = 0 : i64, scratch_operands = 0 : i64, tpu.core_type = #tpu.core_type<tc>, window_params = [{transform_indices = @transform_0, window_bounds = array<i64: 1, 8, 32>}, {transform_indices = @transform_1, window_bounds = array<i64: 8, 8>}, {pipeline_mode = #tpu.pipeline_mode<synchronous>, transform_indices = @transform_2, window_bounds = array<i64: 4, 32, 8>}, {pipeline_mode = #tpu.pipeline_mode<synchronous>, transform_indices = @transform_3, window_bounds = array<i64: 4, 1, 8>}, {pipeline_mode = #tpu.pipeline_mode<synchronous>, transform_indices = @transform_4, window_bounds = array<i64: 8, 32, 8>}, {pipeline_mode = #tpu.pipeline_mode<synchronous>, transform_indices = @transform_5, window_bounds = array<i64: 8, 1, 8>}, {pipeline_mode = #tpu.pipeline_mode<synchronous>, transform_indices = @transform_6, window_bounds = array<i64: 4, 8, 32>}, {pipeline_mode = #tpu.pipeline_mode<synchronous>, transform_indices = @transform_7, window_bounds = array<i64: 1, 32>}, {pipeline_mode = #tpu.pipeline_mode<synchronous>, transform_indices = @transform_8, window_bounds = array<i64: 1, 32>}, {pipeline_mode = #tpu.pipeline_mode<synchronous>, transform_indices = @transform_9, window_bounds = array<i64: 1, 32>}, {transform_indices = @transform_10, window_bounds = array<i64: 1, 8, 32>}]} {
    %c0 = arith.constant 0 : index
    %c0_0 = arith.constant 0 : index
    %c0_1 = arith.constant 0 : index
    %0 = vector.load %arg2[%c0, %c0_0, %c0_1] : memref<1x8x32xf32, #tpu.memory_space<vmem>>, vector<1x8x32xf32>
    %1 = vector.shape_cast %0 : vector<1x8x32xf32> to vector<8x32xf32>
    %2 = arith.truncf %1 : vector<8x32xf32> to vector<8x32xbf16>
    %3 = arith.truncf %1 : vector<8x32xf32> to vector<8x32xbf16>
    %4 = vector.shape_cast %2 : vector<8x32xbf16> to vector<1x8x32xbf16>
    %5 = vector.shape_cast %4 : vector<1x8x32xbf16> to vector<1x8x32xbf16>
    %6 = vector.broadcast %5 : vector<1x8x32xbf16> to vector<4x8x32xbf16>
    %7 = vector.shape_cast %3 : vector<8x32xbf16> to vector<1x8x32xbf16>
    %8 = vector.shape_cast %7 : vector<1x8x32xbf16> to vector<1x8x32xbf16>
    %9 = vector.broadcast %8 : vector<1x8x32xbf16> to vector<8x8x32xbf16>
    %c0_2 = arith.constant 0 : index
    %c0_3 = arith.constant 0 : index
    %c0_4 = arith.constant 0 : index
    %10 = vector.load %arg4[%c0_2, %c0_3, %c0_4] : memref<4x32x8xbf16, #tpu.memory_space<vmem>>, vector<4x32x8xbf16>
    "tpu.trace_start"() <{level = 10 : i32, message = "hqm,hmd->hqd"}> : () -> ()
    %cst = arith.constant dense<0.000000e+00> : vector<4x8x8xf32>
    %11 = tpu.matmul %6, %10, %cst {dimension_numbers = #tpu.dot_dimension_numbers<[2], [1], [1], [2], [0, 0, 0, 1, 1, 2], [0], [0]>} : vector<4x8x32xbf16>, vector<4x32x8xbf16>, vector<4x8x8xf32> -> vector<4x8x8xf32>
    "tpu.trace_stop"() : () -> ()
    %c0_5 = arith.constant 0 : index
    %c0_6 = arith.constant 0 : index
    %c0_7 = arith.constant 0 : index
    %12 = vector.load %arg5[%c0_5, %c0_6, %c0_7] : memref<4x1x8xf32, #tpu.memory_space<vmem>>, vector<4x1x8xf32>
    %13 = vector.broadcast %12 : vector<4x1x8xf32> to vector<4x8x8xf32>
    %14 = arith.addf %11, %13 : vector<4x8x8xf32>
    %c0_8 = arith.constant 0 : index
    %c0_9 = arith.constant 0 : index
    %c0_10 = arith.constant 0 : index
    %15 = vector.load %arg6[%c0_8, %c0_9, %c0_10] : memref<8x32x8xbf16, #tpu.memory_space<vmem>>, vector<8x32x8xbf16>
    "tpu.trace_start"() <{level = 10 : i32, message = "hkm,hmd->hkd"}> : () -> ()
    %cst_11 = arith.constant dense<0.000000e+00> : vector<8x8x8xf32>
    %16 = tpu.matmul %9, %15, %cst_11 {dimension_numbers = #tpu.dot_dimension_numbers<[2], [1], [1], [2], [0, 0, 0, 1, 1, 2], [0], [0]>} : vector<8x8x32xbf16>, vector<8x32x8xbf16>, vector<8x8x8xf32> -> vector<8x8x8xf32>
    "tpu.trace_stop"() : () -> ()
    %c0_12 = arith.constant 0 : index
    %c0_13 = arith.constant 0 : index
    %c0_14 = arith.constant 0 : index
    %17 = vector.load %arg7[%c0_12, %c0_13, %c0_14] : memref<8x1x8xf32, #tpu.memory_space<vmem>>, vector<8x1x8xf32>
    %18 = vector.broadcast %17 : vector<8x1x8xf32> to vector<8x8x8xf32>
    %19 = arith.addf %16, %18 : vector<8x8x8xf32>
    %20 = vector.extract_strided_slice %19 {offsets = [0, 0, 0], sizes = [4, 8, 8], strides = [1, 1, 1]} : vector<8x8x8xf32> to vector<4x8x8xf32>
    %21 = vector.extract_strided_slice %19 {offsets = [4, 0, 0], sizes = [4, 8, 8], strides = [1, 1, 1]} : vector<8x8x8xf32> to vector<4x8x8xf32>
    %22 = arith.truncf %14 : vector<4x8x8xf32> to vector<4x8x8xbf16>
    %23 = arith.truncf %20 : vector<4x8x8xf32> to vector<4x8x8xbf16>
    "tpu.trace_start"() <{level = 10 : i32, message = "hqd,hkd->hqk"}> : () -> ()
    %cst_15 = arith.constant dense<0.000000e+00> : vector<4x8x8xf32>
    %24 = tpu.matmul %22, %23, %cst_15 {dimension_numbers = #tpu.dot_dimension_numbers<[2], [2], [1], [1], [0, 0, 0, 1, 1, 1], [0], [0]>} : vector<4x8x8xbf16>, vector<4x8x8xbf16>, vector<4x8x8xf32> -> vector<4x8x8xf32>
    "tpu.trace_stop"() : () -> ()
    %c0_16 = arith.constant 0 : index
    %c0_17 = arith.constant 0 : index
    %25 = vector.load %arg3[%c0_16, %c0_17] : memref<8x8xf32, #tpu.memory_space<vmem>>, vector<8x8xf32>
    %26 = vector.shape_cast %25 : vector<8x8xf32> to vector<1x8x8xf32>
    %27 = vector.broadcast %26 : vector<1x8x8xf32> to vector<4x8x8xf32>
    %28 = arith.addf %24, %27 : vector<4x8x8xf32>
    %cst_18 = arith.constant dense<0xFF800000> : vector<4x8xf32>
    %29 = vector.multi_reduction <maximumf>, %28, %cst_18 [2] : vector<4x8x8xf32> to vector<4x8xf32>
    %30 = vector.shape_cast %29 : vector<4x8xf32> to vector<4x8x1xf32>
    %31 = vector.broadcast %30 : vector<4x8x1xf32> to vector<4x8x8xf32>
    %32 = arith.subf %28, %31 : vector<4x8x8xf32>
    %33 = math.exp %32 : vector<4x8x8xf32>
    %cst_19 = arith.constant dense<0.000000e+00> : vector<4x8xf32>
    %34 = vector.multi_reduction <add>, %33, %cst_19 [2] : vector<4x8x8xf32> to vector<4x8xf32>
    %35 = vector.shape_cast %34 : vector<4x8xf32> to vector<4x8x1xf32>
    %36 = vector.broadcast %35 : vector<4x8x1xf32> to vector<4x8x8xf32>
    %37 = arith.divf %33, %36 : vector<4x8x8xf32>
    %38 = arith.truncf %37 : vector<4x8x8xf32> to vector<4x8x8xbf16>
    %39 = arith.truncf %21 : vector<4x8x8xf32> to vector<4x8x8xbf16>
    "tpu.trace_start"() <{level = 10 : i32, message = "hqk,hkd->hqd"}> : () -> ()
    %cst_20 = arith.constant dense<0.000000e+00> : vector<4x8x8xf32>
    %40 = tpu.matmul %38, %39, %cst_20 {dimension_numbers = #tpu.dot_dimension_numbers<[2], [1], [1], [2], [0, 0, 0, 1, 1, 2], [0], [0]>} : vector<4x8x8xbf16>, vector<4x8x8xbf16>, vector<4x8x8xf32> -> vector<4x8x8xf32>
    "tpu.trace_stop"() : () -> ()
    %41 = arith.truncf %40 : vector<4x8x8xf32> to vector<4x8x8xbf16>
    %c0_21 = arith.constant 0 : index
    %c0_22 = arith.constant 0 : index
    %c0_23 = arith.constant 0 : index
    %42 = vector.load %arg8[%c0_21, %c0_22, %c0_23] : memref<4x8x32xbf16, #tpu.memory_space<vmem>>, vector<4x8x32xbf16>
    "tpu.trace_start"() <{level = 10 : i32, message = "hqd,hdm->hqm"}> : () -> ()
    %cst_24 = arith.constant dense<0.000000e+00> : vector<4x8x32xf32>
    %43 = tpu.matmul %41, %42, %cst_24 {dimension_numbers = #tpu.dot_dimension_numbers<[2], [1], [1], [2], [0, 0, 0, 1, 1, 2], [0], [0]>} : vector<4x8x8xbf16>, vector<4x8x32xbf16>, vector<4x8x32xf32> -> vector<4x8x32xf32>
    "tpu.trace_stop"() : () -> ()
    %cst_25 = arith.constant dense<0.000000e+00> : vector<8x32xf32>
    %44 = vector.multi_reduction <add>, %43, %cst_25 [0] : vector<4x8x32xf32> to vector<8x32xf32>
    %c0_26 = arith.constant 0 : index
    %c0_27 = arith.constant 0 : index
    %45 = vector.load %arg9[%c0_26, %c0_27] : memref<1x32xf32, #tpu.memory_space<vmem>>, vector<1x32xf32>
    %46 = vector.broadcast %45 : vector<1x32xf32> to vector<8x32xf32>
    %47 = arith.addf %44, %46 : vector<8x32xf32>
    %48 = arith.addf %1, %47 : vector<8x32xf32>
    %c0_28 = arith.constant 0 : index
    %c0_29 = arith.constant 0 : index
    %49 = vector.load %arg10[%c0_28, %c0_29] : memref<1x32xf32, #tpu.memory_space<vmem>>, vector<1x32xf32>
    %c0_30 = arith.constant 0 : index
    %c0_31 = arith.constant 0 : index
    %50 = vector.load %arg11[%c0_30, %c0_31] : memref<1x32xf32, #tpu.memory_space<vmem>>, vector<1x32xf32>
    %cst_32 = arith.constant dense<0.000000e+00> : vector<8xf32>
    %51 = vector.multi_reduction <add>, %48, %cst_32 [1] : vector<8x32xf32> to vector<8xf32>
    %52 = vector.shape_cast %51 : vector<8xf32> to vector<8x1xf32>
    %cst_33 = arith.constant 3.200000e+01 : f32
    %53 = vector.broadcast %cst_33 : f32 to vector<8x1xf32>
    %54 = arith.divf %52, %53 : vector<8x1xf32>
    %55 = vector.broadcast %54 : vector<8x1xf32> to vector<8x32xf32>
    %56 = arith.subf %48, %55 : vector<8x32xf32>
    %57 = arith.mulf %56, %56 : vector<8x32xf32>
    %cst_34 = arith.constant dense<0.000000e+00> : vector<8xf32>
    %58 = vector.multi_reduction <add>, %57, %cst_34 [1] : vector<8x32xf32> to vector<8xf32>
    %59 = vector.shape_cast %58 : vector<8xf32> to vector<8x1xf32>
    %cst_35 = arith.constant 3.200000e+01 : f32
    %60 = vector.broadcast %cst_35 : f32 to vector<8x1xf32>
    %61 = arith.divf %59, %60 : vector<8x1xf32>
    %62 = vector.broadcast %54 : vector<8x1xf32> to vector<8x32xf32>
    %63 = arith.subf %48, %62 : vector<8x32xf32>
    %cst_36 = arith.constant 9.99999974E-6 : f32
    %64 = vector.broadcast %cst_36 : f32 to vector<8x1xf32>
    %65 = arith.addf %61, %64 : vector<8x1xf32>
    %66 = math.rsqrt %65 : vector<8x1xf32>
    %67 = vector.broadcast %66 : vector<8x1xf32> to vector<8x32xf32>
    %68 = arith.mulf %63, %67 : vector<8x32xf32>
    %69 = vector.broadcast %49 : vector<1x32xf32> to vector<8x32xf32>
    %70 = arith.mulf %68, %69 : vector<8x32xf32>
    %71 = vector.broadcast %50 : vector<1x32xf32> to vector<8x32xf32>
    %72 = arith.addf %70, %71 : vector<8x32xf32>
    %c0_37 = arith.constant 0 : index
    %c0_38 = arith.constant 0 : index
    %c0_39 = arith.constant 0 : index
    %73 = vector.load %arg12[%c0_37, %c0_38, %c0_39] : memref<1x8x32xf32, #tpu.memory_space<vmem>>, vector<1x8x32xf32>
    %74 = vector.shape_cast %73 : vector<1x8x32xf32> to vector<8x32xf32>
    %75 = vector.shape_cast %72 : vector<8x32xf32> to vector<1x8x32xf32>
    tpu.vector_store %arg12[%c0_37, %c0_38, %c0_39], %75 {strides = array<i32>} : memref<1x8x32xf32, #tpu.memory_space<vmem>>, vector<1x8x32xf32>,
    return
  }
  func.func @transform_0(%arg0: i32, %arg1: i32) -> (i32, i32, i32) {
    %c0_i32 = arith.constant 0 : i32
    %c0_i32_0 = arith.constant 0 : i32
    %c0_i32_1 = arith.constant 0 : i32
    return %arg0, %c0_i32, %c0_i32_0 : i32, i32, i32
  }
  func.func @transform_1(%arg0: i32, %arg1: i32) -> (i32, i32) {
    %c0_i32 = arith.constant 0 : i32
    %c0_i32_0 = arith.constant 0 : i32
    return %arg1, %c0_i32 : i32, i32
  }
  func.func @transform_2(%arg0: i32, %arg1: i32) -> (i32, i32, i32) {
    %c0_i32 = arith.constant 0 : i32
    %c0_i32_0 = arith.constant 0 : i32
    %c0_i32_1 = arith.constant 0 : i32
    %c0_i32_2 = arith.constant 0 : i32
    return %c0_i32, %c0_i32_0, %c0_i32_1 : i32, i32, i32
  }
  func.func @transform_3(%arg0: i32, %arg1: i32) -> (i32, i32, i32) {
    %c0_i32 = arith.constant 0 : i32
    %c0_i32_0 = arith.constant 0 : i32
    %c0_i32_1 = arith.constant 0 : i32
    %c0_i32_2 = arith.constant 0 : i32
    return %c0_i32, %c0_i32_0, %c0_i32_1 : i32, i32, i32
  }
  func.func @transform_4(%arg0: i32, %arg1: i32) -> (i32, i32, i32) {
    %c0_i32 = arith.constant 0 : i32
    %c0_i32_0 = arith.constant 0 : i32
    %c0_i32_1 = arith.constant 0 : i32
    %c0_i32_2 = arith.constant 0 : i32
    return %c0_i32, %c0_i32_0, %c0_i32_1 : i32, i32, i32
  }
  func.func @transform_5(%arg0: i32, %arg1: i32) -> (i32, i32, i32) {
    %c0_i32 = arith.constant 0 : i32
    %c0_i32_0 = arith.constant 0 : i32
    %c0_i32_1 = arith.constant 0 : i32
    %c0_i32_2 = arith.constant 0 : i32
    return %c0_i32, %c0_i32_0, %c0_i32_1 : i32, i32, i32
  }
  func.func @transform_6(%arg0: i32, %arg1: i32) -> (i32, i32, i32) {
    %c0_i32 = arith.constant 0 : i32
    %c0_i32_0 = arith.constant 0 : i32
    %c0_i32_1 = arith.constant 0 : i32
    %c0_i32_2 = arith.constant 0 : i32
    return %c0_i32, %c0_i32_0, %c0_i32_1 : i32, i32, i32
  }
  func.func @transform_7(%arg0: i32, %arg1: i32) -> (i32, i32) {
    %c0_i32 = arith.constant 0 : i32
    %c0_i32_0 = arith.constant 0 : i32
    %c0_i32_1 = arith.constant 0 : i32
    return %c0_i32, %c0_i32_0 : i32, i32
  }
  func.func @transform_8(%arg0: i32, %arg1: i32) -> (i32, i32) {
    %c0_i32 = arith.constant 0 : i32
    %c0_i32_0 = arith.constant 0 : i32
    %c0_i32_1 = arith.constant 0 : i32
    return %c0_i32, %c0_i32_0 : i32, i32
  }
  func.func @transform_9(%arg0: i32, %arg1: i32) -> (i32, i32) {
    %c0_i32 = arith.constant 0 : i32
    %c0_i32_0 = arith.constant 0 : i32
    %c0_i32_1 = arith.constant 0 : i32
    return %c0_i32, %c0_i32_0 : i32, i32
  }
  func.func @transform_10(%arg0: i32, %arg1: i32) -> (i32, i32, i32) {
    %c0_i32 = arith.constant 0 : i32
    %c0_i32_0 = arith.constant 0 : i32
    return %arg0, %arg1, %c0_i32 : i32, i32, i32
  }
}

module attributes {stable_mosaic.version = 11 : i64} {
  func.func @_mha_ln_kernel(%arg0: i32, %arg1: i32, %arg2: memref<1x8x32xf32, #tpu.memory_space<vmem>>, %arg3: memref<1x8x32xf32, #tpu.memory_space<vmem>>, %arg4: memref<8x8xf32, #tpu.memory_space<vmem>>, %arg5: memref<4x32x8xbf16, #tpu.memory_space<vmem>>, %arg6: memref<4x1x8xf32, #tpu.memory_space<vmem>>, %arg7: memref<8x32x8xbf16, #tpu.memory_space<vmem>>, %arg8: memref<8x1x8xf32, #tpu.memory_space<vmem>>, %arg9: memref<4x8x32xbf16, #tpu.memory_space<vmem>>, %arg10: memref<1x32xf32, #tpu.memory_space<vmem>>, %arg11: memref<1x32xf32, #tpu.memory_space<vmem>>, %arg12: memref<1x32xf32, #tpu.memory_space<vmem>>, %arg13: memref<1x8x32xf32, #tpu.memory_space<vmem>>) attributes {dimension_semantics = [#tpu.dimension_semantics<parallel>, #tpu.dimension_semantics<parallel>], iteration_bounds = array<i64: 2, 1>, scalar_prefetch = 0 : i64, scratch_operands = 0 : i64, tpu.core_type = #tpu.core_type<tc>, window_params = [{transform_indices = @transform_0, window_bounds = array<i64: 1, 8, 32>}, {transform_indices = @transform_1, window_bounds = array<i64: 1, 8, 32>}, {transform_indices = @transform_2, window_bounds = array<i64: 8, 8>}, {pipeline_mode = #tpu.pipeline_mode<synchronous>, transform_indices = @transform_3, window_bounds = array<i64: 4, 32, 8>}, {pipeline_mode = #tpu.pipeline_mode<synchronous>, transform_indices = @transform_4, window_bounds = array<i64: 4, 1, 8>}, {pipeline_mode = #tpu.pipeline_mode<synchronous>, transform_indices = @transform_5, window_bounds = array<i64: 8, 32, 8>}, {pipeline_mode = #tpu.pipeline_mode<synchronous>, transform_indices = @transform_6, window_bounds = array<i64: 8, 1, 8>}, {pipeline_mode = #tpu.pipeline_mode<synchronous>, transform_indices = @transform_7, window_bounds = array<i64: 4, 8, 32>}, {pipeline_mode = #tpu.pipeline_mode<synchronous>, transform_indices = @transform_8, window_bounds = array<i64: 1, 32>}, {pipeline_mode = #tpu.pipeline_mode<synchronous>, transform_indices = @transform_9, window_bounds = array<i64: 1, 32>}, {pipeline_mode = #tpu.pipeline_mode<synchronous>, transform_indices = @transform_10, window_bounds = array<i64: 1, 32>}, {transform_indices = @transform_11, window_bounds = array<i64: 1, 8, 32>}]} {
    %c0 = arith.constant 0 : index
    %c0_0 = arith.constant 0 : index
    %c0_1 = arith.constant 0 : index
    %0 = vector.load %arg2[%c0, %c0_0, %c0_1] : memref<1x8x32xf32, #tpu.memory_space<vmem>>, vector<1x8x32xf32>
    %1 = vector.shape_cast %0 : vector<1x8x32xf32> to vector<8x32xf32>
    %c0_2 = arith.constant 0 : index
    %c0_3 = arith.constant 0 : index
    %c0_4 = arith.constant 0 : index
    %2 = vector.load %arg3[%c0_2, %c0_3, %c0_4] : memref<1x8x32xf32, #tpu.memory_space<vmem>>, vector<1x8x32xf32>
    %3 = vector.shape_cast %2 : vector<1x8x32xf32> to vector<8x32xf32>
    %4 = arith.truncf %1 : vector<8x32xf32> to vector<8x32xbf16>
    %5 = arith.truncf %3 : vector<8x32xf32> to vector<8x32xbf16>
    %6 = vector.shape_cast %4 : vector<8x32xbf16> to vector<1x8x32xbf16>
    %7 = vector.shape_cast %6 : vector<1x8x32xbf16> to vector<1x8x32xbf16>
    %8 = vector.broadcast %7 : vector<1x8x32xbf16> to vector<4x8x32xbf16>
    %9 = vector.shape_cast %5 : vector<8x32xbf16> to vector<1x8x32xbf16>
    %10 = vector.shape_cast %9 : vector<1x8x32xbf16> to vector<1x8x32xbf16>
    %11 = vector.broadcast %10 : vector<1x8x32xbf16> to vector<8x8x32xbf16>
    %c0_5 = arith.constant 0 : index
    %c0_6 = arith.constant 0 : index
    %c0_7 = arith.constant 0 : index
    %12 = vector.load %arg5[%c0_5, %c0_6, %c0_7] : memref<4x32x8xbf16, #tpu.memory_space<vmem>>, vector<4x32x8xbf16>
    "tpu.trace_start"() <{level = 10 : i32, message = "hqm,hmd->hqd"}> : () -> ()
    %cst = arith.constant dense<0.000000e+00> : vector<4x8x8xf32>
    %13 = tpu.matmul %8, %12, %cst {dimension_numbers = #tpu.dot_dimension_numbers<[2], [1], [1], [2], [0, 0, 0, 1, 1, 2], [0], [0]>} : vector<4x8x32xbf16>, vector<4x32x8xbf16>, vector<4x8x8xf32> -> vector<4x8x8xf32>
    "tpu.trace_stop"() : () -> ()
    %c0_8 = arith.constant 0 : index
    %c0_9 = arith.constant 0 : index
    %c0_10 = arith.constant 0 : index
    %14 = vector.load %arg6[%c0_8, %c0_9, %c0_10] : memref<4x1x8xf32, #tpu.memory_space<vmem>>, vector<4x1x8xf32>
    %15 = vector.broadcast %14 : vector<4x1x8xf32> to vector<4x8x8xf32>
    %16 = arith.addf %13, %15 : vector<4x8x8xf32>
    %c0_11 = arith.constant 0 : index
    %c0_12 = arith.constant 0 : index
    %c0_13 = arith.constant 0 : index
    %17 = vector.load %arg7[%c0_11, %c0_12, %c0_13] : memref<8x32x8xbf16, #tpu.memory_space<vmem>>, vector<8x32x8xbf16>
    "tpu.trace_start"() <{level = 10 : i32, message = "hkm,hmd->hkd"}> : () -> ()
    %cst_14 = arith.constant dense<0.000000e+00> : vector<8x8x8xf32>
    %18 = tpu.matmul %11, %17, %cst_14 {dimension_numbers = #tpu.dot_dimension_numbers<[2], [1], [1], [2], [0, 0, 0, 1, 1, 2], [0], [0]>} : vector<8x8x32xbf16>, vector<8x32x8xbf16>, vector<8x8x8xf32> -> vector<8x8x8xf32>
    "tpu.trace_stop"() : () -> ()
    %c0_15 = arith.constant 0 : index
    %c0_16 = arith.constant 0 : index
    %c0_17 = arith.constant 0 : index
    %19 = vector.load %arg8[%c0_15, %c0_16, %c0_17] : memref<8x1x8xf32, #tpu.memory_space<vmem>>, vector<8x1x8xf32>
    %20 = vector.broadcast %19 : vector<8x1x8xf32> to vector<8x8x8xf32>
    %21 = arith.addf %18, %20 : vector<8x8x8xf32>
    %22 = vector.extract_strided_slice %21 {offsets = [0, 0, 0], sizes = [4, 8, 8], strides = [1, 1, 1]} : vector<8x8x8xf32> to vector<4x8x8xf32>
    %23 = vector.extract_strided_slice %21 {offsets = [4, 0, 0], sizes = [4, 8, 8], strides = [1, 1, 1]} : vector<8x8x8xf32> to vector<4x8x8xf32>
    %24 = arith.truncf %16 : vector<4x8x8xf32> to vector<4x8x8xbf16>
    %25 = arith.truncf %22 : vector<4x8x8xf32> to vector<4x8x8xbf16>
    "tpu.trace_start"() <{level = 10 : i32, message = "hqd,hkd->hqk"}> : () -> ()
    %cst_18 = arith.constant dense<0.000000e+00> : vector<4x8x8xf32>
    %26 = tpu.matmul %24, %25, %cst_18 {dimension_numbers = #tpu.dot_dimension_numbers<[2], [2], [1], [1], [0, 0, 0, 1, 1, 1], [0], [0]>} : vector<4x8x8xbf16>, vector<4x8x8xbf16>, vector<4x8x8xf32> -> vector<4x8x8xf32>
    "tpu.trace_stop"() : () -> ()
    %c0_19 = arith.constant 0 : index
    %c0_20 = arith.constant 0 : index
    %27 = vector.load %arg4[%c0_19, %c0_20] : memref<8x8xf32, #tpu.memory_space<vmem>>, vector<8x8xf32>
    %28 = vector.shape_cast %27 : vector<8x8xf32> to vector<1x8x8xf32>
    %29 = vector.broadcast %28 : vector<1x8x8xf32> to vector<4x8x8xf32>
    %30 = arith.addf %26, %29 : vector<4x8x8xf32>
    %cst_21 = arith.constant dense<0xFF800000> : vector<4x8xf32>
    %31 = vector.multi_reduction <maximumf>, %30, %cst_21 [2] : vector<4x8x8xf32> to vector<4x8xf32>
    %32 = vector.shape_cast %31 : vector<4x8xf32> to vector<4x8x1xf32>
    %33 = vector.broadcast %32 : vector<4x8x1xf32> to vector<4x8x8xf32>
    %34 = arith.subf %30, %33 : vector<4x8x8xf32>
    %35 = math.exp %34 : vector<4x8x8xf32>
    %cst_22 = arith.constant dense<0.000000e+00> : vector<4x8xf32>
    %36 = vector.multi_reduction <add>, %35, %cst_22 [2] : vector<4x8x8xf32> to vector<4x8xf32>
    %37 = vector.shape_cast %36 : vector<4x8xf32> to vector<4x8x1xf32>
    %38 = vector.broadcast %37 : vector<4x8x1xf32> to vector<4x8x8xf32>
    %39 = arith.divf %35, %38 : vector<4x8x8xf32>
    %40 = arith.truncf %39 : vector<4x8x8xf32> to vector<4x8x8xbf16>
    %41 = arith.truncf %23 : vector<4x8x8xf32> to vector<4x8x8xbf16>
    "tpu.trace_start"() <{level = 10 : i32, message = "hqk,hkd->hqd"}> : () -> ()
    %cst_23 = arith.constant dense<0.000000e+00> : vector<4x8x8xf32>
    %42 = tpu.matmul %40, %41, %cst_23 {dimension_numbers = #tpu.dot_dimension_numbers<[2], [1], [1], [2], [0, 0, 0, 1, 1, 2], [0], [0]>} : vector<4x8x8xbf16>, vector<4x8x8xbf16>, vector<4x8x8xf32> -> vector<4x8x8xf32>
    "tpu.trace_stop"() : () -> ()
    %43 = arith.truncf %42 : vector<4x8x8xf32> to vector<4x8x8xbf16>
    %c0_24 = arith.constant 0 : index
    %c0_25 = arith.constant 0 : index
    %c0_26 = arith.constant 0 : index
    %44 = vector.load %arg9[%c0_24, %c0_25, %c0_26] : memref<4x8x32xbf16, #tpu.memory_space<vmem>>, vector<4x8x32xbf16>
    "tpu.trace_start"() <{level = 10 : i32, message = "hqd,hdm->hqm"}> : () -> ()
    %cst_27 = arith.constant dense<0.000000e+00> : vector<4x8x32xf32>
    %45 = tpu.matmul %43, %44, %cst_27 {dimension_numbers = #tpu.dot_dimension_numbers<[2], [1], [1], [2], [0, 0, 0, 1, 1, 2], [0], [0]>} : vector<4x8x8xbf16>, vector<4x8x32xbf16>, vector<4x8x32xf32> -> vector<4x8x32xf32>
    "tpu.trace_stop"() : () -> ()
    %cst_28 = arith.constant dense<0.000000e+00> : vector<8x32xf32>
    %46 = vector.multi_reduction <add>, %45, %cst_28 [0] : vector<4x8x32xf32> to vector<8x32xf32>
    %c0_29 = arith.constant 0 : index
    %c0_30 = arith.constant 0 : index
    %47 = vector.load %arg10[%c0_29, %c0_30] : memref<1x32xf32, #tpu.memory_space<vmem>>, vector<1x32xf32>
    %48 = vector.broadcast %47 : vector<1x32xf32> to vector<8x32xf32>
    %49 = arith.addf %46, %48 : vector<8x32xf32>
    %50 = arith.addf %1, %49 : vector<8x32xf32>
    %c0_31 = arith.constant 0 : index
    %c0_32 = arith.constant 0 : index
    %51 = vector.load %arg11[%c0_31, %c0_32] : memref<1x32xf32, #tpu.memory_space<vmem>>, vector<1x32xf32>
    %c0_33 = arith.constant 0 : index
    %c0_34 = arith.constant 0 : index
    %52 = vector.load %arg12[%c0_33, %c0_34] : memref<1x32xf32, #tpu.memory_space<vmem>>, vector<1x32xf32>
    %cst_35 = arith.constant dense<0.000000e+00> : vector<8xf32>
    %53 = vector.multi_reduction <add>, %50, %cst_35 [1] : vector<8x32xf32> to vector<8xf32>
    %54 = vector.shape_cast %53 : vector<8xf32> to vector<8x1xf32>
    %cst_36 = arith.constant 3.200000e+01 : f32
    %55 = vector.broadcast %cst_36 : f32 to vector<8x1xf32>
    %56 = arith.divf %54, %55 : vector<8x1xf32>
    %57 = vector.broadcast %56 : vector<8x1xf32> to vector<8x32xf32>
    %58 = arith.subf %50, %57 : vector<8x32xf32>
    %59 = arith.mulf %58, %58 : vector<8x32xf32>
    %cst_37 = arith.constant dense<0.000000e+00> : vector<8xf32>
    %60 = vector.multi_reduction <add>, %59, %cst_37 [1] : vector<8x32xf32> to vector<8xf32>
    %61 = vector.shape_cast %60 : vector<8xf32> to vector<8x1xf32>
    %cst_38 = arith.constant 3.200000e+01 : f32
    %62 = vector.broadcast %cst_38 : f32 to vector<8x1xf32>
    %63 = arith.divf %61, %62 : vector<8x1xf32>
    %64 = vector.broadcast %56 : vector<8x1xf32> to vector<8x32xf32>
    %65 = arith.subf %50, %64 : vector<8x32xf32>
    %cst_39 = arith.constant 9.99999974E-6 : f32
    %66 = vector.broadcast %cst_39 : f32 to vector<8x1xf32>
    %67 = arith.addf %63, %66 : vector<8x1xf32>
    %68 = math.rsqrt %67 : vector<8x1xf32>
    %69 = vector.broadcast %68 : vector<8x1xf32> to vector<8x32xf32>
    %70 = arith.mulf %65, %69 : vector<8x32xf32>
    %71 = vector.broadcast %51 : vector<1x32xf32> to vector<8x32xf32>
    %72 = arith.mulf %70, %71 : vector<8x32xf32>
    %73 = vector.broadcast %52 : vector<1x32xf32> to vector<8x32xf32>
    %74 = arith.addf %72, %73 : vector<8x32xf32>
    %c0_40 = arith.constant 0 : index
    %c0_41 = arith.constant 0 : index
    %c0_42 = arith.constant 0 : index
    %75 = vector.load %arg13[%c0_40, %c0_41, %c0_42] : memref<1x8x32xf32, #tpu.memory_space<vmem>>, vector<1x8x32xf32>
    %76 = vector.shape_cast %75 : vector<1x8x32xf32> to vector<8x32xf32>
    %77 = vector.shape_cast %74 : vector<8x32xf32> to vector<1x8x32xf32>
    tpu.vector_store %arg13[%c0_40, %c0_41, %c0_42], %77 {strides = array<i32>} : memref<1x8x32xf32, #tpu.memory_space<vmem>>, vector<1x8x32xf32>,
    return
  }
  func.func @transform_0(%arg0: i32, %arg1: i32) -> (i32, i32, i32) {
    %c0_i32 = arith.constant 0 : i32
    %c0_i32_0 = arith.constant 0 : i32
    return %arg0, %arg1, %c0_i32 : i32, i32, i32
  }
  func.func @transform_1(%arg0: i32, %arg1: i32) -> (i32, i32, i32) {
    %c0_i32 = arith.constant 0 : i32
    %c0_i32_0 = arith.constant 0 : i32
    %c0_i32_1 = arith.constant 0 : i32
    return %arg0, %c0_i32, %c0_i32_0 : i32, i32, i32
  }
  func.func @transform_2(%arg0: i32, %arg1: i32) -> (i32, i32) {
    %c0_i32 = arith.constant 0 : i32
    %c0_i32_0 = arith.constant 0 : i32
    return %arg1, %c0_i32 : i32, i32
  }
  func.func @transform_3(%arg0: i32, %arg1: i32) -> (i32, i32, i32) {
    %c0_i32 = arith.constant 0 : i32
    %c0_i32_0 = arith.constant 0 : i32
    %c0_i32_1 = arith.constant 0 : i32
    %c0_i32_2 = arith.constant 0 : i32
    return %c0_i32, %c0_i32_0, %c0_i32_1 : i32, i32, i32
  }
  func.func @transform_4(%arg0: i32, %arg1: i32) -> (i32, i32, i32) {
    %c0_i32 = arith.constant 0 : i32
    %c0_i32_0 = arith.constant 0 : i32
    %c0_i32_1 = arith.constant 0 : i32
    %c0_i32_2 = arith.constant 0 : i32
    return %c0_i32, %c0_i32_0, %c0_i32_1 : i32, i32, i32
  }
  func.func @transform_5(%arg0: i32, %arg1: i32) -> (i32, i32, i32) {
    %c0_i32 = arith.constant 0 : i32
    %c0_i32_0 = arith.constant 0 : i32
    %c0_i32_1 = arith.constant 0 : i32
    %c0_i32_2 = arith.constant 0 : i32
    return %c0_i32, %c0_i32_0, %c0_i32_1 : i32, i32, i32
  }
  func.func @transform_6(%arg0: i32, %arg1: i32) -> (i32, i32, i32) {
    %c0_i32 = arith.constant 0 : i32
    %c0_i32_0 = arith.constant 0 : i32
    %c0_i32_1 = arith.constant 0 : i32
    %c0_i32_2 = arith.constant 0 : i32
    return %c0_i32, %c0_i32_0, %c0_i32_1 : i32, i32, i32
  }
  func.func @transform_7(%arg0: i32, %arg1: i32) -> (i32, i32, i32) {
    %c0_i32 = arith.constant 0 : i32
    %c0_i32_0 = arith.constant 0 : i32
    %c0_i32_1 = arith.constant 0 : i32
    %c0_i32_2 = arith.constant 0 : i32
    return %c0_i32, %c0_i32_0, %c0_i32_1 : i32, i32, i32
  }
  func.func @transform_8(%arg0: i32, %arg1: i32) -> (i32, i32) {
    %c0_i32 = arith.constant 0 : i32
    %c0_i32_0 = arith.constant 0 : i32
    %c0_i32_1 = arith.constant 0 : i32
    return %c0_i32, %c0_i32_0 : i32, i32
  }
  func.func @transform_9(%arg0: i32, %arg1: i32) -> (i32, i32) {
    %c0_i32 = arith.constant 0 : i32
    %c0_i32_0 = arith.constant 0 : i32
    %c0_i32_1 = arith.constant 0 : i32
    return %c0_i32, %c0_i32_0 : i32, i32
  }
  func.func @transform_10(%arg0: i32, %arg1: i32) -> (i32, i32) {
    %c0_i32 = arith.constant 0 : i32
    %c0_i32_0 = arith.constant 0 : i32
    %c0_i32_1 = arith.constant 0 : i32
    return %c0_i32, %c0_i32_0 : i32, i32
  }
  func.func @transform_11(%arg0: i32, %arg1: i32) -> (i32, i32, i32) {
    %c0_i32 = arith.constant 0 : i32
    %c0_i32_0 = arith.constant 0 : i32
    return %arg0, %arg1, %c0_i32 : i32, i32, i32
  }
}

module attributes {stable_mosaic.version = 11 : i64} {
  func.func @_ffn_ln_kernel(%arg0: i32, %arg1: i32, %arg2: memref<16x32xf32, #tpu.memory_space<vmem>>, %arg3: memref<32x64xbf16, #tpu.memory_space<vmem>>, %arg4: memref<1x64xf32, #tpu.memory_space<vmem>>, %arg5: memref<64x32xbf16, #tpu.memory_space<vmem>>, %arg6: memref<1x32xf32, #tpu.memory_space<vmem>>, %arg7: memref<1x32xf32, #tpu.memory_space<vmem>>, %arg8: memref<1x32xf32, #tpu.memory_space<vmem>>, %arg9: memref<16x32xf32, #tpu.memory_space<vmem>>, %arg10: memref<16x32xf32, #tpu.memory_space<vmem>>) attributes {dimension_semantics = [#tpu.dimension_semantics<parallel>, #tpu.dimension_semantics<arbitrary>], iteration_bounds = array<i64: 1, 1>, scalar_prefetch = 0 : i64, scratch_operands = 1 : i64, tpu.core_type = #tpu.core_type<tc>, window_params = [{transform_indices = @transform_0, window_bounds = array<i64: 16, 32>}, {transform_indices = @transform_1, window_bounds = array<i64: 32, 64>}, {transform_indices = @transform_2, window_bounds = array<i64: 1, 64>}, {transform_indices = @transform_3, window_bounds = array<i64: 64, 32>}, {pipeline_mode = #tpu.pipeline_mode<synchronous>, transform_indices = @transform_4, window_bounds = array<i64: 1, 32>}, {pipeline_mode = #tpu.pipeline_mode<synchronous>, transform_indices = @transform_5, window_bounds = array<i64: 1, 32>}, {pipeline_mode = #tpu.pipeline_mode<synchronous>, transform_indices = @transform_6, window_bounds = array<i64: 1, 32>}, {transform_indices = @transform_7, window_bounds = array<i64: 16, 32>}]} {
    %c0_i32 = arith.constant 0 : i32
    %0 = arith.cmpi eq, %arg1, %c0_i32 : i32
    %1 = arith.extui %0 : i1 to i32
    %c0_i32_0 = arith.constant 0 : i32
    %2 = arith.cmpi ne, %1, %c0_i32_0 : i32
    scf.if %2 {
      %cst_16 = arith.constant 0.000000e+00 : f32
      %21 = vector.broadcast %cst_16 : f32 to vector<16x32xf32>
      %c0_17 = arith.constant 0 : index
      %c0_18 = arith.constant 0 : index
      %22 = vector.load %arg10[%c0_17, %c0_18] : memref<16x32xf32, #tpu.memory_space<vmem>>, vector<16x32xf32>
      tpu.vector_store %arg10[%c0_17, %c0_18], %21 {strides = array<i32>} : memref<16x32xf32, #tpu.memory_space<vmem>>, vector<16x32xf32>,
    } else {
    }
    %c0 = arith.constant 0 : index
    %c0_1 = arith.constant 0 : index
    %3 = vector.load %arg2[%c0, %c0_1] : memref<16x32xf32, #tpu.memory_space<vmem>>, vector<16x32xf32>
    %4 = arith.truncf %3 : vector<16x32xf32> to vector<16x32xbf16>
    %c0_2 = arith.constant 0 : index
    %c0_3 = arith.constant 0 : index
    %5 = vector.load %arg3[%c0_2, %c0_3] : memref<32x64xbf16, #tpu.memory_space<vmem>>, vector<32x64xbf16>
    %cst = arith.constant dense<0.000000e+00> : vector<16x64xf32>
    %6 = tpu.matmul %4, %5, %cst {dimension_numbers = #tpu.dot_dimension_numbers<[1], [0], [0], [1], [0, 0, 1, 1], [], []>} : vector<16x32xbf16>, vector<32x64xbf16>, vector<16x64xf32> -> vector<16x64xf32>
    %c0_4 = arith.constant 0 : index
    %c0_5 = arith.constant 0 : index
    %7 = vector.load %arg4[%c0_4, %c0_5] : memref<1x64xf32, #tpu.memory_space<vmem>>, vector<1x64xf32>
    %8 = vector.broadcast %7 : vector<1x64xf32> to vector<16x64xf32>
    %9 = arith.addf %6, %8 : vector<16x64xf32>
    %cst_6 = arith.constant 0.000000e+00 : f32
    %10 = vector.broadcast %cst_6 : f32 to vector<16x64xf32>
    %11 = arith.maximumf %9, %10 : vector<16x64xf32>
    %c0_7 = arith.constant 0 : index
    %c0_8 = arith.constant 0 : index
    %12 = vector.load %arg10[%c0_7, %c0_8] : memref<16x32xf32, #tpu.memory_space<vmem>>, vector<16x32xf32>
    %13 = arith.truncf %11 : vector<16x64xf32> to vector<16x64xbf16>
    %c0_9 = arith.constant 0 : index
    %c0_10 = arith.constant 0 : index
    %14 = vector.load %arg5[%c0_9, %c0_10] : memref<64x32xbf16, #tpu.memory_space<vmem>>, vector<64x32xbf16>
    %cst_11 = arith.constant dense<0.000000e+00> : vector<16x32xf32>
    %15 = tpu.matmul %13, %14, %cst_11 {dimension_numbers = #tpu.dot_dimension_numbers<[1], [0], [0], [1], [0, 0, 1, 1], [], []>} : vector<16x64xbf16>, vector<64x32xbf16>, vector<16x32xf32> -> vector<16x32xf32>
    %16 = arith.addf %12, %15 : vector<16x32xf32>
    %c0_12 = arith.constant 0 : index
    %c0_13 = arith.constant 0 : index
    %17 = vector.load %arg10[%c0_12, %c0_13] : memref<16x32xf32, #tpu.memory_space<vmem>>, vector<16x32xf32>
    tpu.vector_store %arg10[%c0_12, %c0_13], %16 {strides = array<i32>} : memref<16x32xf32, #tpu.memory_space<vmem>>, vector<16x32xf32>,
    %c0_i32_14 = arith.constant 0 : i32
    %18 = arith.cmpi eq, %arg1, %c0_i32_14 : i32
    %19 = arith.extui %18 : i1 to i32
    %c0_i32_15 = arith.constant 0 : i32
    %20 = arith.cmpi ne, %19, %c0_i32_15 : i32
    scf.if %20 {
      %c0_16 = arith.constant 0 : index
      %c0_17 = arith.constant 0 : index
      %21 = vector.load %arg10[%c0_16, %c0_17] : memref<16x32xf32, #tpu.memory_space<vmem>>, vector<16x32xf32>
      %c0_18 = arith.constant 0 : index
      %c0_19 = arith.constant 0 : index
      %22 = vector.load %arg6[%c0_18, %c0_19] : memref<1x32xf32, #tpu.memory_space<vmem>>, vector<1x32xf32>
      %23 = vector.broadcast %22 : vector<1x32xf32> to vector<16x32xf32>
      %24 = arith.addf %21, %23 : vector<16x32xf32>
      %25 = arith.addf %3, %24 : vector<16x32xf32>
      %c0_20 = arith.constant 0 : index
      %c0_21 = arith.constant 0 : index
      %26 = vector.load %arg7[%c0_20, %c0_21] : memref<1x32xf32, #tpu.memory_space<vmem>>, vector<1x32xf32>
      %c0_22 = arith.constant 0 : index
      %c0_23 = arith.constant 0 : index
      %27 = vector.load %arg8[%c0_22, %c0_23] : memref<1x32xf32, #tpu.memory_space<vmem>>, vector<1x32xf32>
      %cst_24 = arith.constant dense<0.000000e+00> : vector<16xf32>
      %28 = vector.multi_reduction <add>, %25, %cst_24 [1] : vector<16x32xf32> to vector<16xf32>
      %29 = vector.shape_cast %28 : vector<16xf32> to vector<16x1xf32>
      %cst_25 = arith.constant 3.200000e+01 : f32
      %30 = vector.broadcast %cst_25 : f32 to vector<16x1xf32>
      %31 = arith.divf %29, %30 : vector<16x1xf32>
      %32 = vector.broadcast %31 : vector<16x1xf32> to vector<16x32xf32>
      %33 = arith.subf %25, %32 : vector<16x32xf32>
      %34 = arith.mulf %33, %33 : vector<16x32xf32>
      %cst_26 = arith.constant dense<0.000000e+00> : vector<16xf32>
      %35 = vector.multi_reduction <add>, %34, %cst_26 [1] : vector<16x32xf32> to vector<16xf32>
      %36 = vector.shape_cast %35 : vector<16xf32> to vector<16x1xf32>
      %cst_27 = arith.constant 3.200000e+01 : f32
      %37 = vector.broadcast %cst_27 : f32 to vector<16x1xf32>
      %38 = arith.divf %36, %37 : vector<16x1xf32>
      %39 = vector.broadcast %31 : vector<16x1xf32> to vector<16x32xf32>
      %40 = arith.subf %25, %39 : vector<16x32xf32>
      %cst_28 = arith.constant 9.99999974E-6 : f32
      %41 = vector.broadcast %cst_28 : f32 to vector<16x1xf32>
      %42 = arith.addf %38, %41 : vector<16x1xf32>
      %43 = math.rsqrt %42 : vector<16x1xf32>
      %44 = vector.broadcast %43 : vector<16x1xf32> to vector<16x32xf32>
      %45 = arith.mulf %40, %44 : vector<16x32xf32>
      %46 = vector.broadcast %26 : vector<1x32xf32> to vector<16x32xf32>
      %47 = arith.mulf %45, %46 : vector<16x32xf32>
      %48 = vector.broadcast %27 : vector<1x32xf32> to vector<16x32xf32>
      %49 = arith.addf %47, %48 : vector<16x32xf32>
      %c0_29 = arith.constant 0 : index
      %c0_30 = arith.constant 0 : index
      %50 = vector.load %arg9[%c0_29, %c0_30] : memref<16x32xf32, #tpu.memory_space<vmem>>, vector<16x32xf32>
      tpu.vector_store %arg9[%c0_29, %c0_30], %49 {strides = array<i32>} : memref<16x32xf32, #tpu.memory_space<vmem>>, vector<16x32xf32>,
    } else {
    }
    return
  }
  func.func @transform_0(%arg0: i32, %arg1: i32) -> (i32, i32) {
    %c0_i32 = arith.constant 0 : i32
    %c0_i32_0 = arith.constant 0 : i32
    return %arg0, %c0_i32 : i32, i32
  }
  func.func @transform_1(%arg0: i32, %arg1: i32) -> (i32, i32) {
    %c0_i32 = arith.constant 0 : i32
    %c0_i32_0 = arith.constant 0 : i32
    return %c0_i32, %arg1 : i32, i32
  }
  func.func @transform_2(%arg0: i32, %arg1: i32) -> (i32, i32) {
    %c0_i32 = arith.constant 0 : i32
    %c0_i32_0 = arith.constant 0 : i32
    return %c0_i32, %arg1 : i32, i32
  }
  func.func @transform_3(%arg0: i32, %arg1: i32) -> (i32, i32) {
    %c0_i32 = arith.constant 0 : i32
    %c0_i32_0 = arith.constant 0 : i32
    return %arg1, %c0_i32 : i32, i32
  }
  func.func @transform_4(%arg0: i32, %arg1: i32) -> (i32, i32) {
    %c0_i32 = arith.constant 0 : i32
    %c0_i32_0 = arith.constant 0 : i32
    %c0_i32_1 = arith.constant 0 : i32
    return %c0_i32, %c0_i32_0 : i32, i32
  }
  func.func @transform_5(%arg0: i32, %arg1: i32) -> (i32, i32) {
    %c0_i32 = arith.constant 0 : i32
    %c0_i32_0 = arith.constant 0 : i32
    %c0_i32_1 = arith.constant 0 : i32
    return %c0_i32, %c0_i32_0 : i32, i32
  }
  func.func @transform_6(%arg0: i32, %arg1: i32) -> (i32, i32) {
    %c0_i32 = arith.constant 0 : i32
    %c0_i32_0 = arith.constant 0 : i32
    %c0_i32_1 = arith.constant 0 : i32
    return %c0_i32, %c0_i32_0 : i32, i32
  }
  func.func @transform_7(%arg0: i32, %arg1: i32) -> (i32, i32) {
    %c0_i32 = arith.constant 0 : i32
    %c0_i32_0 = arith.constant 0 : i32
    return %arg0, %c0_i32 : i32, i32
  }
}

module attributes {stable_mosaic.version = 11 : i64} {
  func.func @_ffn_ln_kernel(%arg0: i32, %arg1: i32, %arg2: memref<16x32xf32, #tpu.memory_space<vmem>>, %arg3: memref<32x64xbf16, #tpu.memory_space<vmem>>, %arg4: memref<1x64xf32, #tpu.memory_space<vmem>>, %arg5: memref<64x32xbf16, #tpu.memory_space<vmem>>, %arg6: memref<1x32xf32, #tpu.memory_space<vmem>>, %arg7: memref<1x32xf32, #tpu.memory_space<vmem>>, %arg8: memref<1x32xf32, #tpu.memory_space<vmem>>, %arg9: memref<16x32xf32, #tpu.memory_space<vmem>>, %arg10: memref<16x32xf32, #tpu.memory_space<vmem>>) attributes {dimension_semantics = [#tpu.dimension_semantics<parallel>, #tpu.dimension_semantics<arbitrary>], iteration_bounds = array<i64: 1, 1>, scalar_prefetch = 0 : i64, scratch_operands = 1 : i64, tpu.core_type = #tpu.core_type<tc>, window_params = [{transform_indices = @transform_0, window_bounds = array<i64: 16, 32>}, {transform_indices = @transform_1, window_bounds = array<i64: 32, 64>}, {transform_indices = @transform_2, window_bounds = array<i64: 1, 64>}, {transform_indices = @transform_3, window_bounds = array<i64: 64, 32>}, {pipeline_mode = #tpu.pipeline_mode<synchronous>, transform_indices = @transform_4, window_bounds = array<i64: 1, 32>}, {pipeline_mode = #tpu.pipeline_mode<synchronous>, transform_indices = @transform_5, window_bounds = array<i64: 1, 32>}, {pipeline_mode = #tpu.pipeline_mode<synchronous>, transform_indices = @transform_6, window_bounds = array<i64: 1, 32>}, {transform_indices = @transform_7, window_bounds = array<i64: 16, 32>}]} {
    %c0_i32 = arith.constant 0 : i32
    %0 = arith.cmpi eq, %arg1, %c0_i32 : i32
    %1 = arith.extui %0 : i1 to i32
    %c0_i32_0 = arith.constant 0 : i32
    %2 = arith.cmpi ne, %1, %c0_i32_0 : i32
    scf.if %2 {
      %cst_16 = arith.constant 0.000000e+00 : f32
      %21 = vector.broadcast %cst_16 : f32 to vector<16x32xf32>
      %c0_17 = arith.constant 0 : index
      %c0_18 = arith.constant 0 : index
      %22 = vector.load %arg10[%c0_17, %c0_18] : memref<16x32xf32, #tpu.memory_space<vmem>>, vector<16x32xf32>
      tpu.vector_store %arg10[%c0_17, %c0_18], %21 {strides = array<i32>} : memref<16x32xf32, #tpu.memory_space<vmem>>, vector<16x32xf32>,
    } else {
    }
    %c0 = arith.constant 0 : index
    %c0_1 = arith.constant 0 : index
    %3 = vector.load %arg2[%c0, %c0_1] : memref<16x32xf32, #tpu.memory_space<vmem>>, vector<16x32xf32>
    %4 = arith.truncf %3 : vector<16x32xf32> to vector<16x32xbf16>
    %c0_2 = arith.constant 0 : index
    %c0_3 = arith.constant 0 : index
    %5 = vector.load %arg3[%c0_2, %c0_3] : memref<32x64xbf16, #tpu.memory_space<vmem>>, vector<32x64xbf16>
    %cst = arith.constant dense<0.000000e+00> : vector<16x64xf32>
    %6 = tpu.matmul %4, %5, %cst {dimension_numbers = #tpu.dot_dimension_numbers<[1], [0], [0], [1], [0, 0, 1, 1], [], []>} : vector<16x32xbf16>, vector<32x64xbf16>, vector<16x64xf32> -> vector<16x64xf32>
    %c0_4 = arith.constant 0 : index
    %c0_5 = arith.constant 0 : index
    %7 = vector.load %arg4[%c0_4, %c0_5] : memref<1x64xf32, #tpu.memory_space<vmem>>, vector<1x64xf32>
    %8 = vector.broadcast %7 : vector<1x64xf32> to vector<16x64xf32>
    %9 = arith.addf %6, %8 : vector<16x64xf32>
    %cst_6 = arith.constant 0.000000e+00 : f32
    %10 = vector.broadcast %cst_6 : f32 to vector<16x64xf32>
    %11 = arith.maximumf %9, %10 : vector<16x64xf32>
    %c0_7 = arith.constant 0 : index
    %c0_8 = arith.constant 0 : index
    %12 = vector.load %arg10[%c0_7, %c0_8] : memref<16x32xf32, #tpu.memory_space<vmem>>, vector<16x32xf32>
    %13 = arith.truncf %11 : vector<16x64xf32> to vector<16x64xbf16>
    %c0_9 = arith.constant 0 : index
    %c0_10 = arith.constant 0 : index
    %14 = vector.load %arg5[%c0_9, %c0_10] : memref<64x32xbf16, #tpu.memory_space<vmem>>, vector<64x32xbf16>
    %cst_11 = arith.constant dense<0.000000e+00> : vector<16x32xf32>
    %15 = tpu.matmul %13, %14, %cst_11 {dimension_numbers = #tpu.dot_dimension_numbers<[1], [0], [0], [1], [0, 0, 1, 1], [], []>} : vector<16x64xbf16>, vector<64x32xbf16>, vector<16x32xf32> -> vector<16x32xf32>
    %16 = arith.addf %12, %15 : vector<16x32xf32>
    %c0_12 = arith.constant 0 : index
    %c0_13 = arith.constant 0 : index
    %17 = vector.load %arg10[%c0_12, %c0_13] : memref<16x32xf32, #tpu.memory_space<vmem>>, vector<16x32xf32>
    tpu.vector_store %arg10[%c0_12, %c0_13], %16 {strides = array<i32>} : memref<16x32xf32, #tpu.memory_space<vmem>>, vector<16x32xf32>,
    %c0_i32_14 = arith.constant 0 : i32
    %18 = arith.cmpi eq, %arg1, %c0_i32_14 : i32
    %19 = arith.extui %18 : i1 to i32
    %c0_i32_15 = arith.constant 0 : i32
    %20 = arith.cmpi ne, %19, %c0_i32_15 : i32
    scf.if %20 {
      %c0_16 = arith.constant 0 : index
      %c0_17 = arith.constant 0 : index
      %21 = vector.load %arg10[%c0_16, %c0_17] : memref<16x32xf32, #tpu.memory_space<vmem>>, vector<16x32xf32>
      %c0_18 = arith.constant 0 : index
      %c0_19 = arith.constant 0 : index
      %22 = vector.load %arg6[%c0_18, %c0_19] : memref<1x32xf32, #tpu.memory_space<vmem>>, vector<1x32xf32>
      %23 = vector.broadcast %22 : vector<1x32xf32> to vector<16x32xf32>
      %24 = arith.addf %21, %23 : vector<16x32xf32>
      %25 = arith.addf %3, %24 : vector<16x32xf32>
      %c0_20 = arith.constant 0 : index
      %c0_21 = arith.constant 0 : index
      %26 = vector.load %arg7[%c0_20, %c0_21] : memref<1x32xf32, #tpu.memory_space<vmem>>, vector<1x32xf32>
      %c0_22 = arith.constant 0 : index
      %c0_23 = arith.constant 0 : index
      %27 = vector.load %arg8[%c0_22, %c0_23] : memref<1x32xf32, #tpu.memory_space<vmem>>, vector<1x32xf32>
      %cst_24 = arith.constant dense<0.000000e+00> : vector<16xf32>
      %28 = vector.multi_reduction <add>, %25, %cst_24 [1] : vector<16x32xf32> to vector<16xf32>
      %29 = vector.shape_cast %28 : vector<16xf32> to vector<16x1xf32>
      %cst_25 = arith.constant 3.200000e+01 : f32
      %30 = vector.broadcast %cst_25 : f32 to vector<16x1xf32>
      %31 = arith.divf %29, %30 : vector<16x1xf32>
      %32 = vector.broadcast %31 : vector<16x1xf32> to vector<16x32xf32>
      %33 = arith.subf %25, %32 : vector<16x32xf32>
      %34 = arith.mulf %33, %33 : vector<16x32xf32>
      %cst_26 = arith.constant dense<0.000000e+00> : vector<16xf32>
      %35 = vector.multi_reduction <add>, %34, %cst_26 [1] : vector<16x32xf32> to vector<16xf32>
      %36 = vector.shape_cast %35 : vector<16xf32> to vector<16x1xf32>
      %cst_27 = arith.constant 3.200000e+01 : f32
      %37 = vector.broadcast %cst_27 : f32 to vector<16x1xf32>
      %38 = arith.divf %36, %37 : vector<16x1xf32>
      %39 = vector.broadcast %31 : vector<16x1xf32> to vector<16x32xf32>
      %40 = arith.subf %25, %39 : vector<16x32xf32>
      %cst_28 = arith.constant 9.99999974E-6 : f32
      %41 = vector.broadcast %cst_28 : f32 to vector<16x1xf32>
      %42 = arith.addf %38, %41 : vector<16x1xf32>
      %43 = math.rsqrt %42 : vector<16x1xf32>
      %44 = vector.broadcast %43 : vector<16x1xf32> to vector<16x32xf32>
      %45 = arith.mulf %40, %44 : vector<16x32xf32>
      %46 = vector.broadcast %26 : vector<1x32xf32> to vector<16x32xf32>
      %47 = arith.mulf %45, %46 : vector<16x32xf32>
      %48 = vector.broadcast %27 : vector<1x32xf32> to vector<16x32xf32>
      %49 = arith.addf %47, %48 : vector<16x32xf32>
      %c0_29 = arith.constant 0 : index
      %c0_30 = arith.constant 0 : index
      %50 = vector.load %arg9[%c0_29, %c0_30] : memref<16x32xf32, #tpu.memory_space<vmem>>, vector<16x32xf32>
      tpu.vector_store %arg9[%c0_29, %c0_30], %49 {strides = array<i32>} : memref<16x32xf32, #tpu.memory_space<vmem>>, vector<16x32xf32>,
    } else {
    }
    return
  }
  func.func @transform_0(%arg0: i32, %arg1: i32) -> (i32, i32) {
    %c0_i32 = arith.constant 0 : i32
    %c0_i32_0 = arith.constant 0 : i32
    return %arg0, %c0_i32 : i32, i32
  }
  func.func @transform_1(%arg0: i32, %arg1: i32) -> (i32, i32) {
    %c0_i32 = arith.constant 0 : i32
    %c0_i32_0 = arith.constant 0 : i32
    return %c0_i32, %arg1 : i32, i32
  }
  func.func @transform_2(%arg0: i32, %arg1: i32) -> (i32, i32) {
    %c0_i32 = arith.constant 0 : i32
    %c0_i32_0 = arith.constant 0 : i32
    return %c0_i32, %arg1 : i32, i32
  }
  func.func @transform_3(%arg0: i32, %arg1: i32) -> (i32, i32) {
    %c0_i32 = arith.constant 0 : i32
    %c0_i32_0 = arith.constant 0 : i32
    return %arg1, %c0_i32 : i32, i32
  }
  func.func @transform_4(%arg0: i32, %arg1: i32) -> (i32, i32) {
    %c0_i32 = arith.constant 0 : i32
    %c0_i32_0 = arith.constant 0 : i32
    %c0_i32_1 = arith.constant 0 : i32
    return %c0_i32, %c0_i32_0 : i32, i32
  }
  func.func @transform_5(%arg0: i32, %arg1: i32) -> (i32, i32) {
    %c0_i32 = arith.constant 0 : i32
    %c0_i32_0 = arith.constant 0 : i32
    %c0_i32_1 = arith.constant 0 : i32
    return %c0_i32, %c0_i32_0 : i32, i32
  }
  func.func @transform_6(%arg0: i32, %arg1: i32) -> (i32, i32) {
    %c0_i32 = arith.constant 0 : i32
    %c0_i32_0 = arith.constant 0 : i32
    %c0_i32_1 = arith.constant 0 : i32
    return %c0_i32, %c0_i32_0 : i32, i32
  }
  func.func @transform_7(%arg0: i32, %arg1: i32) -> (i32, i32) {
    %c0_i32 = arith.constant 0 : i32
    %c0_i32_0 = arith.constant 0 : i32
    return %arg0, %c0_i32 : i32, i32
  }
}

</mosaic_0001>

<llo_original>
// kernel: decoder_forward.7
$region0: #{decoder_forward.7}
  #allocation0 [shape = 'u32[]', space=smem, size = 0x4, offset = 0x4, fixed_abs, tag = 'smem constant byte address 0x4 - core index']
  #allocation1 [shape = 'u32[72,128]{1,0:T(1,128)}', space=vmem, size = 0x9000, scoped, tag = 'internal scratch']
  %s0 = inlined_call_operand.vmem [shape: f32[2,8,32], index: 0, kind: input, shape index: {}]
  %s1 = inlined_call_operand.vmem [shape: f32[8,32], index: 1, kind: input, shape index: {}]
  %s2 = inlined_call_operand.vmem [shape: f32[2,8,32], index: 2, kind: output, shape index: {}]
  %s3 = sld [smem:[#allocation0]]
  $region41: #{decoder_forward.7} parent=0
    _
  %s5 = ssub.s32 1, %s3
  %s6 = scalar_select 0, %s5, %s3
  loop: start=0, step=1, limit=4
  $region2: #{decoder_forward.7} parent=0 // loop_pre_header
    _
  $region3: #{decoder_forward.7} parent=0 // loop_header
    %s8 = sphi 0, %s12
    %p9 = scmp.ge.s32.totalorder %s8, 4
    %s15 = sphi 0, %s27
    %s16 = sphi 0, %s23
    %s17 = sphi 0, %s15
    %s18 = sphi 0, %s16
    %s19 = sphi 0, %s17
    %s20 = sphi 0, %s18
    %s32 = sphi 0, %s34
    %s35 = sphi 0, %s32
    %s36 = sphi 0, %s35
    %s52 = sphi 0, %s36
    %s58 = sphi 0, %s60
    %s61 = sphi 0, %s58
    %s62 = sphi 0, %s61
    %s78 = sphi 0, %s62
    %s86 = sphi 0, %s88
    %s89 = sphi 0, %s86
    %s90 = sphi 0, %s89
    %s106 = sphi 0, %s90
  $region4: #{decoder_forward.7} parent=0 // loop_header_branch
    %11 = sbr.rel (%p9) target = $region8
  $region5: #{decoder_forward.7} parent=0 // loop_body
    %s13 = ssub.s32 %s8, 1
    %s14 = ssub.s32 %s8, 2
    %s21 = sadd.s32 1, %s16
    %p22 = scmp.ge.s32.totalorder %s21, 1
    %s23 = scalar_select %p22, 0, %s21
    %s24 = sadd.s32 1, %s15
    %s25 = scalar_select %p22, %s24, %s15
    %p26 = scmp.ge.s32.totalorder %s25, 2
    %s27 = scalar_select %p26, 0, %s25
    %s28 = ssub.s32 %s15, %s27
    %s29 = ssub.s32 %s16, %s23
    %s30 = sor.u32 %s28, %s29
    %p31 = scmp.eq.s32.totalorder %s30, 0
    %s33 = sadd.s32 %s32, 1
    %s34 = scalar_select %p31, %s32, %s33
    %p37 = pneg %p31
    %p38 = scmp.eq.s32.totalorder %s8, 1
    %p39 = por %p37, %p38
    %p40 = scmp.ne.s32.totalorder %s32, %s35
    %p41 = scmp.eq.s32.totalorder %s8, 0
    %p42 = por %p40, %p41
    %p43 = scmp.ne.s32.totalorder %s32, %s35
    %p44 = scmp.eq.s32.totalorder %s13, 1
    %p45 = por %p43, %p44
    %p46 = scmp.ne.s32.totalorder %s35, %s36
    %p47 = scmp.eq.s32.totalorder %s13, 0
    %p48 = por %p46, %p47
    %p49 = scmp.ne.s32.totalorder %s35, %s36
    %p50 = scmp.eq.s32.totalorder %s14, 1
    %p51 = por %p49, %p50
    %p53 = scmp.ne.s32.totalorder %s36, %s52
    %p54 = scmp.eq.s32.totalorder %s14, 0
    %p55 = por %p53, %p54
    %s56 = ssub.s32 %s16, %s23
    %p57 = scmp.eq.s32.totalorder %s56, 0
    %s59 = sadd.s32 %s58, 1
    %s60 = scalar_select %p57, %s58, %s59
    %p63 = pneg %p57
    %p64 = scmp.eq.s32.totalorder %s8, 1
    %p65 = por %p63, %p64
    %p66 = scmp.ne.s32.totalorder %s58, %s61
    %p67 = scmp.eq.s32.totalorder %s8, 0
    %p68 = por %p66, %p67
    %p69 = scmp.ne.s32.totalorder %s58, %s61
    %p70 = scmp.eq.s32.totalorder %s13, 1
    %p71 = por %p69, %p70
    %p72 = scmp.ne.s32.totalorder %s61, %s62
    %p73 = scmp.eq.s32.totalorder %s13, 0
    %p74 = por %p72, %p73
    %p75 = scmp.ne.s32.totalorder %s61, %s62
    %p76 = scmp.eq.s32.totalorder %s14, 1
    %p77 = por %p75, %p76
    %p79 = scmp.ne.s32.totalorder %s62, %s78
    %p80 = scmp.eq.s32.totalorder %s14, 0
    %p81 = por %p79, %p80
    %s82 = ssub.s32 %s15, %s27
    %s83 = ssub.s32 %s16, %s23
    %s84 = sor.u32 %s82, %s83
    %p85 = scmp.eq.s32.totalorder %s84, 0
    %s87 = sadd.s32 %s86, 1
    %s88 = scalar_select %p85, %s86, %s87
    %p91 = pneg %p85
    %p92 = scmp.eq.s32.totalorder %s8, 1
    %p93 = por %p91, %p92
    %p94 = scmp.ne.s32.totalorder %s86, %s89
    %p95 = scmp.eq.s32.totalorder %s8, 0
    %p96 = por %p94, %p95
    %p97 = scmp.ne.s32.totalorder %s86, %s89
    %p98 = scmp.eq.s32.totalorder %s13, 1
    %p99 = por %p97, %p98
    %p100 = scmp.ne.s32.totalorder %s89, %s90
    %p101 = scmp.eq.s32.totalorder %s13, 0
    %p102 = por %p100, %p101
    %p103 = scmp.ne.s32.totalorder %s89, %s90
    %p104 = scmp.eq.s32.totalorder %s14, 1
    %p105 = por %p103, %p104
    %p107 = scmp.ne.s32.totalorder %s90, %s106
    %p108 = scmp.eq.s32.totalorder %s14, 0
    %p109 = por %p107, %p108
    %p110 = scmp.le.s32.totalorder 1, %s8
    %p111 = scmp.lt.s32.totalorder %s8, 3
    %p112 = pnand %p110, %p111
    %p113 = pneg %p112
    // Predicated region
    $region9: #{decoder_forward.7} parent=5 // pred_check
      _
    $region10: #{decoder_forward.7} parent=5 // pred_check_branch
      %115 = sbr.rel (%p112) target = $region12
    $region11: #{decoder_forward.7} parent=5 // pred_region
      %s116 = ssub.s32 %s8, 1
      // Predicated region
      $region13: #{decoder_forward.7} parent=11 // pred_check
        %p117 = pneg %p74
      $region14: #{decoder_forward.7} parent=11 // pred_check_branch
        %119 = sbr.rel (%p117) target = $region16
      $region15: #{decoder_forward.7} parent=11 // pred_region
        %p120 = scmp.lt.s32.totalorder %s18, 0
        %s121 = scalar_select %p120, %s18, 0
        %s122 = smul.addr %s121, 8
        %s123 = scalar_lea.vmem %s1, %s122
      $region16: #{decoder_forward.7} parent=11 // pred_fallthru
        _
    $region12: #{decoder_forward.7} parent=5 // pred_fallthru
      _
    %p124 = scmp.lt.s32.totalorder %s8, 2
    // Predicated region
    $region17: #{decoder_forward.7} parent=5 // pred_check
      %p125 = pneg %p124
    $region18: #{decoder_forward.7} parent=5 // pred_check_branch
      %127 = sbr.rel (%p125) target = $region20
    $region19: #{decoder_forward.7} parent=5 // pred_region
      // Predicated region
      $region21: #{decoder_forward.7} parent=19 // pred_check
        %p128 = pneg %p42
      $region22: #{decoder_forward.7} parent=19 // pred_check_branch
        %130 = sbr.rel (%p128) target = $region24
      $region23: #{decoder_forward.7} parent=19 // pred_region
        %p131 = scmp.lt.s32.totalorder %s15, 1
        %s132 = scalar_select %p131, %s15, 1
        %p133 = scmp.lt.s32.totalorder %s16, 0
        %s134 = scalar_select %p133, %s16, 0
        %s135 = sadd.s32 %s134, %s132
        %s136 = smul.addr %s135, 8
        %s137 = scalar_lea.vmem %s0, %s136
      $region24: #{decoder_forward.7} parent=19 // pred_fallthru
        _
    $region20: #{decoder_forward.7} parent=5 // pred_fallthru
      _
    %p138 = scmp.le.s32.totalorder 1, %s8
    %p139 = scmp.lt.s32.totalorder %s8, 3
    %p140 = pnand %p138, %p139
    %p141 = pneg %p140
    // Predicated region
    $region25: #{decoder_forward.7} parent=5 // pred_check
      _
    $region26: #{decoder_forward.7} parent=5 // pred_check_branch
      %143 = sbr.rel (%p140) target = $region28
    $region27: #{decoder_forward.7} parent=5 // pred_region
      %s144 = ssub.s32 %s8, 1
      %p145 = scmp.lt.s32.totalorder %s17, 1
      %s146 = scalar_select %p145, %s17, 1
      %p147 = scmp.lt.s32.totalorder %s18, 0
      %s148 = scalar_select %p147, %s18, 0
      %s149 = sadd.s32 %s148, %s146
      %s150 = smul.addr %s149, 8
      %s151 = scalar_lea.vmem %s0, %s150
      %p152 = pneg %p48
      %p153 = pneg %p45
      %p154 = scmp.lt.s32.totalorder %s18, 0
      %s155 = scalar_select %p154, %s18, 0
      %s156 = smul.addr %s155, 8
      %s157 = scalar_lea.vmem %s1, %s156
      %p158 = pneg %p74
      %p159 = pneg %p71
      %p160 = pneg %p102
      %p161 = pneg %p99
      %p162 = scmp.lt.s32.totalorder %s17, 1
      %s163 = scalar_select %p162, %s17, 1
      %p164 = scmp.lt.s32.totalorder %s18, 0
      %s165 = scalar_select %p164, %s18, 0
      %s166 = sadd.s32 %s165, %s163
      %s167 = smul.addr %s166, 8
      %s168 = scalar_lea.vmem %s2, %s167
      %p169 = scmp.lt.s32.totalorder %s17, 1
      %s170 = scalar_select %p169, %s17, 1
      %p171 = scmp.lt.s32.totalorder %s18, 0
      %s172 = scalar_select %p171, %s18, 0
      %s173 = sadd.s32 %s172, %s170
      %s174 = smul.addr %s173, 8
      %s175 = scalar_lea.vmem %s0, %s174
      %p176 = scmp.lt.s32.totalorder %s18, 0
      %s177 = scalar_select %p176, %s18, 0
      %s178 = smul.addr %s177, 8
      %s179 = scalar_lea.vmem %s1, %s178
      %p180 = scmp.lt.s32.totalorder %s17, 1
      %s181 = scalar_select %p180, %s17, 1
      %p182 = scmp.lt.s32.totalorder %s18, 0
      %s183 = scalar_select %p182, %s18, 0
      %s184 = sadd.s32 %s183, %s181
      %s185 = smul.addr %s184, 8
      %s186 = scalar_lea.vmem %s2, %s185
      %v187 = vld [vmem:[%s175] sm:$0xff]
      %v188 = vmul.f32 %v187, 5.656854
      %v189 = vld [vmem:[%s179] sm:$0xff]
      %v190 = vadd.f32 %v188, %v189
      %vm191 = vcmask 261120
      %192 = vst.msk [vmem:[%s186] sm:$0xff] %vm191, %v190
      %p193 = scmp.lt.s32.totalorder %s17, 1
      %s194 = scalar_select %p193, %s17, 1
      %p195 = scmp.lt.s32.totalorder %s18, 0
      %s196 = scalar_select %p195, %s18, 0
      %s197 = sadd.s32 %s196, %s194
      %s198 = smul.addr %s197, 8
      %s199 = scalar_lea.vmem %s2, %s198
      // Predicated region
      $region29: #{decoder_forward.7} parent=27 // pred_check
        %p200 = pneg %p99
      $region30: #{decoder_forward.7} parent=27 // pred_check_branch
        %202 = sbr.rel (%p200) target = $region32
      $region31: #{decoder_forward.7} parent=27 // pred_region
        _
      $region32: #{decoder_forward.7} parent=27 // pred_fallthru
        _
    $region28: #{decoder_forward.7} parent=5 // pred_fallthru
      _
    %p203 = scmp.le.s32.totalorder 2, %s8
    // Predicated region
    $region33: #{decoder_forward.7} parent=5 // pred_check
      %p204 = pneg %p203
    $region34: #{decoder_forward.7} parent=5 // pred_check_branch
      %206 = sbr.rel (%p204) target = $region36
    $region35: #{decoder_forward.7} parent=5 // pred_region
      %s207 = ssub.s32 %s8, 2
      // Predicated region
      $region37: #{decoder_forward.7} parent=35 // pred_check
        %p208 = pneg %p105
      $region38: #{decoder_forward.7} parent=35 // pred_check_branch
        %210 = sbr.rel (%p208) target = $region40
      $region39: #{decoder_forward.7} parent=35 // pred_region
        %p211 = scmp.lt.s32.totalorder %s19, 1
        %s212 = scalar_select %p211, %s19, 1
        %p213 = scmp.lt.s32.totalorder %s20, 0
        %s214 = scalar_select %p213, %s20, 0
        %s215 = sadd.s32 %s214, %s212
        %s216 = smul.addr %s215, 8
        %s217 = scalar_lea.vmem %s2, %s216
      $region40: #{decoder_forward.7} parent=35 // pred_fallthru
        _
    $region36: #{decoder_forward.7} parent=5 // pred_fallthru
      _
  $region6: #{decoder_forward.7} parent=0 // loop_footer
    %s12 = sadd.s32 1, %s8
  $region7: #{decoder_forward.7} parent=0 // loop_footer_branch
    %7 = sbr.rel target = $region3
  $region8: #{decoder_forward.7} parent=0 // loop_exit
    _

// kernel: decoder_forward.10
$region0: #{decoder_forward.10}
  #allocation0 [shape = 'u32[]', space=smem, size = 0x4, offset = 0x4, fixed_abs, tag = 'smem constant byte address 0x4 - core index']
  #allocation1 [shape = 'u32[72,128]{1,0:T(1,128)}', space=vmem, size = 0x9000, scoped, tag = 'internal scratch']
  #allocation2 [shape = 'f32[16,32]{1,0:T(8,128)}', space=vmem, size = 0x2000, scoped, tag = 'scratch operand']
  %s0 = inlined_call_operand.vmem [shape: f32[16,32], index: 0, kind: input, shape index: {}]
  %s1 = inlined_call_operand.vmem [shape: bf16[32,64], index: 1, kind: input, shape index: {}]
  %s2 = inlined_call_operand.vmem [shape: f32[1,64], index: 2, kind: input, shape index: {}]
  %s3 = inlined_call_operand.vmem [shape: bf16[64,32], index: 3, kind: input, shape index: {}]
  %s4 = inlined_call_operand.vmem [shape: f32[1,32], index: 4, kind: input, shape index: {}]
  %s5 = inlined_call_operand.vmem [shape: f32[1,32], index: 5, kind: input, shape index: {}]
  %s6 = inlined_call_operand.vmem [shape: f32[1,32], index: 6, kind: input, shape index: {}]
  %s7 = inlined_call_operand.vmem [shape: f32[16,32], index: 7, kind: output, shape index: {}]
  %s8 = sld [smem:[#allocation0]]
  $region46: #{decoder_forward.10} parent=0
    _
  %s10 = ssub.s32 1, %s8
  %s11 = scalar_select 0, %s10, %s8
  // Predicated region
  $region2: #{decoder_forward.10} parent=0 // pred_check
    _
  $region3: #{decoder_forward.10} parent=0 // pred_check_branch
    %13 = sbr.rel (0) target = $region5
  $region4: #{decoder_forward.10} parent=0 // pred_region
    _
  $region5: #{decoder_forward.10} parent=0 // pred_fallthru
    _
  // Predicated region
  $region6: #{decoder_forward.10} parent=0 // pred_check
    _
  $region7: #{decoder_forward.10} parent=0 // pred_check_branch
    %15 = sbr.rel (0) target = $region9
  $region8: #{decoder_forward.10} parent=0 // pred_region
    _
  $region9: #{decoder_forward.10} parent=0 // pred_fallthru
    _
  // Predicated region
  $region10: #{decoder_forward.10} parent=0 // pred_check
    _
  $region11: #{decoder_forward.10} parent=0 // pred_check_branch
    %17 = sbr.rel (0) target = $region13
  $region12: #{decoder_forward.10} parent=0 // pred_region
    _
  $region13: #{decoder_forward.10} parent=0 // pred_fallthru
    _
  // Predicated region
  $region14: #{decoder_forward.10} parent=0 // pred_check
    _
  $region15: #{decoder_forward.10} parent=0 // pred_check_branch
    %19 = sbr.rel (0) target = $region17
  $region16: #{decoder_forward.10} parent=0 // pred_region
    _
  $region17: #{decoder_forward.10} parent=0 // pred_fallthru
    _
  // Predicated region
  $region18: #{decoder_forward.10} parent=0 // pred_check
    _
  $region19: #{decoder_forward.10} parent=0 // pred_check_branch
    %21 = sbr.rel (0) target = $region21
  $region20: #{decoder_forward.10} parent=0 // pred_region
    _
  $region21: #{decoder_forward.10} parent=0 // pred_fallthru
    _
  // Predicated region
  $region22: #{decoder_forward.10} parent=0 // pred_check
    _
  $region23: #{decoder_forward.10} parent=0 // pred_check_branch
    %23 = sbr.rel (0) target = $region25
  $region24: #{decoder_forward.10} parent=0 // pred_region
    _
  $region25: #{decoder_forward.10} parent=0 // pred_fallthru
    _
  // Predicated region
  $region26: #{decoder_forward.10} parent=0 // pred_check
    _
  $region27: #{decoder_forward.10} parent=0 // pred_check_branch
    %25 = sbr.rel (0) target = $region29
  $region28: #{decoder_forward.10} parent=0 // pred_region
    _
  $region29: #{decoder_forward.10} parent=0 // pred_fallthru
    _
  %p27 = scmp.eq.s32.totalorder 0, 0
  // Predicated region
  $region30: #{decoder_forward.10} parent=0 // pred_check
    %p28 = pneg %p27
  $region31: #{decoder_forward.10} parent=0 // pred_check_branch
    %30 = sbr.rel (%p28) target = $region33
  $region32: #{decoder_forward.10} parent=0 // pred_region
    %vm31 = vcmask 261120
    %32 = vst.msk [vmem:[#allocation2] sm:$0xff] %vm31, 0.0
    %33 = vst.msk [vmem:[#allocation2 + $0x8] sm:$0xff] %vm31, 0.0
  $region33: #{decoder_forward.10} parent=0 // pred_fallthru
    _
  %v34 = vld [vmem:[%s0] sm:$0xff]
  %v35 = vld [vmem:[%s0 + $0x8] sm:$0xff]
  %v36 = vpack.c.bf16 %v35, %v34
  %v37 = vld [vmem:[%s1] sm:$0xf]
  %v38 = vld [vmem:[%s1 + $0x4] sm:$0xf]
  %v39 = vld [vmem:[%s1 + $0x8] sm:$0xf]
  %v40 = vld [vmem:[%s1 + $0xc] sm:$0xf]
  %v41 = vld [vmem:[%s2] sm:$0x1]
  %v43 = vperm.slane %v41, 0
  %v49 = vunpack.c.l.b16 %v37
  %v50 = vunpack.c.l.b16 %v38
  %v51 = vunpack.c.l.b16 %v39
  %v52 = vunpack.c.l.b16 %v40
  %v53 = vpack.c.b16 %v50, %v49
  %v54 = vpack.c.b16 %v52, %v51
  %vm57 = vcmask 261120
  %v59 = vsel %vm57, %v36, 0
  %61 = vmatpush.bf16.msra.mxu0 0
  %62 = vmatpush.bf16.msra.mxu0 0
  %63 = vmatpush.bf16.msra.mxu0 0
  %64 = vmatpush.bf16.msra.mxu0 0
  %65 = vmatpush.bf16.msra.mxu0 0
  %66 = vmatpush.bf16.msra.mxu0 0
  %67 = vmatpush.bf16.msra.mxu0 %v54
  %68 = vmatpush.bf16.msra.mxu0 %v53
  %69 = vmatmul.bf16.gmra.mxu0 %v59
  %v70 = vpop.f32.mrf.mxu0
  %v71 = vadd.f32 %v43, %v70
  %v72 = vpop.f32.mrf.mxu0
  %v73 = vadd.f32 %v43, %v72
  %74 = vdwg.mxu0
  %v75 = vmax.f32 %v71, 0.0
  %v76 = vmax.f32 %v73, 0.0
  %v77 = vld [vmem:[#allocation2] sm:$0xff]
  %v78 = vld [vmem:[#allocation2 + $0x8] sm:$0xff]
  %v79 = vpack.c.bf16 %v76, %v75
  %v80 = vld [vmem:[%s3] sm:$0xf]
  %v81 = vld [vmem:[%s3 + $0x4] sm:$0xf]
  %v82 = vld [vmem:[%s3 + $0x8] sm:$0xf]
  %v83 = vld [vmem:[%s3 + $0xc] sm:$0xf]
  %v84 = vld [vmem:[%s3 + $0x10] sm:$0xf]
  %v85 = vld [vmem:[%s3 + $0x14] sm:$0xf]
  %v86 = vld [vmem:[%s3 + $0x18] sm:$0xf]
  %v87 = vld [vmem:[%s3 + $0x1c] sm:$0xf]
  %v96 = vunpack.c.l.b16 %v80
  %v97 = vunpack.c.l.b16 %v81
  %v98 = vunpack.c.l.b16 %v82
  %v99 = vunpack.c.l.b16 %v83
  %v100 = vunpack.c.l.b16 %v84
  %v101 = vunpack.c.l.b16 %v85
  %v102 = vunpack.c.l.b16 %v86
  %v103 = vunpack.c.l.b16 %v87
  %v104 = vpack.c.b16 %v97, %v96
  %v105 = vpack.c.b16 %v99, %v98
  %v106 = vpack.c.b16 %v101, %v100
  %v107 = vpack.c.b16 %v103, %v102
  %vm112 = vcmask 523264
  %v114 = vsel %vm112, %v79, 0
  %116 = vmatpush.bf16.msra.mxu0 0
  %117 = vmatpush.bf16.msra.mxu0 0
  %118 = vmatpush.bf16.msra.mxu0 0
  %119 = vmatpush.bf16.msra.mxu0 0
  %120 = vmatpush.bf16.msra.mxu0 %v107
  %121 = vmatpush.bf16.msra.mxu0 %v106
  %122 = vmatpush.bf16.msra.mxu0 %v105
  %123 = vmatpush.bf16.msra.mxu0 %v104
  %124 = vmatmul.bf16.gmra.mxu0 %v114
  %v125 = vpop.f32.mrf.mxu0
  %v126 = vadd.f32 0.0, %v125
  %v127 = vpop.f32.mrf.mxu0
  %v128 = vadd.f32 0.0, %v127
  %129 = vdwg.mxu0
  %v130 = vadd.f32 %v77, %v126
  %v131 = vadd.f32 %v78, %v128
  %132 = vst.msk [vmem:[#allocation2] sm:$0xff] %vm57, %v130
  %133 = vst.msk [vmem:[#allocation2 + $0x8] sm:$0xff] %vm57, %v131
  // Predicated region
  $region34: #{decoder_forward.10} parent=0 // pred_check
    %p134 = pneg %p27
  $region35: #{decoder_forward.10} parent=0 // pred_check_branch
    %136 = sbr.rel (%p134) target = $region37
  $region36: #{decoder_forward.10} parent=0 // pred_region
    %v137 = vld [vmem:[#allocation2] sm:$0xff]
    %v138 = vld [vmem:[#allocation2 + $0x8] sm:$0xff]
    %v139 = vld [vmem:[%s4] sm:$0x1]
    %v141 = vperm.slane %v139, 0
    %v143 = vadd.f32 %v137, %v141
    %v144 = vadd.f32 %v138, %v141
    %v145 = vadd.f32 %v34, %v143
    %v146 = vadd.f32 %v35, %v144
    %v147 = vld [vmem:[%s5] sm:$0x1]
    %v148 = vld [vmem:[%s6] sm:$0x1]
    %v149 = vsel %vm57, %v145, 0.0
    %150 = vadd.xlane.f32.xlu0 %v149
    %v151 = vpop.xlane.xlu0 %150
    %v152 = vsel %vm57, %v146, 0.0
    %153 = vadd.xlane.f32.xlu0 %v152
    %v154 = vpop.xlane.xlu0 %153
    %v155 = vrcp.pop 32.0
    %v156 = vmul.f32 32.0, %v155
    %v157 = vsub.f32 1.0, %v156
    %v158 = vmul.f32 %v155, %v157
    %v159 = vadd.f32 %v155, %v158
    %vm160 = vweird.f32 %v155
    %v161 = vsel %vm160, %v155, %v159
    %v162 = vmul.f32 %v151, %v161
    %v163 = vmul.f32 %v154, %v161
    %v164 = vsub.f32 %v145, %v162
    %v165 = vsub.f32 %v146, %v163
    %v166 = vmul.f32 %v164, %v164
    %v167 = vmul.f32 %v165, %v165
    %v168 = vsel %vm57, %v166, 0.0
    %169 = vadd.xlane.f32.xlu0 %v168
    %v170 = vpop.xlane.xlu0 %169
    %v171 = vsel %vm57, %v167, 0.0
    %172 = vadd.xlane.f32.xlu0 %v171
    %v173 = vpop.xlane.xlu0 %172
    %v174 = vmul.f32 %v170, %v161
    %v175 = vmul.f32 %v173, %v161
    %v176 = vadd.f32 %v174, 1e-05
    %v177 = vadd.f32 %v175, 1e-05
    %v178 = vrsqrt.pop %v176
    %v179 = vmul.f32 %v178, %v176
    %v180 = vmul.f32 %v179, %v178
    %v181 = vmul.f32 0.5, %v180
    %v182 = vsub.f32 1.5, %v181
    %v183 = vmul.f32 %v178, %v182
    %vm184 = vweird.f32 %v176
    %vm185 = vweird.f32 %v178
    %vm186 = vmor %vm184, %vm185
    %v187 = vsel %vm186, %v178, %v183
    %v188 = vrsqrt.pop %v177
    %v189 = vmul.f32 %v188, %v177
    %v190 = vmul.f32 %v189, %v188
    %v191 = vmul.f32 0.5, %v190
    %v192 = vsub.f32 1.5, %v191
    %v193 = vmul.f32 %v188, %v192
    %vm194 = vweird.f32 %v177
    %vm195 = vweird.f32 %v188
    %vm196 = vmor %vm194, %vm195
    %v197 = vsel %vm196, %v188, %v193
    %v198 = vmul.f32 %v164, %v187
    %v199 = vmul.f32 %v165, %v197
    %v201 = vperm.slane %v147, 0
    %v203 = vmul.f32 %v198, %v201
    %v204 = vmul.f32 %v199, %v201
    %v206 = vperm.slane %v148, 0
    %v208 = vadd.f32 %v203, %v206
    %v209 = vadd.f32 %v204, %v206
    %210 = vst.msk [vmem:[%s7] sm:$0xff] %vm57, %v208
    %211 = vst.msk [vmem:[%s7 + $0x8] sm:$0xff] %vm57, %v209
  $region37: #{decoder_forward.10} parent=0 // pred_fallthru
    _
  // Predicated region
  $region38: #{decoder_forward.10} parent=0 // pred_check
    _
  $region39: #{decoder_forward.10} parent=0 // pred_check_branch
    %213 = sbr.rel (0) target = $region41
  $region40: #{decoder_forward.10} parent=0 // pred_region
    _
  $region41: #{decoder_forward.10} parent=0 // pred_fallthru
    _
  // Predicated region
  $region42: #{decoder_forward.10} parent=0 // pred_check
    _
  $region43: #{decoder_forward.10} parent=0 // pred_check_branch
    %215 = sbr.rel (0) target = $region45
  $region44: #{decoder_forward.10} parent=0 // pred_region
    _
  $region45: #{decoder_forward.10} parent=0 // pred_fallthru
    _

// kernel: decoder_forward.9
$region0: #{decoder_forward.9}
  #allocation0 [shape = 'u32[]', space=smem, size = 0x4, offset = 0x4, fixed_abs, tag = 'smem constant byte address 0x4 - core index']
  #allocation1 [shape = 'u32[72,128]{1,0:T(1,128)}', space=vmem, size = 0x9000, scoped, tag = 'internal scratch']
  %s0 = inlined_call_operand.vmem [shape: f32[2,8,32], index: 0, kind: input, shape index: {}]
  %s1 = inlined_call_operand.vmem [shape: f32[2,8,32], index: 1, kind: input, shape index: {}]
  %s2 = inlined_call_operand.vmem [shape: f32[8,8], index: 2, kind: input, shape index: {}]
  %s3 = inlined_call_operand.vmem [shape: bf16[4,32,8], index: 3, kind: input, shape index: {}]
  %s4 = inlined_call_operand.vmem [shape: f32[4,1,8], index: 4, kind: input, shape index: {}]
  %s5 = inlined_call_operand.vmem [shape: bf16[8,32,8], index: 5, kind: input, shape index: {}]
  %s6 = inlined_call_operand.vmem [shape: f32[8,1,8], index: 6, kind: input, shape index: {}]
  %s7 = inlined_call_operand.vmem [shape: bf16[4,8,32], index: 7, kind: input, shape index: {}]
  %s8 = inlined_call_operand.vmem [shape: f32[1,32], index: 8, kind: input, shape index: {}]
  %s9 = inlined_call_operand.vmem [shape: f32[1,32], index: 9, kind: input, shape index: {}]
  %s10 = inlined_call_operand.vmem [shape: f32[1,32], index: 10, kind: input, shape index: {}]
  %s11 = inlined_call_operand.vmem [shape: f32[2,8,32], index: 11, kind: output, shape index: {}]
  %s12 = sld [smem:[#allocation0]]
  $region77: #{decoder_forward.9} parent=0
    _
  %s14 = ssub.s32 1, %s12
  %s15 = scalar_select 0, %s14, %s12
  loop: start=0, step=1, limit=4
  $region2: #{decoder_forward.9} parent=0 // loop_pre_header
    _
  $region3: #{decoder_forward.9} parent=0 // loop_header
    %s17 = sphi 0, %s21
    %p18 = scmp.ge.s32.totalorder %s17, 4
    %s24 = sphi 0, %s36
    %s25 = sphi 0, %s32
    %s26 = sphi 0, %s24
    %s27 = sphi 0, %s25
    %s28 = sphi 0, %s26
    %s29 = sphi 0, %s27
    %s41 = sphi 0, %s43
    %s44 = sphi 0, %s41
    %s45 = sphi 0, %s44
    %s61 = sphi 0, %s45
    %s67 = sphi 0, %s69
    %s70 = sphi 0, %s67
    %s71 = sphi 0, %s70
    %s87 = sphi 0, %s71
    %s93 = sphi 0, %s95
    %s96 = sphi 0, %s93
    %s97 = sphi 0, %s96
    %s113 = sphi 0, %s97
    %s117 = sphi 0, %s117
    %s119 = sphi 0, %s117
    %s120 = sphi 0, %s119
    %s134 = sphi 0, %s120
    %s138 = sphi 0, %s138
    %s140 = sphi 0, %s138
    %s141 = sphi 0, %s140
    %s155 = sphi 0, %s141
    %s159 = sphi 0, %s159
    %s161 = sphi 0, %s159
    %s162 = sphi 0, %s161
    %s176 = sphi 0, %s162
    %s180 = sphi 0, %s180
    %s182 = sphi 0, %s180
    %s183 = sphi 0, %s182
    %s197 = sphi 0, %s183
    %s201 = sphi 0, %s201
    %s203 = sphi 0, %s201
    %s204 = sphi 0, %s203
    %s218 = sphi 0, %s204
    %s222 = sphi 0, %s222
    %s224 = sphi 0, %s222
    %s225 = sphi 0, %s224
    %s239 = sphi 0, %s225
    %s243 = sphi 0, %s243
    %s245 = sphi 0, %s243
    %s246 = sphi 0, %s245
    %s260 = sphi 0, %s246
    %s264 = sphi 0, %s264
    %s266 = sphi 0, %s264
    %s267 = sphi 0, %s266
    %s281 = sphi 0, %s267
    %s289 = sphi 0, %s291
    %s292 = sphi 0, %s289
    %s293 = sphi 0, %s292
    %s309 = sphi 0, %s293
  $region4: #{decoder_forward.9} parent=0 // loop_header_branch
    %20 = sbr.rel (%p18) target = $region8
  $region5: #{decoder_forward.9} parent=0 // loop_body
    %s22 = ssub.s32 %s17, 1
    %s23 = ssub.s32 %s17, 2
    %s30 = sadd.s32 1, %s25
    %p31 = scmp.ge.s32.totalorder %s30, 1
    %s32 = scalar_select %p31, 0, %s30
    %s33 = sadd.s32 1, %s24
    %s34 = scalar_select %p31, %s33, %s24
    %p35 = scmp.ge.s32.totalorder %s34, 2
    %s36 = scalar_select %p35, 0, %s34
    %s37 = ssub.s32 %s24, %s36
    %s38 = ssub.s32 %s25, %s32
    %s39 = sor.u32 %s37, %s38
    %p40 = scmp.eq.s32.totalorder %s39, 0
    %s42 = sadd.s32 %s41, 1
    %s43 = scalar_select %p40, %s41, %s42
    %p46 = pneg %p40
    %p47 = scmp.eq.s32.totalorder %s17, 1
    %p48 = por %p46, %p47
    %p49 = scmp.ne.s32.totalorder %s41, %s44
    %p50 = scmp.eq.s32.totalorder %s17, 0
    %p51 = por %p49, %p50
    %p52 = scmp.ne.s32.totalorder %s41, %s44
    %p53 = scmp.eq.s32.totalorder %s22, 1
    %p54 = por %p52, %p53
    %p55 = scmp.ne.s32.totalorder %s44, %s45
    %p56 = scmp.eq.s32.totalorder %s22, 0
    %p57 = por %p55, %p56
    %p58 = scmp.ne.s32.totalorder %s44, %s45
    %p59 = scmp.eq.s32.totalorder %s23, 1
    %p60 = por %p58, %p59
    %p62 = scmp.ne.s32.totalorder %s45, %s61
    %p63 = scmp.eq.s32.totalorder %s23, 0
    %p64 = por %p62, %p63
    %s65 = ssub.s32 %s24, %s36
    %p66 = scmp.eq.s32.totalorder %s65, 0
    %s68 = sadd.s32 %s67, 1
    %s69 = scalar_select %p66, %s67, %s68
    %p72 = pneg %p66
    %p73 = scmp.eq.s32.totalorder %s17, 1
    %p74 = por %p72, %p73
    %p75 = scmp.ne.s32.totalorder %s67, %s70
    %p76 = scmp.eq.s32.totalorder %s17, 0
    %p77 = por %p75, %p76
    %p78 = scmp.ne.s32.totalorder %s67, %s70
    %p79 = scmp.eq.s32.totalorder %s22, 1
    %p80 = por %p78, %p79
    %p81 = scmp.ne.s32.totalorder %s70, %s71
    %p82 = scmp.eq.s32.totalorder %s22, 0
    %p83 = por %p81, %p82
    %p84 = scmp.ne.s32.totalorder %s70, %s71
    %p85 = scmp.eq.s32.totalorder %s23, 1
    %p86 = por %p84, %p85
    %p88 = scmp.ne.s32.totalorder %s71, %s87
    %p89 = scmp.eq.s32.totalorder %s23, 0
    %p90 = por %p88, %p89
    %s91 = ssub.s32 %s25, %s32
    %p92 = scmp.eq.s32.totalorder %s91, 0
    %s94 = sadd.s32 %s93, 1
    %s95 = scalar_select %p92, %s93, %s94
    %p98 = pneg %p92
    %p99 = scmp.eq.s32.totalorder %s17, 1
    %p100 = por %p98, %p99
    %p101 = scmp.ne.s32.totalorder %s93, %s96
    %p102 = scmp.eq.s32.totalorder %s17, 0
    %p103 = por %p101, %p102
    %p104 = scmp.ne.s32.totalorder %s93, %s96
    %p105 = scmp.eq.s32.totalorder %s22, 1
    %p106 = por %p104, %p105
    %p107 = scmp.ne.s32.totalorder %s96, %s97
    %p108 = scmp.eq.s32.totalorder %s22, 0
    %p109 = por %p107, %p108
    %p110 = scmp.ne.s32.totalorder %s96, %s97
    %p111 = scmp.eq.s32.totalorder %s23, 1
    %p112 = por %p110, %p111
    %p114 = scmp.ne.s32.totalorder %s97, %s113
    %p115 = scmp.eq.s32.totalorder %s23, 0
    %p116 = por %p114, %p115
    %s118 = sadd.s32 %s117, 1
    %p121 = scmp.eq.s32.totalorder %s17, 1
    %p122 = scmp.ne.s32.totalorder %s117, %s119
    %p123 = scmp.eq.s32.totalorder %s17, 0
    %p124 = por %p122, %p123
    %p125 = scmp.ne.s32.totalorder %s117, %s119
    %p126 = scmp.eq.s32.totalorder %s22, 1
    %p127 = por %p125, %p126
    %p128 = scmp.ne.s32.totalorder %s119, %s120
    %p129 = scmp.eq.s32.totalorder %s22, 0
    %p130 = por %p128, %p129
    %p131 = scmp.ne.s32.totalorder %s119, %s120
    %p132 = scmp.eq.s32.totalorder %s23, 1
    %p133 = por %p131, %p132
    %p135 = scmp.ne.s32.totalorder %s120, %s134
    %p136 = scmp.eq.s32.totalorder %s23, 0
    %p137 = por %p135, %p136
    %s139 = sadd.s32 %s138, 1
    %p142 = scmp.eq.s32.totalorder %s17, 1
    %p143 = scmp.ne.s32.totalorder %s138, %s140
    %p144 = scmp.eq.s32.totalorder %s17, 0
    %p145 = por %p143, %p144
    %p146 = scmp.ne.s32.totalorder %s138, %s140
    %p147 = scmp.eq.s32.totalorder %s22, 1
    %p148 = por %p146, %p147
    %p149 = scmp.ne.s32.totalorder %s140, %s141
    %p150 = scmp.eq.s32.totalorder %s22, 0
    %p151 = por %p149, %p150
    %p152 = scmp.ne.s32.totalorder %s140, %s141
    %p153 = scmp.eq.s32.totalorder %s23, 1
    %p154 = por %p152, %p153
    %p156 = scmp.ne.s32.totalorder %s141, %s155
    %p157 = scmp.eq.s32.totalorder %s23, 0
    %p158 = por %p156, %p157
    %s160 = sadd.s32 %s159, 1
    %p163 = scmp.eq.s32.totalorder %s17, 1
    %p164 = scmp.ne.s32.totalorder %s159, %s161
    %p165 = scmp.eq.s32.totalorder %s17, 0
    %p166 = por %p164, %p165
    %p167 = scmp.ne.s32.totalorder %s159, %s161
    %p168 = scmp.eq.s32.totalorder %s22, 1
    %p169 = por %p167, %p168
    %p170 = scmp.ne.s32.totalorder %s161, %s162
    %p171 = scmp.eq.s32.totalorder %s22, 0
    %p172 = por %p170, %p171
    %p173 = scmp.ne.s32.totalorder %s161, %s162
    %p174 = scmp.eq.s32.totalorder %s23, 1
    %p175 = por %p173, %p174
    %p177 = scmp.ne.s32.totalorder %s162, %s176
    %p178 = scmp.eq.s32.totalorder %s23, 0
    %p179 = por %p177, %p178
    %s181 = sadd.s32 %s180, 1
    %p184 = scmp.eq.s32.totalorder %s17, 1
    %p185 = scmp.ne.s32.totalorder %s180, %s182
    %p186 = scmp.eq.s32.totalorder %s17, 0
    %p187 = por %p185, %p186
    %p188 = scmp.ne.s32.totalorder %s180, %s182
    %p189 = scmp.eq.s32.totalorder %s22, 1
    %p190 = por %p188, %p189
    %p191 = scmp.ne.s32.totalorder %s182, %s183
    %p192 = scmp.eq.s32.totalorder %s22, 0
    %p193 = por %p191, %p192
    %p194 = scmp.ne.s32.totalorder %s182, %s183
    %p195 = scmp.eq.s32.totalorder %s23, 1
    %p196 = por %p194, %p195
    %p198 = scmp.ne.s32.totalorder %s183, %s197
    %p199 = scmp.eq.s32.totalorder %s23, 0
    %p200 = por %p198, %p199
    %s202 = sadd.s32 %s201, 1
    %p205 = scmp.eq.s32.totalorder %s17, 1
    %p206 = scmp.ne.s32.totalorder %s201, %s203
    %p207 = scmp.eq.s32.totalorder %s17, 0
    %p208 = por %p206, %p207
    %p209 = scmp.ne.s32.totalorder %s201, %s203
    %p210 = scmp.eq.s32.totalorder %s22, 1
    %p211 = por %p209, %p210
    %p212 = scmp.ne.s32.totalorder %s203, %s204
    %p213 = scmp.eq.s32.totalorder %s22, 0
    %p214 = por %p212, %p213
    %p215 = scmp.ne.s32.totalorder %s203, %s204
    %p216 = scmp.eq.s32.totalorder %s23, 1
    %p217 = por %p215, %p216
    %p219 = scmp.ne.s32.totalorder %s204, %s218
    %p220 = scmp.eq.s32.totalorder %s23, 0
    %p221 = por %p219, %p220
    %s223 = sadd.s32 %s222, 1
    %p226 = scmp.eq.s32.totalorder %s17, 1
    %p227 = scmp.ne.s32.totalorder %s222, %s224
    %p228 = scmp.eq.s32.totalorder %s17, 0
    %p229 = por %p227, %p228
    %p230 = scmp.ne.s32.totalorder %s222, %s224
    %p231 = scmp.eq.s32.totalorder %s22, 1
    %p232 = por %p230, %p231
    %p233 = scmp.ne.s32.totalorder %s224, %s225
    %p234 = scmp.eq.s32.totalorder %s22, 0
    %p235 = por %p233, %p234
    %p236 = scmp.ne.s32.totalorder %s224, %s225
    %p237 = scmp.eq.s32.totalorder %s23, 1
    %p238 = por %p236, %p237
    %p240 = scmp.ne.s32.totalorder %s225, %s239
    %p241 = scmp.eq.s32.totalorder %s23, 0
    %p242 = por %p240, %p241
    %s244 = sadd.s32 %s243, 1
    %p247 = scmp.eq.s32.totalorder %s17, 1
    %p248 = scmp.ne.s32.totalorder %s243, %s245
    %p249 = scmp.eq.s32.totalorder %s17, 0
    %p250 = por %p248, %p249
    %p251 = scmp.ne.s32.totalorder %s243, %s245
    %p252 = scmp.eq.s32.totalorder %s22, 1
    %p253 = por %p251, %p252
    %p254 = scmp.ne.s32.totalorder %s245, %s246
    %p255 = scmp.eq.s32.totalorder %s22, 0
    %p256 = por %p254, %p255
    %p257 = scmp.ne.s32.totalorder %s245, %s246
    %p258 = scmp.eq.s32.totalorder %s23, 1
    %p259 = por %p257, %p258
    %p261 = scmp.ne.s32.totalorder %s246, %s260
    %p262 = scmp.eq.s32.totalorder %s23, 0
    %p263 = por %p261, %p262
    %s265 = sadd.s32 %s264, 1
    %p268 = scmp.eq.s32.totalorder %s17, 1
    %p269 = scmp.ne.s32.totalorder %s264, %s266
    %p270 = scmp.eq.s32.totalorder %s17, 0
    %p271 = por %p269, %p270
    %p272 = scmp.ne.s32.totalorder %s264, %s266
    %p273 = scmp.eq.s32.totalorder %s22, 1
    %p274 = por %p272, %p273
    %p275 = scmp.ne.s32.totalorder %s266, %s267
    %p276 = scmp.eq.s32.totalorder %s22, 0
    %p277 = por %p275, %p276
    %p278 = scmp.ne.s32.totalorder %s266, %s267
    %p279 = scmp.eq.s32.totalorder %s23, 1
    %p280 = por %p278, %p279
    %p282 = scmp.ne.s32.totalorder %s267, %s281
    %p283 = scmp.eq.s32.totalorder %s23, 0
    %p284 = por %p282, %p283
    %s285 = ssub.s32 %s24, %s36
    %s286 = ssub.s32 %s25, %s32
    %s287 = sor.u32 %s285, %s286
    %p288 = scmp.eq.s32.totalorder %s287, 0
    %s290 = sadd.s32 %s289, 1
    %s291 = scalar_select %p288, %s289, %s290
    %p294 = pneg %p288
    %p295 = scmp.eq.s32.totalorder %s17, 1
    %p296 = por %p294, %p295
    %p297 = scmp.ne.s32.totalorder %s289, %s292
    %p298 = scmp.eq.s32.totalorder %s17, 0
    %p299 = por %p297, %p298
    %p300 = scmp.ne.s32.totalorder %s289, %s292
    %p301 = scmp.eq.s32.totalorder %s22, 1
    %p302 = por %p300, %p301
    %p303 = scmp.ne.s32.totalorder %s292, %s293
    %p304 = scmp.eq.s32.totalorder %s22, 0
    %p305 = por %p303, %p304
    %p306 = scmp.ne.s32.totalorder %s292, %s293
    %p307 = scmp.eq.s32.totalorder %s23, 1
    %p308 = por %p306, %p307
    %p310 = scmp.ne.s32.totalorder %s293, %s309
    %p311 = scmp.eq.s32.totalorder %s23, 0
    %p312 = por %p310, %p311
    %p313 = scmp.le.s32.totalorder 1, %s17
    %p314 = scmp.lt.s32.totalorder %s17, 3
    %p315 = pnand %p313, %p314
    %p316 = pneg %p315
    // Predicated region
    $region9: #{decoder_forward.9} parent=5 // pred_check
      _
    $region10: #{decoder_forward.9} parent=5 // pred_check_branch
      %318 = sbr.rel (%p315) target = $region12
    $region11: #{decoder_forward.9} parent=5 // pred_region
      %s319 = ssub.s32 %s17, 1
      // Predicated region
      $region13: #{decoder_forward.9} parent=11 // pred_check
        %p320 = pneg %p109
      $region14: #{decoder_forward.9} parent=11 // pred_check_branch
        %322 = sbr.rel (%p320) target = $region16
      $region15: #{decoder_forward.9} parent=11 // pred_region
        %p323 = scmp.lt.s32.totalorder %s27, 0
        %s324 = scalar_select %p323, %s27, 0
        %s325 = smul.addr %s324, 8
        %s326 = scalar_lea.vmem %s2, %s325
      $region16: #{decoder_forward.9} parent=11 // pred_fallthru
        _
      // Predicated region
      $region17: #{decoder_forward.9} parent=11 // pred_check
        %p327 = pneg %p130
      $region18: #{decoder_forward.9} parent=11 // pred_check_branch
        %329 = sbr.rel (%p327) target = $region20
      $region19: #{decoder_forward.9} parent=11 // pred_region
        _
      $region20: #{decoder_forward.9} parent=11 // pred_fallthru
        _
      // Predicated region
      $region21: #{decoder_forward.9} parent=11 // pred_check
        %p330 = pneg %p151
      $region22: #{decoder_forward.9} parent=11 // pred_check_branch
        %332 = sbr.rel (%p330) target = $region24
      $region23: #{decoder_forward.9} parent=11 // pred_region
        _
      $region24: #{decoder_forward.9} parent=11 // pred_fallthru
        _
      // Predicated region
      $region25: #{decoder_forward.9} parent=11 // pred_check
        %p333 = pneg %p172
      $region26: #{decoder_forward.9} parent=11 // pred_check_branch
        %335 = sbr.rel (%p333) target = $region28
      $region27: #{decoder_forward.9} parent=11 // pred_region
        _
      $region28: #{decoder_forward.9} parent=11 // pred_fallthru
        _
      // Predicated region
      $region29: #{decoder_forward.9} parent=11 // pred_check
        %p336 = pneg %p193
      $region30: #{decoder_forward.9} parent=11 // pred_check_branch
        %338 = sbr.rel (%p336) target = $region32
      $region31: #{decoder_forward.9} parent=11 // pred_region
        _
      $region32: #{decoder_forward.9} parent=11 // pred_fallthru
        _
      // Predicated region
      $region33: #{decoder_forward.9} parent=11 // pred_check
        %p339 = pneg %p214
      $region34: #{decoder_forward.9} parent=11 // pred_check_branch
        %341 = sbr.rel (%p339) target = $region36
      $region35: #{decoder_forward.9} parent=11 // pred_region
        _
      $region36: #{decoder_forward.9} parent=11 // pred_fallthru
        _
      // Predicated region
      $region37: #{decoder_forward.9} parent=11 // pred_check
        %p342 = pneg %p235
      $region38: #{decoder_forward.9} parent=11 // pred_check_branch
        %344 = sbr.rel (%p342) target = $region40
      $region39: #{decoder_forward.9} parent=11 // pred_region
        _
      $region40: #{decoder_forward.9} parent=11 // pred_fallthru
        _
      // Predicated region
      $region41: #{decoder_forward.9} parent=11 // pred_check
        %p345 = pneg %p256
      $region42: #{decoder_forward.9} parent=11 // pred_check_branch
        %347 = sbr.rel (%p345) target = $region44
      $region43: #{decoder_forward.9} parent=11 // pred_region
        _
      $region44: #{decoder_forward.9} parent=11 // pred_fallthru
        _
      // Predicated region
      $region45: #{decoder_forward.9} parent=11 // pred_check
        %p348 = pneg %p277
      $region46: #{decoder_forward.9} parent=11 // pred_check_branch
        %350 = sbr.rel (%p348) target = $region48
      $region47: #{decoder_forward.9} parent=11 // pred_region
        _
      $region48: #{decoder_forward.9} parent=11 // pred_fallthru
        _
    $region12: #{decoder_forward.9} parent=5 // pred_fallthru
      _
    %p351 = scmp.lt.s32.totalorder %s17, 2
    // Predicated region
    $region49: #{decoder_forward.9} parent=5 // pred_check
      %p352 = pneg %p351
    $region50: #{decoder_forward.9} parent=5 // pred_check_branch
      %354 = sbr.rel (%p352) target = $region52
    $region51: #{decoder_forward.9} parent=5 // pred_region
      // Predicated region
      $region53: #{decoder_forward.9} parent=51 // pred_check
        %p355 = pneg %p51
      $region54: #{decoder_forward.9} parent=51 // pred_check_branch
        %357 = sbr.rel (%p355) target = $region56
      $region55: #{decoder_forward.9} parent=51 // pred_region
        %p358 = scmp.lt.s32.totalorder %s24, 1
        %s359 = scalar_select %p358, %s24, 1
        %p360 = scmp.lt.s32.totalorder %s25, 0
        %s361 = scalar_select %p360, %s25, 0
        %s362 = sadd.s32 %s361, %s359
        %s363 = smul.addr %s362, 8
        %s364 = scalar_lea.vmem %s0, %s363
      $region56: #{decoder_forward.9} parent=51 // pred_fallthru
        _
      // Predicated region
      $region57: #{decoder_forward.9} parent=51 // pred_check
        %p365 = pneg %p77
      $region58: #{decoder_forward.9} parent=51 // pred_check_branch
        %367 = sbr.rel (%p365) target = $region60
      $region59: #{decoder_forward.9} parent=51 // pred_region
        %p368 = scmp.lt.s32.totalorder %s24, 1
        %s369 = scalar_select %p368, %s24, 1
        %s370 = smul.addr %s369, 8
        %s371 = scalar_lea.vmem %s1, %s370
      $region60: #{decoder_forward.9} parent=51 // pred_fallthru
        _
    $region52: #{decoder_forward.9} parent=5 // pred_fallthru
      _
    %p372 = scmp.le.s32.totalorder 1, %s17
    %p373 = scmp.lt.s32.totalorder %s17, 3
    %p374 = pnand %p372, %p373
    %p375 = pneg %p374
    // Predicated region
    $region61: #{decoder_forward.9} parent=5 // pred_check
      _
    $region62: #{decoder_forward.9} parent=5 // pred_check_branch
      %377 = sbr.rel (%p374) target = $region64
    $region63: #{decoder_forward.9} parent=5 // pred_region
      %s378 = ssub.s32 %s17, 1
      %p379 = scmp.lt.s32.totalorder %s26, 1
      %s380 = scalar_select %p379, %s26, 1
      %p381 = scmp.lt.s32.totalorder %s27, 0
      %s382 = scalar_select %p381, %s27, 0
      %s383 = sadd.s32 %s382, %s380
      %s384 = smul.addr %s383, 8
      %s385 = scalar_lea.vmem %s0, %s384
      %p386 = pneg %p57
      %p387 = pneg %p54
      %p388 = scmp.lt.s32.totalorder %s26, 1
      %s389 = scalar_select %p388, %s26, 1
      %s390 = smul.addr %s389, 8
      %s391 = scalar_lea.vmem %s1, %s390
      %p392 = pneg %p83
      %p393 = pneg %p80
      %p394 = scmp.lt.s32.totalorder %s27, 0
      %s395 = scalar_select %p394, %s27, 0
      %s396 = smul.addr %s395, 8
      %s397 = scalar_lea.vmem %s2, %s396
      %p398 = pneg %p109
      %p399 = pneg %p106
      %p400 = pneg %p130
      %p401 = pneg %p127
      %p402 = pneg %p151
      %p403 = pneg %p148
      %p404 = pneg %p172
      %p405 = pneg %p169
      %p406 = pneg %p193
      %p407 = pneg %p190
      %p408 = pneg %p214
      %p409 = pneg %p211
      %p410 = pneg %p235
      %p411 = pneg %p232
      %p412 = pneg %p256
      %p413 = pneg %p253
      %p414 = pneg %p277
      %p415 = pneg %p274
      %p416 = pneg %p305
      %p417 = pneg %p302
      %p418 = scmp.lt.s32.totalorder %s26, 1
      %s419 = scalar_select %p418, %s26, 1
      %p420 = scmp.lt.s32.totalorder %s27, 0
      %s421 = scalar_select %p420, %s27, 0
      %s422 = sadd.s32 %s421, %s419
      %s423 = smul.addr %s422, 8
      %s424 = scalar_lea.vmem %s11, %s423
      %p425 = scmp.lt.s32.totalorder %s26, 1
      %s426 = scalar_select %p425, %s26, 1
      %p427 = scmp.lt.s32.totalorder %s27, 0
      %s428 = scalar_select %p427, %s27, 0
      %s429 = sadd.s32 %s428, %s426
      %s430 = smul.addr %s429, 8
      %s431 = scalar_lea.vmem %s0, %s430
      %p432 = scmp.lt.s32.totalorder %s26, 1
      %s433 = scalar_select %p432, %s26, 1
      %s434 = smul.addr %s433, 8
      %s435 = scalar_lea.vmem %s1, %s434
      %p436 = scmp.lt.s32.totalorder %s27, 0
      %s437 = scalar_select %p436, %s27, 0
      %s438 = smul.addr %s437, 8
      %s439 = scalar_lea.vmem %s2, %s438
      %p440 = scmp.lt.s32.totalorder %s26, 1
      %s441 = scalar_select %p440, %s26, 1
      %p442 = scmp.lt.s32.totalorder %s27, 0
      %s443 = scalar_select %p442, %s27, 0
      %s444 = sadd.s32 %s443, %s441
      %s445 = smul.addr %s444, 8
      %s446 = scalar_lea.vmem %s11, %s445
      %v448 = vld [vmem:[%s431] sm:$0xff]
      %v449 = vld [vmem:[%s435] sm:$0xff]
      %v450 = vpack.c.bf16 %v448, %v448
      %v451 = vpack.c.bf16 %v449, %v449
      %v452 = vld [vmem:[%s3] sm:$0xf]
      %v453 = vld [vmem:[%s3 + $0x4] sm:$0xf]
      %v454 = vld [vmem:[%s3 + $0x8] sm:$0xf]
      %v455 = vld [vmem:[%s3 + $0xc] sm:$0xf]
      %v456 = vld [vmem:[%s3 + $0x10] sm:$0xf]
      %v457 = vld [vmem:[%s3 + $0x14] sm:$0xf]
      %v458 = vld [vmem:[%s3 + $0x18] sm:$0xf]
      %v459 = vld [vmem:[%s3 + $0x1c] sm:$0xf]
      %v460 = vld [vmem:[%s3 + $0x20] sm:$0xf]
      %v461 = vld [vmem:[%s3 + $0x24] sm:$0xf]
      %v462 = vld [vmem:[%s3 + $0x28] sm:$0xf]
      %v463 = vld [vmem:[%s3 + $0x2c] sm:$0xf]
      %v464 = vld [vmem:[%s3 + $0x30] sm:$0xf]
      %v465 = vld [vmem:[%s3 + $0x34] sm:$0xf]
      %v466 = vld [vmem:[%s3 + $0x38] sm:$0xf]
      %v467 = vld [vmem:[%s3 + $0x3c] sm:$0xf]
      %v468 = vld [vmem:[%s4] sm:$0x1]
      %v469 = vld [vmem:[%s4 + $0x1] sm:$0x1]
      %v470 = vld [vmem:[%s4 + $0x2] sm:$0x1]
      %v471 = vld [vmem:[%s4 + $0x3] sm:$0x1]
      %v476 = vperm.slane %v468, 0
      %v477 = vperm.slane %v469, 0
      %v478 = vperm.slane %v470, 0
      %v479 = vperm.slane %v471, 0
      %v488 = vunpack.c.l.b16 %v452
      %v489 = vunpack.c.l.b16 %v453
      %v490 = vunpack.c.l.b16 %v454
      %v491 = vunpack.c.l.b16 %v455
      %v492 = vpack.c.b16 %v489, %v488
      %v493 = vpack.c.b16 %v491, %v490
      %vm496 = vcmask 261120
      %v498 = vsel %vm496, %v450, 0
      %500 = vmatpush.bf16.msra.mxu0 0
      %501 = vmatpush.bf16.msra.mxu0 0
      %502 = vmatpush.bf16.msra.mxu0 0
      %503 = vmatpush.bf16.msra.mxu0 0
      %504 = vmatpush.bf16.msra.mxu0 0
      %505 = vmatpush.bf16.msra.mxu0 0
      %506 = vmatpush.bf16.msra.mxu0 %v493
      %507 = vmatpush.bf16.msra.mxu0 %v492
      %508 = vmatmul.bf16.gmra.mxu0 %v498
      %v509 = vpop.f32.mrf.mxu0
      %v510 = vadd.f32 %v476, %v509
      %v511 = vpop.f32.mrf.mxu0
      %512 = vdwg.mxu0
      %v517 = vunpack.c.l.b16 %v456
      %v518 = vunpack.c.l.b16 %v457
      %v519 = vunpack.c.l.b16 %v458
      %v520 = vunpack.c.l.b16 %v459
      %v521 = vpack.c.b16 %v518, %v517
      %v522 = vpack.c.b16 %v520, %v519
      %525 = vmatpush.bf16.msra.mxu0 0
      %526 = vmatpush.bf16.msra.mxu0 0
      %527 = vmatpush.bf16.msra.mxu0 0
      %528 = vmatpush.bf16.msra.mxu0 0
      %529 = vmatpush.bf16.msra.mxu0 0
      %530 = vmatpush.bf16.msra.mxu0 0
      %531 = vmatpush.bf16.msra.mxu0 %v522
      %532 = vmatpush.bf16.msra.mxu0 %v521
      %533 = vmatmul.bf16.gmra.mxu0 %v498
      %v534 = vpop.f32.mrf.mxu0
      %v535 = vadd.f32 %v477, %v534
      %v536 = vpop.f32.mrf.mxu0
      %537 = vdwg.mxu0
      %v542 = vunpack.c.l.b16 %v460
      %v543 = vunpack.c.l.b16 %v461
      %v544 = vunpack.c.l.b16 %v462
      %v545 = vunpack.c.l.b16 %v463
      %v546 = vpack.c.b16 %v543, %v542
      %v547 = vpack.c.b16 %v545, %v544
      %550 = vmatpush.bf16.msra.mxu0 0
      %551 = vmatpush.bf16.msra.mxu0 0
      %552 = vmatpush.bf16.msra.mxu0 0
      %553 = vmatpush.bf16.msra.mxu0 0
      %554 = vmatpush.bf16.msra.mxu0 0
      %555 = vmatpush.bf16.msra.mxu0 0
      %556 = vmatpush.bf16.msra.mxu0 %v547
      %557 = vmatpush.bf16.msra.mxu0 %v546
      %558 = vmatmul.bf16.gmra.mxu0 %v498
      %v559 = vpop.f32.mrf.mxu0
      %v560 = vadd.f32 %v478, %v559
      %v561 = vpop.f32.mrf.mxu0
      %562 = vdwg.mxu0
      %v567 = vunpack.c.l.b16 %v464
      %v568 = vunpack.c.l.b16 %v465
      %v569 = vunpack.c.l.b16 %v466
      %v570 = vunpack.c.l.b16 %v467
      %v571 = vpack.c.b16 %v568, %v567
      %v572 = vpack.c.b16 %v570, %v569
      %575 = vmatpush.bf16.msra.mxu0 0
      %576 = vmatpush.bf16.msra.mxu0 0
      %577 = vmatpush.bf16.msra.mxu0 0
      %578 = vmatpush.bf16.msra.mxu0 0
      %579 = vmatpush.bf16.msra.mxu0 0
      %580 = vmatpush.bf16.msra.mxu0 0
      %581 = vmatpush.bf16.msra.mxu0 %v572
      %582 = vmatpush.bf16.msra.mxu0 %v571
      %583 = vmatmul.bf16.gmra.mxu0 %v498
      %v584 = vpop.f32.mrf.mxu0
      %v585 = vadd.f32 %v479, %v584
      %v586 = vpop.f32.mrf.mxu0
      %587 = vdwg.mxu0
      %v588 = vld [vmem:[%s5] sm:$0xf]
      %v589 = vld [vmem:[%s5 + $0x4] sm:$0xf]
      %v590 = vld [vmem:[%s5 + $0x8] sm:$0xf]
      %v591 = vld [vmem:[%s5 + $0xc] sm:$0xf]
      %v592 = vld [vmem:[%s5 + $0x10] sm:$0xf]
      %v593 = vld [vmem:[%s5 + $0x14] sm:$0xf]
      %v594 = vld [vmem:[%s5 + $0x18] sm:$0xf]
      %v595 = vld [vmem:[%s5 + $0x1c] sm:$0xf]
      %v596 = vld [vmem:[%s5 + $0x20] sm:$0xf]
      %v597 = vld [vmem:[%s5 + $0x24] sm:$0xf]
      %v598 = vld [vmem:[%s5 + $0x28] sm:$0xf]
      %v599 = vld [vmem:[%s5 + $0x2c] sm:$0xf]
      %v600 = vld [vmem:[%s5 + $0x30] sm:$0xf]
      %v601 = vld [vmem:[%s5 + $0x34] sm:$0xf]
      %v602 = vld [vmem:[%s5 + $0x38] sm:$0xf]
      %v603 = vld [vmem:[%s5 + $0x3c] sm:$0xf]
      %v604 = vld [vmem:[%s5 + $0x40] sm:$0xf]
      %v605 = vld [vmem:[%s5 + $0x44] sm:$0xf]
      %v606 = vld [vmem:[%s5 + $0x48] sm:$0xf]
      %v607 = vld [vmem:[%s5 + $0x4c] sm:$0xf]
      %v608 = vld [vmem:[%s5 + $0x50] sm:$0xf]
      %v609 = vld [vmem:[%s5 + $0x54] sm:$0xf]
      %v610 = vld [vmem:[%s5 + $0x58] sm:$0xf]
      %v611 = vld [vmem:[%s5 + $0x5c] sm:$0xf]
      %v612 = vld [vmem:[%s5 + $0x60] sm:$0xf]
      %v613 = vld [vmem:[%s5 + $0x64] sm:$0xf]
      %v614 = vld [vmem:[%s5 + $0x68] sm:$0xf]
      %v615 = vld [vmem:[%s5 + $0x6c] sm:$0xf]
      %v616 = vld [vmem:[%s5 + $0x70] sm:$0xf]
      %v617 = vld [vmem:[%s5 + $0x74] sm:$0xf]
      %v618 = vld [vmem:[%s5 + $0x78] sm:$0xf]
      %v619 = vld [vmem:[%s5 + $0x7c] sm:$0xf]
      %v620 = vld [vmem:[%s6] sm:$0x1]
      %v621 = vld [vmem:[%s6 + $0x1] sm:$0x1]
      %v622 = vld [vmem:[%s6 + $0x2] sm:$0x1]
      %v623 = vld [vmem:[%s6 + $0x3] sm:$0x1]
      %v624 = vld [vmem:[%s6 + $0x4] sm:$0x1]
      %v625 = vld [vmem:[%s6 + $0x5] sm:$0x1]
      %v626 = vld [vmem:[%s6 + $0x6] sm:$0x1]
      %v627 = vld [vmem:[%s6 + $0x7] sm:$0x1]
      %v636 = vperm.slane %v620, 0
      %v637 = vperm.slane %v621, 0
      %v638 = vperm.slane %v622, 0
      %v639 = vperm.slane %v623, 0
      %v640 = vperm.slane %v624, 0
      %v641 = vperm.slane %v625, 0
      %v642 = vperm.slane %v626, 0
      %v643 = vperm.slane %v627, 0
      %v656 = vunpack.c.l.b16 %v588
      %v657 = vunpack.c.l.b16 %v589
      %v658 = vunpack.c.l.b16 %v590
      %v659 = vunpack.c.l.b16 %v591
      %v660 = vpack.c.b16 %v657, %v656
      %v661 = vpack.c.b16 %v659, %v658
      %v665 = vsel %vm496, %v451, 0
      %667 = vmatpush.bf16.msra.mxu0 0
      %668 = vmatpush.bf16.msra.mxu0 0
      %669 = vmatpush.bf16.msra.mxu0 0
      %670 = vmatpush.bf16.msra.mxu0 0
      %671 = vmatpush.bf16.msra.mxu0 0
      %672 = vmatpush.bf16.msra.mxu0 0
      %673 = vmatpush.bf16.msra.mxu0 %v661
      %674 = vmatpush.bf16.msra.mxu0 %v660
      %675 = vmatmul.bf16.gmra.mxu0 %v665
      %v676 = vpop.f32.mrf.mxu0
      %v677 = vadd.f32 %v636, %v676
      %v678 = vpop.f32.mrf.mxu0
      %679 = vdwg.mxu0
      %v684 = vunpack.c.l.b16 %v592
      %v685 = vunpack.c.l.b16 %v593
      %v686 = vunpack.c.l.b16 %v594
      %v687 = vunpack.c.l.b16 %v595
      %v688 = vpack.c.b16 %v685, %v684
      %v689 = vpack.c.b16 %v687, %v686
      %692 = vmatpush.bf16.msra.mxu0 0
      %693 = vmatpush.bf16.msra.mxu0 0
      %694 = vmatpush.bf16.msra.mxu0 0
      %695 = vmatpush.bf16.msra.mxu0 0
      %696 = vmatpush.bf16.msra.mxu0 0
      %697 = vmatpush.bf16.msra.mxu0 0
      %698 = vmatpush.bf16.msra.mxu0 %v689
      %699 = vmatpush.bf16.msra.mxu0 %v688
      %700 = vmatmul.bf16.gmra.mxu0 %v665
      %v701 = vpop.f32.mrf.mxu0
      %v702 = vadd.f32 %v637, %v701
      %v703 = vpop.f32.mrf.mxu0
      %704 = vdwg.mxu0
      %v709 = vunpack.c.l.b16 %v596
      %v710 = vunpack.c.l.b16 %v597
      %v711 = vunpack.c.l.b16 %v598
      %v712 = vunpack.c.l.b16 %v599
      %v713 = vpack.c.b16 %v710, %v709
      %v714 = vpack.c.b16 %v712, %v711
      %717 = vmatpush.bf16.msra.mxu0 0
      %718 = vmatpush.bf16.msra.mxu0 0
      %719 = vmatpush.bf16.msra.mxu0 0
      %720 = vmatpush.bf16.msra.mxu0 0
      %721 = vmatpush.bf16.msra.mxu0 0
      %722 = vmatpush.bf16.msra.mxu0 0
      %723 = vmatpush.bf16.msra.mxu0 %v714
      %724 = vmatpush.bf16.msra.mxu0 %v713
      %725 = vmatmul.bf16.gmra.mxu0 %v665
      %v726 = vpop.f32.mrf.mxu0
      %v727 = vadd.f32 %v638, %v726
      %v728 = vpop.f32.mrf.mxu0
      %729 = vdwg.mxu0
      %v734 = vunpack.c.l.b16 %v600
      %v735 = vunpack.c.l.b16 %v601
      %v736 = vunpack.c.l.b16 %v602
      %v737 = vunpack.c.l.b16 %v603
      %v738 = vpack.c.b16 %v735, %v734
      %v739 = vpack.c.b16 %v737, %v736
      %742 = vmatpush.bf16.msra.mxu0 0
      %743 = vmatpush.bf16.msra.mxu0 0
      %744 = vmatpush.bf16.msra.mxu0 0
      %745 = vmatpush.bf16.msra.mxu0 0
      %746 = vmatpush.bf16.msra.mxu0 0
      %747 = vmatpush.bf16.msra.mxu0 0
      %748 = vmatpush.bf16.msra.mxu0 %v739
      %749 = vmatpush.bf16.msra.mxu0 %v738
      %750 = vmatmul.bf16.gmra.mxu0 %v665
      %v751 = vpop.f32.mrf.mxu0
      %v752 = vadd.f32 %v639, %v751
      %v753 = vpop.f32.mrf.mxu0
      %754 = vdwg.mxu0
      %v759 = vunpack.c.l.b16 %v604
      %v760 = vunpack.c.l.b16 %v605
      %v761 = vunpack.c.l.b16 %v606
      %v762 = vunpack.c.l.b16 %v607
      %v763 = vpack.c.b16 %v760, %v759
      %v764 = vpack.c.b16 %v762, %v761
      %767 = vmatpush.bf16.msra.mxu0 0
      %768 = vmatpush.bf16.msra.mxu0 0
      %769 = vmatpush.bf16.msra.mxu0 0
      %770 = vmatpush.bf16.msra.mxu0 0
      %771 = vmatpush.bf16.msra.mxu0 0
      %772 = vmatpush.bf16.msra.mxu0 0
      %773 = vmatpush.bf16.msra.mxu0 %v764
      %774 = vmatpush.bf16.msra.mxu0 %v763
      %775 = vmatmul.bf16.gmra.mxu0 %v665
      %v776 = vpop.f32.mrf.mxu0
      %v777 = vadd.f32 %v640, %v776
      %v778 = vpop.f32.mrf.mxu0
      %779 = vdwg.mxu0
      %v784 = vunpack.c.l.b16 %v608
      %v785 = vunpack.c.l.b16 %v609
      %v786 = vunpack.c.l.b16 %v610
      %v787 = vunpack.c.l.b16 %v611
      %v788 = vpack.c.b16 %v785, %v784
      %v789 = vpack.c.b16 %v787, %v786
      %792 = vmatpush.bf16.msra.mxu0 0
      %793 = vmatpush.bf16.msra.mxu0 0
      %794 = vmatpush.bf16.msra.mxu0 0
      %795 = vmatpush.bf16.msra.mxu0 0
      %796 = vmatpush.bf16.msra.mxu0 0
      %797 = vmatpush.bf16.msra.mxu0 0
      %798 = vmatpush.bf16.msra.mxu0 %v789
      %799 = vmatpush.bf16.msra.mxu0 %v788
      %800 = vmatmul.bf16.gmra.mxu0 %v665
      %v801 = vpop.f32.mrf.mxu0
      %v802 = vadd.f32 %v641, %v801
      %v803 = vpop.f32.mrf.mxu0
      %804 = vdwg.mxu0
      %v809 = vunpack.c.l.b16 %v612
      %v810 = vunpack.c.l.b16 %v613
      %v811 = vunpack.c.l.b16 %v614
      %v812 = vunpack.c.l.b16 %v615
      %v813 = vpack.c.b16 %v810, %v809
      %v814 = vpack.c.b16 %v812, %v811
      %817 = vmatpush.bf16.msra.mxu0 0
      %818 = vmatpush.bf16.msra.mxu0 0
      %819 = vmatpush.bf16.msra.mxu0 0
      %820 = vmatpush.bf16.msra.mxu0 0
      %821 = vmatpush.bf16.msra.mxu0 0
      %822 = vmatpush.bf16.msra.mxu0 0
      %823 = vmatpush.bf16.msra.mxu0 %v814
      %824 = vmatpush.bf16.msra.mxu0 %v813
      %825 = vmatmul.bf16.gmra.mxu0 %v665
      %v826 = vpop.f32.mrf.mxu0
      %v827 = vadd.f32 %v642, %v826
      %v828 = vpop.f32.mrf.mxu0
      %829 = vdwg.mxu0
      %v834 = vunpack.c.l.b16 %v616
      %v835 = vunpack.c.l.b16 %v617
      %v836 = vunpack.c.l.b16 %v618
      %v837 = vunpack.c.l.b16 %v619
      %v838 = vpack.c.b16 %v835, %v834
      %v839 = vpack.c.b16 %v837, %v836
      %842 = vmatpush.bf16.msra.mxu0 0
      %843 = vmatpush.bf16.msra.mxu0 0
      %844 = vmatpush.bf16.msra.mxu0 0
      %845 = vmatpush.bf16.msra.mxu0 0
      %846 = vmatpush.bf16.msra.mxu0 0
      %847 = vmatpush.bf16.msra.mxu0 0
      %848 = vmatpush.bf16.msra.mxu0 %v839
      %849 = vmatpush.bf16.msra.mxu0 %v838
      %850 = vmatmul.bf16.gmra.mxu0 %v665
      %v851 = vpop.f32.mrf.mxu0
      %v852 = vadd.f32 %v643, %v851
      %v853 = vpop.f32.mrf.mxu0
      %854 = vdwg.mxu0
      %v855 = vpack.c.bf16 %v510, %v510
      %v856 = vpack.c.bf16 %v535, %v535
      %v857 = vpack.c.bf16 %v560, %v560
      %v858 = vpack.c.bf16 %v585, %v585
      %v859 = vpack.c.bf16 %v677, %v677
      %v860 = vpack.c.bf16 %v702, %v702
      %v861 = vpack.c.bf16 %v727, %v727
      %v862 = vpack.c.bf16 %v752, %v752
      %v863 = vld [vmem:[%s439] sm:$0xff]
      %vm864 = vcmask 64512
      %v866 = vsel %vm864, %v855, 0
      %v869 = vsel %vm864, %v859, 0
      %871 = vmatpush.bf16.xpose.msra.mxu0 0
      %872 = vmatpush.bf16.xpose.msra.mxu0 0
      %873 = vmatpush.bf16.xpose.msra.mxu0 0
      %874 = vmatpush.bf16.xpose.msra.mxu0 0
      %875 = vmatpush.bf16.xpose.msra.mxu0 0
      %876 = vmatpush.bf16.xpose.msra.mxu0 0
      %877 = vmatpush.bf16.xpose.msra.mxu0 0
      %878 = vmatpush.bf16.xpose.msra.mxu0 %v869
      %879 = vmatmul.bf16.gmra.mxu0 %v866
      %v880 = vpop.f32.mrf.mxu0
      %v881 = vadd.f32 %v863, %v880
      %v882 = vpop.f32.mrf.mxu0
      %883 = vdwg.mxu0
      %v885 = vsel %vm864, %v856, 0
      %v888 = vsel %vm864, %v860, 0
      %890 = vmatpush.bf16.xpose.msra.mxu0 0
      %891 = vmatpush.bf16.xpose.msra.mxu0 0
      %892 = vmatpush.bf16.xpose.msra.mxu0 0
      %893 = vmatpush.bf16.xpose.msra.mxu0 0
      %894 = vmatpush.bf16.xpose.msra.mxu0 0
      %895 = vmatpush.bf16.xpose.msra.mxu0 0
      %896 = vmatpush.bf16.xpose.msra.mxu0 0
      %897 = vmatpush.bf16.xpose.msra.mxu0 %v888
      %898 = vmatmul.bf16.gmra.mxu0 %v885
      %v899 = vpop.f32.mrf.mxu0
      %v900 = vadd.f32 %v863, %v899
      %v901 = vpop.f32.mrf.mxu0
      %902 = vdwg.mxu0
      %v904 = vsel %vm864, %v857, 0
      %v907 = vsel %vm864, %v861, 0
      %909 = vmatpush.bf16.xpose.msra.mxu0 0
      %910 = vmatpush.bf16.xpose.msra.mxu0 0
      %911 = vmatpush.bf16.xpose.msra.mxu0 0
      %912 = vmatpush.bf16.xpose.msra.mxu0 0
      %913 = vmatpush.bf16.xpose.msra.mxu0 0
      %914 = vmatpush.bf16.xpose.msra.mxu0 0
      %915 = vmatpush.bf16.xpose.msra.mxu0 0
      %916 = vmatpush.bf16.xpose.msra.mxu0 %v907
      %917 = vmatmul.bf16.gmra.mxu0 %v904
      %v918 = vpop.f32.mrf.mxu0
      %v919 = vadd.f32 %v863, %v918
      %v920 = vpop.f32.mrf.mxu0
      %921 = vdwg.mxu0
      %v923 = vsel %vm864, %v858, 0
      %v926 = vsel %vm864, %v862, 0
      %928 = vmatpush.bf16.xpose.msra.mxu0 0
      %929 = vmatpush.bf16.xpose.msra.mxu0 0
      %930 = vmatpush.bf16.xpose.msra.mxu0 0
      %931 = vmatpush.bf16.xpose.msra.mxu0 0
      %932 = vmatpush.bf16.xpose.msra.mxu0 0
      %933 = vmatpush.bf16.xpose.msra.mxu0 0
      %934 = vmatpush.bf16.xpose.msra.mxu0 0
      %935 = vmatpush.bf16.xpose.msra.mxu0 %v926
      %936 = vmatmul.bf16.gmra.mxu0 %v923
      %v937 = vpop.f32.mrf.mxu0
      %v938 = vadd.f32 %v863, %v937
      %v939 = vpop.f32.mrf.mxu0
      %940 = vdwg.mxu0
      %v941 = vsel %vm864, %v881, -inf
      %942 = vmax.xlane.f32.xlu0 %v941
      %v943 = vpop.xlane.xlu0 %942
      %v944 = vsel %vm864, %v900, -inf
      %945 = vmax.xlane.f32.xlu0 %v944
      %v946 = vpop.xlane.xlu0 %945
      %v947 = vsel %vm864, %v919, -inf
      %948 = vmax.xlane.f32.xlu0 %v947
      %v949 = vpop.xlane.xlu0 %948
      %v950 = vsel %vm864, %v938, -inf
      %951 = vmax.xlane.f32.xlu0 %v950
      %v952 = vpop.xlane.xlu0 %951
      %v953 = vsub.f32 %v881, %v943
      %v954 = vsub.f32 %v900, %v946
      %v955 = vsub.f32 %v919, %v949
      %v956 = vsub.f32 %v938, %v952
      %v957 = vmul.f32 %v953, 1.442695
      %v958 = vpow.pop %v957
      %v959 = vmul.f32 %v954, 1.442695
      %v960 = vpow.pop %v959
      %v961 = vmul.f32 %v955, 1.442695
      %v962 = vpow.pop %v961
      %v963 = vmul.f32 %v956, 1.442695
      %v964 = vpow.pop %v963
      %v965 = vsel %vm864, %v958, 0.0
      %966 = vadd.xlane.f32.xlu0 %v965
      %v967 = vpop.xlane.xlu0 %966
      %v968 = vsel %vm864, %v960, 0.0
      %969 = vadd.xlane.f32.xlu0 %v968
      %v970 = vpop.xlane.xlu0 %969
      %v971 = vsel %vm864, %v962, 0.0
      %972 = vadd.xlane.f32.xlu0 %v971
      %v973 = vpop.xlane.xlu0 %972
      %v974 = vsel %vm864, %v964, 0.0
      %975 = vadd.xlane.f32.xlu0 %v974
      %v976 = vpop.xlane.xlu0 %975
      %v977 = vrcp.pop %v967
      %v978 = vmul.f32 %v967, %v977
      %v979 = vsub.f32 1.0, %v978
      %v980 = vmul.f32 %v977, %v979
      %v981 = vadd.f32 %v977, %v980
      %vm982 = vweird.f32 %v967
      %vm983 = vweird.f32 %v977
      %vm984 = vmor %vm982, %vm983
      %v985 = vsel %vm984, %v977, %v981
      %v986 = vand.u32 2147483647, %v967
      %vm987 = vcmp.eq.f32.partialorder %v986, 8.507059e+37
      %v988 = vand.u32 %v967, 2147483648
      %v989 = vor.u32 1.1754944e-38, %v988
      %v990 = vsel %vm987, %v989, %v985
      %v991 = vmul.f32 %v958, %v990
      %v992 = vrcp.pop %v970
      %v993 = vmul.f32 %v970, %v992
      %v994 = vsub.f32 1.0, %v993
      %v995 = vmul.f32 %v992, %v994
      %v996 = vadd.f32 %v992, %v995
      %vm997 = vweird.f32 %v970
      %vm998 = vweird.f32 %v992
      %vm999 = vmor %vm997, %vm998
      %v1000 = vsel %vm999, %v992, %v996
      %v1001 = vand.u32 2147483647, %v970
      %vm1002 = vcmp.eq.f32.partialorder %v1001, 8.507059e+37
      %v1003 = vand.u32 %v970, 2147483648
      %v1004 = vor.u32 1.1754944e-38, %v1003
      %v1005 = vsel %vm1002, %v1004, %v1000
      %v1006 = vmul.f32 %v960, %v1005
      %v1007 = vrcp.pop %v973
      %v1008 = vmul.f32 %v973, %v1007
      %v1009 = vsub.f32 1.0, %v1008
      %v1010 = vmul.f32 %v1007, %v1009
      %v1011 = vadd.f32 %v1007, %v1010
      %vm1012 = vweird.f32 %v973
      %vm1013 = vweird.f32 %v1007
      %vm1014 = vmor %vm1012, %vm1013
      %v1015 = vsel %vm1014, %v1007, %v1011
      %v1016 = vand.u32 2147483647, %v973
      %vm1017 = vcmp.eq.f32.partialorder %v1016, 8.507059e+37
      %v1018 = vand.u32 %v973, 2147483648
      %v1019 = vor.u32 1.1754944e-38, %v1018
      %v1020 = vsel %vm1017, %v1019, %v1015
      %v1021 = vmul.f32 %v962, %v1020
      %v1022 = vrcp.pop %v976
      %v1023 = vmul.f32 %v976, %v1022
      %v1024 = vsub.f32 1.0, %v1023
      %v1025 = vmul.f32 %v1022, %v1024
      %v1026 = vadd.f32 %v1022, %v1025
      %vm1027 = vweird.f32 %v976
      %vm1028 = vweird.f32 %v1022
      %vm1029 = vmor %vm1027, %vm1028
      %v1030 = vsel %vm1029, %v1022, %v1026
      %v1031 = vand.u32 2147483647, %v976
      %vm1032 = vcmp.eq.f32.partialorder %v1031, 8.507059e+37
      %v1033 = vand.u32 %v976, 2147483648
      %v1034 = vor.u32 1.1754944e-38, %v1033
      %v1035 = vsel %vm1032, %v1034, %v1030
      %v1036 = vmul.f32 %v964, %v1035
      %v1037 = vpack.c.bf16 %v991, %v991
      %v1038 = vpack.c.bf16 %v1006, %v1006
      %v1039 = vpack.c.bf16 %v1021, %v1021
      %v1040 = vpack.c.bf16 %v1036, %v1036
      %v1041 = vpack.c.bf16 %v777, %v777
      %v1042 = vpack.c.bf16 %v802, %v802
      %v1043 = vpack.c.bf16 %v827, %v827
      %v1044 = vpack.c.bf16 %v852, %v852
      %v1046 = vsel %vm864, %v1037, 0
      %vm1048 = vcmask 1043456
      %v1050 = vsel %vm1048, %v1041, 0
      %1052 = vmatpush.bf16.msra.mxu0 0
      %1053 = vmatpush.bf16.msra.mxu0 0
      %1054 = vmatpush.bf16.msra.mxu0 0
      %1055 = vmatpush.bf16.msra.mxu0 0
      %1056 = vmatpush.bf16.msra.mxu0 0
      %1057 = vmatpush.bf16.msra.mxu0 0
      %1058 = vmatpush.bf16.msra.mxu0 0
      %1059 = vmatpush.bf16.msra.mxu0 %v1050
      %1060 = vmatmul.bf16.gmra.mxu0 %v1046
      %v1061 = vpop.f32.mrf.mxu0
      %v1062 = vadd.f32 0.0, %v1061
      %v1063 = vpop.f32.mrf.mxu0
      %1064 = vdwg.mxu0
      %v1066 = vsel %vm864, %v1038, 0
      %v1069 = vsel %vm1048, %v1042, 0
      %1071 = vmatpush.bf16.msra.mxu0 0
      %1072 = vmatpush.bf16.msra.mxu0 0
      %1073 = vmatpush.bf16.msra.mxu0 0
      %1074 = vmatpush.bf16.msra.mxu0 0
      %1075 = vmatpush.bf16.msra.mxu0 0
      %1076 = vmatpush.bf16.msra.mxu0 0
      %1077 = vmatpush.bf16.msra.mxu0 0
      %1078 = vmatpush.bf16.msra.mxu0 %v1069
      %1079 = vmatmul.bf16.gmra.mxu0 %v1066
      %v1080 = vpop.f32.mrf.mxu0
      %v1081 = vadd.f32 0.0, %v1080
      %v1082 = vpop.f32.mrf.mxu0
      %1083 = vdwg.mxu0
      %v1085 = vsel %vm864, %v1039, 0
      %v1088 = vsel %vm1048, %v1043, 0
      %1090 = vmatpush.bf16.msra.mxu0 0
      %1091 = vmatpush.bf16.msra.mxu0 0
      %1092 = vmatpush.bf16.msra.mxu0 0
      %1093 = vmatpush.bf16.msra.mxu0 0
      %1094 = vmatpush.bf16.msra.mxu0 0
      %1095 = vmatpush.bf16.msra.mxu0 0
      %1096 = vmatpush.bf16.msra.mxu0 0
      %1097 = vmatpush.bf16.msra.mxu0 %v1088
      %1098 = vmatmul.bf16.gmra.mxu0 %v1085
      %v1099 = vpop.f32.mrf.mxu0
      %v1100 = vadd.f32 0.0, %v1099
      %v1101 = vpop.f32.mrf.mxu0
      %1102 = vdwg.mxu0
      %v1104 = vsel %vm864, %v1040, 0
      %v1107 = vsel %vm1048, %v1044, 0
      %1109 = vmatpush.bf16.msra.mxu0 0
      %1110 = vmatpush.bf16.msra.mxu0 0
      %1111 = vmatpush.bf16.msra.mxu0 0
      %1112 = vmatpush.bf16.msra.mxu0 0
      %1113 = vmatpush.bf16.msra.mxu0 0
      %1114 = vmatpush.bf16.msra.mxu0 0
      %1115 = vmatpush.bf16.msra.mxu0 0
      %1116 = vmatpush.bf16.msra.mxu0 %v1107
      %1117 = vmatmul.bf16.gmra.mxu0 %v1104
      %v1118 = vpop.f32.mrf.mxu0
      %v1119 = vadd.f32 0.0, %v1118
      %v1120 = vpop.f32.mrf.mxu0
      %1121 = vdwg.mxu0
      %v1122 = vpack.c.bf16 %v1062, %v1062
      %v1123 = vpack.c.bf16 %v1081, %v1081
      %v1124 = vpack.c.bf16 %v1100, %v1100
      %v1125 = vpack.c.bf16 %v1119, %v1119
      %v1126 = vld [vmem:[%s7] sm:$0xf]
      %v1127 = vld [vmem:[%s7 + $0x4] sm:$0xf]
      %v1128 = vld [vmem:[%s7 + $0x8] sm:$0xf]
      %v1129 = vld [vmem:[%s7 + $0xc] sm:$0xf]
      %v1131 = vsel %vm864, %v1122, 0
      %v1134 = vsel %vm1048, %v1126, 0
      %1136 = vmatpush.bf16.msra.mxu0 0
      %1137 = vmatpush.bf16.msra.mxu0 0
      %1138 = vmatpush.bf16.msra.mxu0 0
      %1139 = vmatpush.bf16.msra.mxu0 0
      %1140 = vmatpush.bf16.msra.mxu0 0
      %1141 = vmatpush.bf16.msra.mxu0 0
      %1142 = vmatpush.bf16.msra.mxu0 0
      %1143 = vmatpush.bf16.msra.mxu0 %v1134
      %1144 = vmatmul.bf16.gmra.mxu0 %v1131
      %v1145 = vpop.f32.mrf.mxu0
      %v1146 = vadd.f32 0.0, %v1145
      %v1147 = vpop.f32.mrf.mxu0
      %1148 = vdwg.mxu0
      %v1150 = vsel %vm864, %v1123, 0
      %v1153 = vsel %vm1048, %v1127, 0
      %1155 = vmatpush.bf16.msra.mxu0 0
      %1156 = vmatpush.bf16.msra.mxu0 0
      %1157 = vmatpush.bf16.msra.mxu0 0
      %1158 = vmatpush.bf16.msra.mxu0 0
      %1159 = vmatpush.bf16.msra.mxu0 0
      %1160 = vmatpush.bf16.msra.mxu0 0
      %1161 = vmatpush.bf16.msra.mxu0 0
      %1162 = vmatpush.bf16.msra.mxu0 %v1153
      %1163 = vmatmul.bf16.gmra.mxu0 %v1150
      %v1164 = vpop.f32.mrf.mxu0
      %v1165 = vadd.f32 0.0, %v1164
      %v1166 = vpop.f32.mrf.mxu0
      %1167 = vdwg.mxu0
      %v1169 = vsel %vm864, %v1124, 0
      %v1172 = vsel %vm1048, %v1128, 0
      %1174 = vmatpush.bf16.msra.mxu0 0
      %1175 = vmatpush.bf16.msra.mxu0 0
      %1176 = vmatpush.bf16.msra.mxu0 0
      %1177 = vmatpush.bf16.msra.mxu0 0
      %1178 = vmatpush.bf16.msra.mxu0 0
      %1179 = vmatpush.bf16.msra.mxu0 0
      %1180 = vmatpush.bf16.msra.mxu0 0
      %1181 = vmatpush.bf16.msra.mxu0 %v1172
      %1182 = vmatmul.bf16.gmra.mxu0 %v1169
      %v1183 = vpop.f32.mrf.mxu0
      %v1184 = vadd.f32 0.0, %v1183
      %v1185 = vpop.f32.mrf.mxu0
      %1186 = vdwg.mxu0
      %v1188 = vsel %vm864, %v1125, 0
      %v1191 = vsel %vm1048, %v1129, 0
      %1193 = vmatpush.bf16.msra.mxu0 0
      %1194 = vmatpush.bf16.msra.mxu0 0
      %1195 = vmatpush.bf16.msra.mxu0 0
      %1196 = vmatpush.bf16.msra.mxu0 0
      %1197 = vmatpush.bf16.msra.mxu0 0
      %1198 = vmatpush.bf16.msra.mxu0 0
      %1199 = vmatpush.bf16.msra.mxu0 0
      %1200 = vmatpush.bf16.msra.mxu0 %v1191
      %1201 = vmatmul.bf16.gmra.mxu0 %v1188
      %v1202 = vpop.f32.mrf.mxu0
      %v1203 = vadd.f32 0.0, %v1202
      %v1204 = vpop.f32.mrf.mxu0
      %1205 = vdwg.mxu0
      %v1206 = vsel %vm496, %v1146, 0.0
      %v1207 = vsel %vm496, %v1165, 0.0
      %v1208 = vadd.f32 %v1206, %v1207
      %v1209 = vsel %vm496, %v1184, 0.0
      %v1210 = vadd.f32 %v1208, %v1209
      %v1211 = vsel %vm496, %v1203, 0.0
      %v1212 = vadd.f32 %v1210, %v1211
      %v1213 = vld [vmem:[%s8] sm:$0x1]
      %v1215 = vperm.slane %v1213, 0
      %v1217 = vadd.f32 %v1212, %v1215
      %v1218 = vadd.f32 %v448, %v1217
      %v1219 = vld [vmem:[%s9] sm:$0x1]
      %v1220 = vld [vmem:[%s10] sm:$0x1]
      %v1221 = vsel %vm496, %v1218, 0.0
      %1222 = vadd.xlane.f32.xlu0 %v1221
      %v1223 = vpop.xlane.xlu0 %1222
      %v1224 = vrcp.pop 32.0
      %v1225 = vmul.f32 32.0, %v1224
      %v1226 = vsub.f32 1.0, %v1225
      %v1227 = vmul.f32 %v1224, %v1226
      %v1228 = vadd.f32 %v1224, %v1227
      %vm1229 = vweird.f32 %v1224
      %v1230 = vsel %vm1229, %v1224, %v1228
      %v1231 = vmul.f32 %v1223, %v1230
      %v1232 = vsub.f32 %v1218, %v1231
      %v1233 = vmul.f32 %v1232, %v1232
      %v1234 = vsel %vm496, %v1233, 0.0
      %1235 = vadd.xlane.f32.xlu0 %v1234
      %v1236 = vpop.xlane.xlu0 %1235
      %v1237 = vmul.f32 %v1236, %v1230
      %v1238 = vadd.f32 %v1237, 1e-05
      %v1239 = vrsqrt.pop %v1238
      %v1240 = vmul.f32 %v1239, %v1238
      %v1241 = vmul.f32 %v1240, %v1239
      %v1242 = vmul.f32 0.5, %v1241
      %v1243 = vsub.f32 1.5, %v1242
      %v1244 = vmul.f32 %v1239, %v1243
      %vm1245 = vweird.f32 %v1238
      %vm1246 = vweird.f32 %v1239
      %vm1247 = vmor %vm1245, %vm1246
      %v1248 = vsel %vm1247, %v1239, %v1244
      %v1249 = vmul.f32 %v1232, %v1248
      %v1251 = vperm.slane %v1219, 0
      %v1253 = vmul.f32 %v1249, %v1251
      %v1255 = vperm.slane %v1220, 0
      %v1257 = vadd.f32 %v1253, %v1255
      %1258 = vst.msk [vmem:[%s446] sm:$0xff] %vm496, %v1257
      %p1259 = scmp.lt.s32.totalorder %s26, 1
      %s1260 = scalar_select %p1259, %s26, 1
      %p1261 = scmp.lt.s32.totalorder %s27, 0
      %s1262 = scalar_select %p1261, %s27, 0
      %s1263 = sadd.s32 %s1262, %s1260
      %s1264 = smul.addr %s1263, 8
      %s1265 = scalar_lea.vmem %s11, %s1264
      // Predicated region
      $region65: #{decoder_forward.9} parent=63 // pred_check
        %p1266 = pneg %p302
      $region66: #{decoder_forward.9} parent=63 // pred_check_branch
        %1268 = sbr.rel (%p1266) target = $region68
      $region67: #{decoder_forward.9} parent=63 // pred_region
        _
      $region68: #{decoder_forward.9} parent=63 // pred_fallthru
        _
    $region64: #{decoder_forward.9} parent=5 // pred_fallthru
      _
    %p1269 = scmp.le.s32.totalorder 2, %s17
    // Predicated region
    $region69: #{decoder_forward.9} parent=5 // pred_check
      %p1270 = pneg %p1269
    $region70: #{decoder_forward.9} parent=5 // pred_check_branch
      %1272 = sbr.rel (%p1270) target = $region72
    $region71: #{decoder_forward.9} parent=5 // pred_region
      %s1273 = ssub.s32 %s17, 2
      // Predicated region
      $region73: #{decoder_forward.9} parent=71 // pred_check
        %p1274 = pneg %p308
      $region74: #{decoder_forward.9} parent=71 // pred_check_branch
        %1276 = sbr.rel (%p1274) target = $region76
      $region75: #{decoder_forward.9} parent=71 // pred_region
        %p1277 = scmp.lt.s32.totalorder %s28, 1
        %s1278 = scalar_select %p1277, %s28, 1
        %p1279 = scmp.lt.s32.totalorder %s29, 0
        %s1280 = scalar_select %p1279, %s29, 0
        %s1281 = sadd.s32 %s1280, %s1278
        %s1282 = smul.addr %s1281, 8
        %s1283 = scalar_lea.vmem %s11, %s1282
      $region76: #{decoder_forward.9} parent=71 // pred_fallthru
        _
    $region72: #{decoder_forward.9} parent=5 // pred_fallthru
      _
  $region6: #{decoder_forward.9} parent=0 // loop_footer
    %s21 = sadd.s32 1, %s17
  $region7: #{decoder_forward.9} parent=0 // loop_footer_branch
    %16 = sbr.rel target = $region3
  $region8: #{decoder_forward.9} parent=0 // loop_exit
    _

// kernel: decoder_forward.8
$region0: #{decoder_forward.8}
  #allocation0 [shape = 'u32[]', space=smem, size = 0x4, offset = 0x4, fixed_abs, tag = 'smem constant byte address 0x4 - core index']
  #allocation1 [shape = 'u32[72,128]{1,0:T(1,128)}', space=vmem, size = 0x9000, scoped, tag = 'internal scratch']
  %s0 = inlined_call_operand.vmem [shape: f32[2,8,32], index: 0, kind: input, shape index: {}]
  %s1 = inlined_call_operand.vmem [shape: f32[8,8], index: 1, kind: input, shape index: {}]
  %s2 = inlined_call_operand.vmem [shape: bf16[4,32,8], index: 2, kind: input, shape index: {}]
  %s3 = inlined_call_operand.vmem [shape: f32[4,1,8], index: 3, kind: input, shape index: {}]
  %s4 = inlined_call_operand.vmem [shape: bf16[8,32,8], index: 4, kind: input, shape index: {}]
  %s5 = inlined_call_operand.vmem [shape: f32[8,1,8], index: 5, kind: input, shape index: {}]
  %s6 = inlined_call_operand.vmem [shape: bf16[4,8,32], index: 6, kind: input, shape index: {}]
  %s7 = inlined_call_operand.vmem [shape: f32[1,32], index: 7, kind: input, shape index: {}]
  %s8 = inlined_call_operand.vmem [shape: f32[1,32], index: 8, kind: input, shape index: {}]
  %s9 = inlined_call_operand.vmem [shape: f32[1,32], index: 9, kind: input, shape index: {}]
  %s10 = inlined_call_operand.vmem [shape: f32[2,8,32], index: 10, kind: output, shape index: {}]
  %s11 = sld [smem:[#allocation0]]
  $region73: #{decoder_forward.8} parent=0
    _
  %s13 = ssub.s32 1, %s11
  %s14 = scalar_select 0, %s13, %s11
  loop: start=0, step=1, limit=4
  $region2: #{decoder_forward.8} parent=0 // loop_pre_header
    _
  $region3: #{decoder_forward.8} parent=0 // loop_header
    %s16 = sphi 0, %s20
    %p17 = scmp.ge.s32.totalorder %s16, 4
    %s23 = sphi 0, %s35
    %s24 = sphi 0, %s31
    %s25 = sphi 0, %s23
    %s26 = sphi 0, %s24
    %s27 = sphi 0, %s25
    %s28 = sphi 0, %s26
    %s38 = sphi 0, %s40
    %s41 = sphi 0, %s38
    %s42 = sphi 0, %s41
    %s58 = sphi 0, %s42
    %s64 = sphi 0, %s66
    %s67 = sphi 0, %s64
    %s68 = sphi 0, %s67
    %s84 = sphi 0, %s68
    %s88 = sphi 0, %s88
    %s90 = sphi 0, %s88
    %s91 = sphi 0, %s90
    %s105 = sphi 0, %s91
    %s109 = sphi 0, %s109
    %s111 = sphi 0, %s109
    %s112 = sphi 0, %s111
    %s126 = sphi 0, %s112
    %s130 = sphi 0, %s130
    %s132 = sphi 0, %s130
    %s133 = sphi 0, %s132
    %s147 = sphi 0, %s133
    %s151 = sphi 0, %s151
    %s153 = sphi 0, %s151
    %s154 = sphi 0, %s153
    %s168 = sphi 0, %s154
    %s172 = sphi 0, %s172
    %s174 = sphi 0, %s172
    %s175 = sphi 0, %s174
    %s189 = sphi 0, %s175
    %s193 = sphi 0, %s193
    %s195 = sphi 0, %s193
    %s196 = sphi 0, %s195
    %s210 = sphi 0, %s196
    %s214 = sphi 0, %s214
    %s216 = sphi 0, %s214
    %s217 = sphi 0, %s216
    %s231 = sphi 0, %s217
    %s235 = sphi 0, %s235
    %s237 = sphi 0, %s235
    %s238 = sphi 0, %s237
    %s252 = sphi 0, %s238
    %s260 = sphi 0, %s262
    %s263 = sphi 0, %s260
    %s264 = sphi 0, %s263
    %s280 = sphi 0, %s264
  $region4: #{decoder_forward.8} parent=0 // loop_header_branch
    %19 = sbr.rel (%p17) target = $region8
  $region5: #{decoder_forward.8} parent=0 // loop_body
    %s21 = ssub.s32 %s16, 1
    %s22 = ssub.s32 %s16, 2
    %s29 = sadd.s32 1, %s24
    %p30 = scmp.ge.s32.totalorder %s29, 1
    %s31 = scalar_select %p30, 0, %s29
    %s32 = sadd.s32 1, %s23
    %s33 = scalar_select %p30, %s32, %s23
    %p34 = scmp.ge.s32.totalorder %s33, 2
    %s35 = scalar_select %p34, 0, %s33
    %s36 = ssub.s32 %s23, %s35
    %p37 = scmp.eq.s32.totalorder %s36, 0
    %s39 = sadd.s32 %s38, 1
    %s40 = scalar_select %p37, %s38, %s39
    %p43 = pneg %p37
    %p44 = scmp.eq.s32.totalorder %s16, 1
    %p45 = por %p43, %p44
    %p46 = scmp.ne.s32.totalorder %s38, %s41
    %p47 = scmp.eq.s32.totalorder %s16, 0
    %p48 = por %p46, %p47
    %p49 = scmp.ne.s32.totalorder %s38, %s41
    %p50 = scmp.eq.s32.totalorder %s21, 1
    %p51 = por %p49, %p50
    %p52 = scmp.ne.s32.totalorder %s41, %s42
    %p53 = scmp.eq.s32.totalorder %s21, 0
    %p54 = por %p52, %p53
    %p55 = scmp.ne.s32.totalorder %s41, %s42
    %p56 = scmp.eq.s32.totalorder %s22, 1
    %p57 = por %p55, %p56
    %p59 = scmp.ne.s32.totalorder %s42, %s58
    %p60 = scmp.eq.s32.totalorder %s22, 0
    %p61 = por %p59, %p60
    %s62 = ssub.s32 %s24, %s31
    %p63 = scmp.eq.s32.totalorder %s62, 0
    %s65 = sadd.s32 %s64, 1
    %s66 = scalar_select %p63, %s64, %s65
    %p69 = pneg %p63
    %p70 = scmp.eq.s32.totalorder %s16, 1
    %p71 = por %p69, %p70
    %p72 = scmp.ne.s32.totalorder %s64, %s67
    %p73 = scmp.eq.s32.totalorder %s16, 0
    %p74 = por %p72, %p73
    %p75 = scmp.ne.s32.totalorder %s64, %s67
    %p76 = scmp.eq.s32.totalorder %s21, 1
    %p77 = por %p75, %p76
    %p78 = scmp.ne.s32.totalorder %s67, %s68
    %p79 = scmp.eq.s32.totalorder %s21, 0
    %p80 = por %p78, %p79
    %p81 = scmp.ne.s32.totalorder %s67, %s68
    %p82 = scmp.eq.s32.totalorder %s22, 1
    %p83 = por %p81, %p82
    %p85 = scmp.ne.s32.totalorder %s68, %s84
    %p86 = scmp.eq.s32.totalorder %s22, 0
    %p87 = por %p85, %p86
    %s89 = sadd.s32 %s88, 1
    %p92 = scmp.eq.s32.totalorder %s16, 1
    %p93 = scmp.ne.s32.totalorder %s88, %s90
    %p94 = scmp.eq.s32.totalorder %s16, 0
    %p95 = por %p93, %p94
    %p96 = scmp.ne.s32.totalorder %s88, %s90
    %p97 = scmp.eq.s32.totalorder %s21, 1
    %p98 = por %p96, %p97
    %p99 = scmp.ne.s32.totalorder %s90, %s91
    %p100 = scmp.eq.s32.totalorder %s21, 0
    %p101 = por %p99, %p100
    %p102 = scmp.ne.s32.totalorder %s90, %s91
    %p103 = scmp.eq.s32.totalorder %s22, 1
    %p104 = por %p102, %p103
    %p106 = scmp.ne.s32.totalorder %s91, %s105
    %p107 = scmp.eq.s32.totalorder %s22, 0
    %p108 = por %p106, %p107
    %s110 = sadd.s32 %s109, 1
    %p113 = scmp.eq.s32.totalorder %s16, 1
    %p114 = scmp.ne.s32.totalorder %s109, %s111
    %p115 = scmp.eq.s32.totalorder %s16, 0
    %p116 = por %p114, %p115
    %p117 = scmp.ne.s32.totalorder %s109, %s111
    %p118 = scmp.eq.s32.totalorder %s21, 1
    %p119 = por %p117, %p118
    %p120 = scmp.ne.s32.totalorder %s111, %s112
    %p121 = scmp.eq.s32.totalorder %s21, 0
    %p122 = por %p120, %p121
    %p123 = scmp.ne.s32.totalorder %s111, %s112
    %p124 = scmp.eq.s32.totalorder %s22, 1
    %p125 = por %p123, %p124
    %p127 = scmp.ne.s32.totalorder %s112, %s126
    %p128 = scmp.eq.s32.totalorder %s22, 0
    %p129 = por %p127, %p128
    %s131 = sadd.s32 %s130, 1
    %p134 = scmp.eq.s32.totalorder %s16, 1
    %p135 = scmp.ne.s32.totalorder %s130, %s132
    %p136 = scmp.eq.s32.totalorder %s16, 0
    %p137 = por %p135, %p136
    %p138 = scmp.ne.s32.totalorder %s130, %s132
    %p139 = scmp.eq.s32.totalorder %s21, 1
    %p140 = por %p138, %p139
    %p141 = scmp.ne.s32.totalorder %s132, %s133
    %p142 = scmp.eq.s32.totalorder %s21, 0
    %p143 = por %p141, %p142
    %p144 = scmp.ne.s32.totalorder %s132, %s133
    %p145 = scmp.eq.s32.totalorder %s22, 1
    %p146 = por %p144, %p145
    %p148 = scmp.ne.s32.totalorder %s133, %s147
    %p149 = scmp.eq.s32.totalorder %s22, 0
    %p150 = por %p148, %p149
    %s152 = sadd.s32 %s151, 1
    %p155 = scmp.eq.s32.totalorder %s16, 1
    %p156 = scmp.ne.s32.totalorder %s151, %s153
    %p157 = scmp.eq.s32.totalorder %s16, 0
    %p158 = por %p156, %p157
    %p159 = scmp.ne.s32.totalorder %s151, %s153
    %p160 = scmp.eq.s32.totalorder %s21, 1
    %p161 = por %p159, %p160
    %p162 = scmp.ne.s32.totalorder %s153, %s154
    %p163 = scmp.eq.s32.totalorder %s21, 0
    %p164 = por %p162, %p163
    %p165 = scmp.ne.s32.totalorder %s153, %s154
    %p166 = scmp.eq.s32.totalorder %s22, 1
    %p167 = por %p165, %p166
    %p169 = scmp.ne.s32.totalorder %s154, %s168
    %p170 = scmp.eq.s32.totalorder %s22, 0
    %p171 = por %p169, %p170
    %s173 = sadd.s32 %s172, 1
    %p176 = scmp.eq.s32.totalorder %s16, 1
    %p177 = scmp.ne.s32.totalorder %s172, %s174
    %p178 = scmp.eq.s32.totalorder %s16, 0
    %p179 = por %p177, %p178
    %p180 = scmp.ne.s32.totalorder %s172, %s174
    %p181 = scmp.eq.s32.totalorder %s21, 1
    %p182 = por %p180, %p181
    %p183 = scmp.ne.s32.totalorder %s174, %s175
    %p184 = scmp.eq.s32.totalorder %s21, 0
    %p185 = por %p183, %p184
    %p186 = scmp.ne.s32.totalorder %s174, %s175
    %p187 = scmp.eq.s32.totalorder %s22, 1
    %p188 = por %p186, %p187
    %p190 = scmp.ne.s32.totalorder %s175, %s189
    %p191 = scmp.eq.s32.totalorder %s22, 0
    %p192 = por %p190, %p191
    %s194 = sadd.s32 %s193, 1
    %p197 = scmp.eq.s32.totalorder %s16, 1
    %p198 = scmp.ne.s32.totalorder %s193, %s195
    %p199 = scmp.eq.s32.totalorder %s16, 0
    %p200 = por %p198, %p199
    %p201 = scmp.ne.s32.totalorder %s193, %s195
    %p202 = scmp.eq.s32.totalorder %s21, 1
    %p203 = por %p201, %p202
    %p204 = scmp.ne.s32.totalorder %s195, %s196
    %p205 = scmp.eq.s32.totalorder %s21, 0
    %p206 = por %p204, %p205
    %p207 = scmp.ne.s32.totalorder %s195, %s196
    %p208 = scmp.eq.s32.totalorder %s22, 1
    %p209 = por %p207, %p208
    %p211 = scmp.ne.s32.totalorder %s196, %s210
    %p212 = scmp.eq.s32.totalorder %s22, 0
    %p213 = por %p211, %p212
    %s215 = sadd.s32 %s214, 1
    %p218 = scmp.eq.s32.totalorder %s16, 1
    %p219 = scmp.ne.s32.totalorder %s214, %s216
    %p220 = scmp.eq.s32.totalorder %s16, 0
    %p221 = por %p219, %p220
    %p222 = scmp.ne.s32.totalorder %s214, %s216
    %p223 = scmp.eq.s32.totalorder %s21, 1
    %p224 = por %p222, %p223
    %p225 = scmp.ne.s32.totalorder %s216, %s217
    %p226 = scmp.eq.s32.totalorder %s21, 0
    %p227 = por %p225, %p226
    %p228 = scmp.ne.s32.totalorder %s216, %s217
    %p229 = scmp.eq.s32.totalorder %s22, 1
    %p230 = por %p228, %p229
    %p232 = scmp.ne.s32.totalorder %s217, %s231
    %p233 = scmp.eq.s32.totalorder %s22, 0
    %p234 = por %p232, %p233
    %s236 = sadd.s32 %s235, 1
    %p239 = scmp.eq.s32.totalorder %s16, 1
    %p240 = scmp.ne.s32.totalorder %s235, %s237
    %p241 = scmp.eq.s32.totalorder %s16, 0
    %p242 = por %p240, %p241
    %p243 = scmp.ne.s32.totalorder %s235, %s237
    %p244 = scmp.eq.s32.totalorder %s21, 1
    %p245 = por %p243, %p244
    %p246 = scmp.ne.s32.totalorder %s237, %s238
    %p247 = scmp.eq.s32.totalorder %s21, 0
    %p248 = por %p246, %p247
    %p249 = scmp.ne.s32.totalorder %s237, %s238
    %p250 = scmp.eq.s32.totalorder %s22, 1
    %p251 = por %p249, %p250
    %p253 = scmp.ne.s32.totalorder %s238, %s252
    %p254 = scmp.eq.s32.totalorder %s22, 0
    %p255 = por %p253, %p254
    %s256 = ssub.s32 %s23, %s35
    %s257 = ssub.s32 %s24, %s31
    %s258 = sor.u32 %s256, %s257
    %p259 = scmp.eq.s32.totalorder %s258, 0
    %s261 = sadd.s32 %s260, 1
    %s262 = scalar_select %p259, %s260, %s261
    %p265 = pneg %p259
    %p266 = scmp.eq.s32.totalorder %s16, 1
    %p267 = por %p265, %p266
    %p268 = scmp.ne.s32.totalorder %s260, %s263
    %p269 = scmp.eq.s32.totalorder %s16, 0
    %p270 = por %p268, %p269
    %p271 = scmp.ne.s32.totalorder %s260, %s263
    %p272 = scmp.eq.s32.totalorder %s21, 1
    %p273 = por %p271, %p272
    %p274 = scmp.ne.s32.totalorder %s263, %s264
    %p275 = scmp.eq.s32.totalorder %s21, 0
    %p276 = por %p274, %p275
    %p277 = scmp.ne.s32.totalorder %s263, %s264
    %p278 = scmp.eq.s32.totalorder %s22, 1
    %p279 = por %p277, %p278
    %p281 = scmp.ne.s32.totalorder %s264, %s280
    %p282 = scmp.eq.s32.totalorder %s22, 0
    %p283 = por %p281, %p282
    %p284 = scmp.le.s32.totalorder 1, %s16
    %p285 = scmp.lt.s32.totalorder %s16, 3
    %p286 = pnand %p284, %p285
    %p287 = pneg %p286
    // Predicated region
    $region9: #{decoder_forward.8} parent=5 // pred_check
      _
    $region10: #{decoder_forward.8} parent=5 // pred_check_branch
      %289 = sbr.rel (%p286) target = $region12
    $region11: #{decoder_forward.8} parent=5 // pred_region
      %s290 = ssub.s32 %s16, 1
      // Predicated region
      $region13: #{decoder_forward.8} parent=11 // pred_check
        %p291 = pneg %p80
      $region14: #{decoder_forward.8} parent=11 // pred_check_branch
        %293 = sbr.rel (%p291) target = $region16
      $region15: #{decoder_forward.8} parent=11 // pred_region
        %p294 = scmp.lt.s32.totalorder %s26, 0
        %s295 = scalar_select %p294, %s26, 0
        %s296 = smul.addr %s295, 8
        %s297 = scalar_lea.vmem %s1, %s296
      $region16: #{decoder_forward.8} parent=11 // pred_fallthru
        _
      // Predicated region
      $region17: #{decoder_forward.8} parent=11 // pred_check
        %p298 = pneg %p101
      $region18: #{decoder_forward.8} parent=11 // pred_check_branch
        %300 = sbr.rel (%p298) target = $region20
      $region19: #{decoder_forward.8} parent=11 // pred_region
        _
      $region20: #{decoder_forward.8} parent=11 // pred_fallthru
        _
      // Predicated region
      $region21: #{decoder_forward.8} parent=11 // pred_check
        %p301 = pneg %p122
      $region22: #{decoder_forward.8} parent=11 // pred_check_branch
        %303 = sbr.rel (%p301) target = $region24
      $region23: #{decoder_forward.8} parent=11 // pred_region
        _
      $region24: #{decoder_forward.8} parent=11 // pred_fallthru
        _
      // Predicated region
      $region25: #{decoder_forward.8} parent=11 // pred_check
        %p304 = pneg %p143
      $region26: #{decoder_forward.8} parent=11 // pred_check_branch
        %306 = sbr.rel (%p304) target = $region28
      $region27: #{decoder_forward.8} parent=11 // pred_region
        _
      $region28: #{decoder_forward.8} parent=11 // pred_fallthru
        _
      // Predicated region
      $region29: #{decoder_forward.8} parent=11 // pred_check
        %p307 = pneg %p164
      $region30: #{decoder_forward.8} parent=11 // pred_check_branch
        %309 = sbr.rel (%p307) target = $region32
      $region31: #{decoder_forward.8} parent=11 // pred_region
        _
      $region32: #{decoder_forward.8} parent=11 // pred_fallthru
        _
      // Predicated region
      $region33: #{decoder_forward.8} parent=11 // pred_check
        %p310 = pneg %p185
      $region34: #{decoder_forward.8} parent=11 // pred_check_branch
        %312 = sbr.rel (%p310) target = $region36
      $region35: #{decoder_forward.8} parent=11 // pred_region
        _
      $region36: #{decoder_forward.8} parent=11 // pred_fallthru
        _
      // Predicated region
      $region37: #{decoder_forward.8} parent=11 // pred_check
        %p313 = pneg %p206
      $region38: #{decoder_forward.8} parent=11 // pred_check_branch
        %315 = sbr.rel (%p313) target = $region40
      $region39: #{decoder_forward.8} parent=11 // pred_region
        _
      $region40: #{decoder_forward.8} parent=11 // pred_fallthru
        _
      // Predicated region
      $region41: #{decoder_forward.8} parent=11 // pred_check
        %p316 = pneg %p227
      $region42: #{decoder_forward.8} parent=11 // pred_check_branch
        %318 = sbr.rel (%p316) target = $region44
      $region43: #{decoder_forward.8} parent=11 // pred_region
        _
      $region44: #{decoder_forward.8} parent=11 // pred_fallthru
        _
      // Predicated region
      $region45: #{decoder_forward.8} parent=11 // pred_check
        %p319 = pneg %p248
      $region46: #{decoder_forward.8} parent=11 // pred_check_branch
        %321 = sbr.rel (%p319) target = $region48
      $region47: #{decoder_forward.8} parent=11 // pred_region
        _
      $region48: #{decoder_forward.8} parent=11 // pred_fallthru
        _
    $region12: #{decoder_forward.8} parent=5 // pred_fallthru
      _
    %p322 = scmp.lt.s32.totalorder %s16, 2
    // Predicated region
    $region49: #{decoder_forward.8} parent=5 // pred_check
      %p323 = pneg %p322
    $region50: #{decoder_forward.8} parent=5 // pred_check_branch
      %325 = sbr.rel (%p323) target = $region52
    $region51: #{decoder_forward.8} parent=5 // pred_region
      // Predicated region
      $region53: #{decoder_forward.8} parent=51 // pred_check
        %p326 = pneg %p48
      $region54: #{decoder_forward.8} parent=51 // pred_check_branch
        %328 = sbr.rel (%p326) target = $region56
      $region55: #{decoder_forward.8} parent=51 // pred_region
        %p329 = scmp.lt.s32.totalorder %s23, 1
        %s330 = scalar_select %p329, %s23, 1
        %s331 = smul.addr %s330, 8
        %s332 = scalar_lea.vmem %s0, %s331
      $region56: #{decoder_forward.8} parent=51 // pred_fallthru
        _
    $region52: #{decoder_forward.8} parent=5 // pred_fallthru
      _
    %p333 = scmp.le.s32.totalorder 1, %s16
    %p334 = scmp.lt.s32.totalorder %s16, 3
    %p335 = pnand %p333, %p334
    %p336 = pneg %p335
    // Predicated region
    $region57: #{decoder_forward.8} parent=5 // pred_check
      _
    $region58: #{decoder_forward.8} parent=5 // pred_check_branch
      %338 = sbr.rel (%p335) target = $region60
    $region59: #{decoder_forward.8} parent=5 // pred_region
      %s339 = ssub.s32 %s16, 1
      %p340 = scmp.lt.s32.totalorder %s25, 1
      %s341 = scalar_select %p340, %s25, 1
      %s342 = smul.addr %s341, 8
      %s343 = scalar_lea.vmem %s0, %s342
      %p344 = pneg %p54
      %p345 = pneg %p51
      %p346 = scmp.lt.s32.totalorder %s26, 0
      %s347 = scalar_select %p346, %s26, 0
      %s348 = smul.addr %s347, 8
      %s349 = scalar_lea.vmem %s1, %s348
      %p350 = pneg %p80
      %p351 = pneg %p77
      %p352 = pneg %p101
      %p353 = pneg %p98
      %p354 = pneg %p122
      %p355 = pneg %p119
      %p356 = pneg %p143
      %p357 = pneg %p140
      %p358 = pneg %p164
      %p359 = pneg %p161
      %p360 = pneg %p185
      %p361 = pneg %p182
      %p362 = pneg %p206
      %p363 = pneg %p203
      %p364 = pneg %p227
      %p365 = pneg %p224
      %p366 = pneg %p248
      %p367 = pneg %p245
      %p368 = pneg %p276
      %p369 = pneg %p273
      %p370 = scmp.lt.s32.totalorder %s25, 1
      %s371 = scalar_select %p370, %s25, 1
      %p372 = scmp.lt.s32.totalorder %s26, 0
      %s373 = scalar_select %p372, %s26, 0
      %s374 = sadd.s32 %s373, %s371
      %s375 = smul.addr %s374, 8
      %s376 = scalar_lea.vmem %s10, %s375
      %p377 = scmp.lt.s32.totalorder %s25, 1
      %s378 = scalar_select %p377, %s25, 1
      %s379 = smul.addr %s378, 8
      %s380 = scalar_lea.vmem %s0, %s379
      %p381 = scmp.lt.s32.totalorder %s26, 0
      %s382 = scalar_select %p381, %s26, 0
      %s383 = smul.addr %s382, 8
      %s384 = scalar_lea.vmem %s1, %s383
      %p385 = scmp.lt.s32.totalorder %s25, 1
      %s386 = scalar_select %p385, %s25, 1
      %p387 = scmp.lt.s32.totalorder %s26, 0
      %s388 = scalar_select %p387, %s26, 0
      %s389 = sadd.s32 %s388, %s386
      %s390 = smul.addr %s389, 8
      %s391 = scalar_lea.vmem %s10, %s390
      %v393 = vld [vmem:[%s380] sm:$0xff]
      %v394 = vpack.c.bf16 %v393, %v393
      %v395 = vld [vmem:[%s2] sm:$0xf]
      %v396 = vld [vmem:[%s2 + $0x4] sm:$0xf]
      %v397 = vld [vmem:[%s2 + $0x8] sm:$0xf]
      %v398 = vld [vmem:[%s2 + $0xc] sm:$0xf]
      %v399 = vld [vmem:[%s2 + $0x10] sm:$0xf]
      %v400 = vld [vmem:[%s2 + $0x14] sm:$0xf]
      %v401 = vld [vmem:[%s2 + $0x18] sm:$0xf]
      %v402 = vld [vmem:[%s2 + $0x1c] sm:$0xf]
      %v403 = vld [vmem:[%s2 + $0x20] sm:$0xf]
      %v404 = vld [vmem:[%s2 + $0x24] sm:$0xf]
      %v405 = vld [vmem:[%s2 + $0x28] sm:$0xf]
      %v406 = vld [vmem:[%s2 + $0x2c] sm:$0xf]
      %v407 = vld [vmem:[%s2 + $0x30] sm:$0xf]
      %v408 = vld [vmem:[%s2 + $0x34] sm:$0xf]
      %v409 = vld [vmem:[%s2 + $0x38] sm:$0xf]
      %v410 = vld [vmem:[%s2 + $0x3c] sm:$0xf]
      %v411 = vld [vmem:[%s3] sm:$0x1]
      %v412 = vld [vmem:[%s3 + $0x1] sm:$0x1]
      %v413 = vld [vmem:[%s3 + $0x2] sm:$0x1]
      %v414 = vld [vmem:[%s3 + $0x3] sm:$0x1]
      %v419 = vperm.slane %v411, 0
      %v420 = vperm.slane %v412, 0
      %v421 = vperm.slane %v413, 0
      %v422 = vperm.slane %v414, 0
      %v431 = vunpack.c.l.b16 %v395
      %v432 = vunpack.c.l.b16 %v396
      %v433 = vunpack.c.l.b16 %v397
      %v434 = vunpack.c.l.b16 %v398
      %v435 = vpack.c.b16 %v432, %v431
      %v436 = vpack.c.b16 %v434, %v433
      %vm439 = vcmask 261120
      %v441 = vsel %vm439, %v394, 0
      %443 = vmatpush.bf16.msra.mxu0 0
      %444 = vmatpush.bf16.msra.mxu0 0
      %445 = vmatpush.bf16.msra.mxu0 0
      %446 = vmatpush.bf16.msra.mxu0 0
      %447 = vmatpush.bf16.msra.mxu0 0
      %448 = vmatpush.bf16.msra.mxu0 0
      %449 = vmatpush.bf16.msra.mxu0 %v436
      %450 = vmatpush.bf16.msra.mxu0 %v435
      %451 = vmatmul.bf16.gmra.mxu0 %v441
      %v452 = vpop.f32.mrf.mxu0
      %v453 = vadd.f32 %v419, %v452
      %v454 = vpop.f32.mrf.mxu0
      %455 = vdwg.mxu0
      %v460 = vunpack.c.l.b16 %v399
      %v461 = vunpack.c.l.b16 %v400
      %v462 = vunpack.c.l.b16 %v401
      %v463 = vunpack.c.l.b16 %v402
      %v464 = vpack.c.b16 %v461, %v460
      %v465 = vpack.c.b16 %v463, %v462
      %468 = vmatpush.bf16.msra.mxu0 0
      %469 = vmatpush.bf16.msra.mxu0 0
      %470 = vmatpush.bf16.msra.mxu0 0
      %471 = vmatpush.bf16.msra.mxu0 0
      %472 = vmatpush.bf16.msra.mxu0 0
      %473 = vmatpush.bf16.msra.mxu0 0
      %474 = vmatpush.bf16.msra.mxu0 %v465
      %475 = vmatpush.bf16.msra.mxu0 %v464
      %476 = vmatmul.bf16.gmra.mxu0 %v441
      %v477 = vpop.f32.mrf.mxu0
      %v478 = vadd.f32 %v420, %v477
      %v479 = vpop.f32.mrf.mxu0
      %480 = vdwg.mxu0
      %v485 = vunpack.c.l.b16 %v403
      %v486 = vunpack.c.l.b16 %v404
      %v487 = vunpack.c.l.b16 %v405
      %v488 = vunpack.c.l.b16 %v406
      %v489 = vpack.c.b16 %v486, %v485
      %v490 = vpack.c.b16 %v488, %v487
      %493 = vmatpush.bf16.msra.mxu0 0
      %494 = vmatpush.bf16.msra.mxu0 0
      %495 = vmatpush.bf16.msra.mxu0 0
      %496 = vmatpush.bf16.msra.mxu0 0
      %497 = vmatpush.bf16.msra.mxu0 0
      %498 = vmatpush.bf16.msra.mxu0 0
      %499 = vmatpush.bf16.msra.mxu0 %v490
      %500 = vmatpush.bf16.msra.mxu0 %v489
      %501 = vmatmul.bf16.gmra.mxu0 %v441
      %v502 = vpop.f32.mrf.mxu0
      %v503 = vadd.f32 %v421, %v502
      %v504 = vpop.f32.mrf.mxu0
      %505 = vdwg.mxu0
      %v510 = vunpack.c.l.b16 %v407
      %v511 = vunpack.c.l.b16 %v408
      %v512 = vunpack.c.l.b16 %v409
      %v513 = vunpack.c.l.b16 %v410
      %v514 = vpack.c.b16 %v511, %v510
      %v515 = vpack.c.b16 %v513, %v512
      %518 = vmatpush.bf16.msra.mxu0 0
      %519 = vmatpush.bf16.msra.mxu0 0
      %520 = vmatpush.bf16.msra.mxu0 0
      %521 = vmatpush.bf16.msra.mxu0 0
      %522 = vmatpush.bf16.msra.mxu0 0
      %523 = vmatpush.bf16.msra.mxu0 0
      %524 = vmatpush.bf16.msra.mxu0 %v515
      %525 = vmatpush.bf16.msra.mxu0 %v514
      %526 = vmatmul.bf16.gmra.mxu0 %v441
      %v527 = vpop.f32.mrf.mxu0
      %v528 = vadd.f32 %v422, %v527
      %v529 = vpop.f32.mrf.mxu0
      %530 = vdwg.mxu0
      %v531 = vld [vmem:[%s4] sm:$0xf]
      %v532 = vld [vmem:[%s4 + $0x4] sm:$0xf]
      %v533 = vld [vmem:[%s4 + $0x8] sm:$0xf]
      %v534 = vld [vmem:[%s4 + $0xc] sm:$0xf]
      %v535 = vld [vmem:[%s4 + $0x10] sm:$0xf]
      %v536 = vld [vmem:[%s4 + $0x14] sm:$0xf]
      %v537 = vld [vmem:[%s4 + $0x18] sm:$0xf]
      %v538 = vld [vmem:[%s4 + $0x1c] sm:$0xf]
      %v539 = vld [vmem:[%s4 + $0x20] sm:$0xf]
      %v540 = vld [vmem:[%s4 + $0x24] sm:$0xf]
      %v541 = vld [vmem:[%s4 + $0x28] sm:$0xf]
      %v542 = vld [vmem:[%s4 + $0x2c] sm:$0xf]
      %v543 = vld [vmem:[%s4 + $0x30] sm:$0xf]
      %v544 = vld [vmem:[%s4 + $0x34] sm:$0xf]
      %v545 = vld [vmem:[%s4 + $0x38] sm:$0xf]
      %v546 = vld [vmem:[%s4 + $0x3c] sm:$0xf]
      %v547 = vld [vmem:[%s4 + $0x40] sm:$0xf]
      %v548 = vld [vmem:[%s4 + $0x44] sm:$0xf]
      %v549 = vld [vmem:[%s4 + $0x48] sm:$0xf]
      %v550 = vld [vmem:[%s4 + $0x4c] sm:$0xf]
      %v551 = vld [vmem:[%s4 + $0x50] sm:$0xf]
      %v552 = vld [vmem:[%s4 + $0x54] sm:$0xf]
      %v553 = vld [vmem:[%s4 + $0x58] sm:$0xf]
      %v554 = vld [vmem:[%s4 + $0x5c] sm:$0xf]
      %v555 = vld [vmem:[%s4 + $0x60] sm:$0xf]
      %v556 = vld [vmem:[%s4 + $0x64] sm:$0xf]
      %v557 = vld [vmem:[%s4 + $0x68] sm:$0xf]
      %v558 = vld [vmem:[%s4 + $0x6c] sm:$0xf]
      %v559 = vld [vmem:[%s4 + $0x70] sm:$0xf]
      %v560 = vld [vmem:[%s4 + $0x74] sm:$0xf]
      %v561 = vld [vmem:[%s4 + $0x78] sm:$0xf]
      %v562 = vld [vmem:[%s4 + $0x7c] sm:$0xf]
      %v563 = vld [vmem:[%s5] sm:$0x1]
      %v564 = vld [vmem:[%s5 + $0x1] sm:$0x1]
      %v565 = vld [vmem:[%s5 + $0x2] sm:$0x1]
      %v566 = vld [vmem:[%s5 + $0x3] sm:$0x1]
      %v567 = vld [vmem:[%s5 + $0x4] sm:$0x1]
      %v568 = vld [vmem:[%s5 + $0x5] sm:$0x1]
      %v569 = vld [vmem:[%s5 + $0x6] sm:$0x1]
      %v570 = vld [vmem:[%s5 + $0x7] sm:$0x1]
      %v579 = vperm.slane %v563, 0
      %v580 = vperm.slane %v564, 0
      %v581 = vperm.slane %v565, 0
      %v582 = vperm.slane %v566, 0
      %v583 = vperm.slane %v567, 0
      %v584 = vperm.slane %v568, 0
      %v585 = vperm.slane %v569, 0
      %v586 = vperm.slane %v570, 0
      %v599 = vunpack.c.l.b16 %v531
      %v600 = vunpack.c.l.b16 %v532
      %v601 = vunpack.c.l.b16 %v533
      %v602 = vunpack.c.l.b16 %v534
      %v603 = vpack.c.b16 %v600, %v599
      %v604 = vpack.c.b16 %v602, %v601
      %607 = vmatpush.bf16.msra.mxu0 0
      %608 = vmatpush.bf16.msra.mxu0 0
      %609 = vmatpush.bf16.msra.mxu0 0
      %610 = vmatpush.bf16.msra.mxu0 0
      %611 = vmatpush.bf16.msra.mxu0 0
      %612 = vmatpush.bf16.msra.mxu0 0
      %613 = vmatpush.bf16.msra.mxu0 %v604
      %614 = vmatpush.bf16.msra.mxu0 %v603
      %615 = vmatmul.bf16.gmra.mxu0 %v441
      %v616 = vpop.f32.mrf.mxu0
      %v617 = vadd.f32 %v579, %v616
      %v618 = vpop.f32.mrf.mxu0
      %619 = vdwg.mxu0
      %v624 = vunpack.c.l.b16 %v535
      %v625 = vunpack.c.l.b16 %v536
      %v626 = vunpack.c.l.b16 %v537
      %v627 = vunpack.c.l.b16 %v538
      %v628 = vpack.c.b16 %v625, %v624
      %v629 = vpack.c.b16 %v627, %v626
      %632 = vmatpush.bf16.msra.mxu0 0
      %633 = vmatpush.bf16.msra.mxu0 0
      %634 = vmatpush.bf16.msra.mxu0 0
      %635 = vmatpush.bf16.msra.mxu0 0
      %636 = vmatpush.bf16.msra.mxu0 0
      %637 = vmatpush.bf16.msra.mxu0 0
      %638 = vmatpush.bf16.msra.mxu0 %v629
      %639 = vmatpush.bf16.msra.mxu0 %v628
      %640 = vmatmul.bf16.gmra.mxu0 %v441
      %v641 = vpop.f32.mrf.mxu0
      %v642 = vadd.f32 %v580, %v641
      %v643 = vpop.f32.mrf.mxu0
      %644 = vdwg.mxu0
      %v649 = vunpack.c.l.b16 %v539
      %v650 = vunpack.c.l.b16 %v540
      %v651 = vunpack.c.l.b16 %v541
      %v652 = vunpack.c.l.b16 %v542
      %v653 = vpack.c.b16 %v650, %v649
      %v654 = vpack.c.b16 %v652, %v651
      %657 = vmatpush.bf16.msra.mxu0 0
      %658 = vmatpush.bf16.msra.mxu0 0
      %659 = vmatpush.bf16.msra.mxu0 0
      %660 = vmatpush.bf16.msra.mxu0 0
      %661 = vmatpush.bf16.msra.mxu0 0
      %662 = vmatpush.bf16.msra.mxu0 0
      %663 = vmatpush.bf16.msra.mxu0 %v654
      %664 = vmatpush.bf16.msra.mxu0 %v653
      %665 = vmatmul.bf16.gmra.mxu0 %v441
      %v666 = vpop.f32.mrf.mxu0
      %v667 = vadd.f32 %v581, %v666
      %v668 = vpop.f32.mrf.mxu0
      %669 = vdwg.mxu0
      %v674 = vunpack.c.l.b16 %v543
      %v675 = vunpack.c.l.b16 %v544
      %v676 = vunpack.c.l.b16 %v545
      %v677 = vunpack.c.l.b16 %v546
      %v678 = vpack.c.b16 %v675, %v674
      %v679 = vpack.c.b16 %v677, %v676
      %682 = vmatpush.bf16.msra.mxu0 0
      %683 = vmatpush.bf16.msra.mxu0 0
      %684 = vmatpush.bf16.msra.mxu0 0
      %685 = vmatpush.bf16.msra.mxu0 0
      %686 = vmatpush.bf16.msra.mxu0 0
      %687 = vmatpush.bf16.msra.mxu0 0
      %688 = vmatpush.bf16.msra.mxu0 %v679
      %689 = vmatpush.bf16.msra.mxu0 %v678
      %690 = vmatmul.bf16.gmra.mxu0 %v441
      %v691 = vpop.f32.mrf.mxu0
      %v692 = vadd.f32 %v582, %v691
      %v693 = vpop.f32.mrf.mxu0
      %694 = vdwg.mxu0
      %v699 = vunpack.c.l.b16 %v547
      %v700 = vunpack.c.l.b16 %v548
      %v701 = vunpack.c.l.b16 %v549
      %v702 = vunpack.c.l.b16 %v550
      %v703 = vpack.c.b16 %v700, %v699
      %v704 = vpack.c.b16 %v702, %v701
      %707 = vmatpush.bf16.msra.mxu0 0
      %708 = vmatpush.bf16.msra.mxu0 0
      %709 = vmatpush.bf16.msra.mxu0 0
      %710 = vmatpush.bf16.msra.mxu0 0
      %711 = vmatpush.bf16.msra.mxu0 0
      %712 = vmatpush.bf16.msra.mxu0 0
      %713 = vmatpush.bf16.msra.mxu0 %v704
      %714 = vmatpush.bf16.msra.mxu0 %v703
      %715 = vmatmul.bf16.gmra.mxu0 %v441
      %v716 = vpop.f32.mrf.mxu0
      %v717 = vadd.f32 %v583, %v716
      %v718 = vpop.f32.mrf.mxu0
      %719 = vdwg.mxu0
      %v724 = vunpack.c.l.b16 %v551
      %v725 = vunpack.c.l.b16 %v552
      %v726 = vunpack.c.l.b16 %v553
      %v727 = vunpack.c.l.b16 %v554
      %v728 = vpack.c.b16 %v725, %v724
      %v729 = vpack.c.b16 %v727, %v726
      %732 = vmatpush.bf16.msra.mxu0 0
      %733 = vmatpush.bf16.msra.mxu0 0
      %734 = vmatpush.bf16.msra.mxu0 0
      %735 = vmatpush.bf16.msra.mxu0 0
      %736 = vmatpush.bf16.msra.mxu0 0
      %737 = vmatpush.bf16.msra.mxu0 0
      %738 = vmatpush.bf16.msra.mxu0 %v729
      %739 = vmatpush.bf16.msra.mxu0 %v728
      %740 = vmatmul.bf16.gmra.mxu0 %v441
      %v741 = vpop.f32.mrf.mxu0
      %v742 = vadd.f32 %v584, %v741
      %v743 = vpop.f32.mrf.mxu0
      %744 = vdwg.mxu0
      %v749 = vunpack.c.l.b16 %v555
      %v750 = vunpack.c.l.b16 %v556
      %v751 = vunpack.c.l.b16 %v557
      %v752 = vunpack.c.l.b16 %v558
      %v753 = vpack.c.b16 %v750, %v749
      %v754 = vpack.c.b16 %v752, %v751
      %757 = vmatpush.bf16.msra.mxu0 0
      %758 = vmatpush.bf16.msra.mxu0 0
      %759 = vmatpush.bf16.msra.mxu0 0
      %760 = vmatpush.bf16.msra.mxu0 0
      %761 = vmatpush.bf16.msra.mxu0 0
      %762 = vmatpush.bf16.msra.mxu0 0
      %763 = vmatpush.bf16.msra.mxu0 %v754
      %764 = vmatpush.bf16.msra.mxu0 %v753
      %765 = vmatmul.bf16.gmra.mxu0 %v441
      %v766 = vpop.f32.mrf.mxu0
      %v767 = vadd.f32 %v585, %v766
      %v768 = vpop.f32.mrf.mxu0
      %769 = vdwg.mxu0
      %v774 = vunpack.c.l.b16 %v559
      %v775 = vunpack.c.l.b16 %v560
      %v776 = vunpack.c.l.b16 %v561
      %v777 = vunpack.c.l.b16 %v562
      %v778 = vpack.c.b16 %v775, %v774
      %v779 = vpack.c.b16 %v777, %v776
      %782 = vmatpush.bf16.msra.mxu0 0
      %783 = vmatpush.bf16.msra.mxu0 0
      %784 = vmatpush.bf16.msra.mxu0 0
      %785 = vmatpush.bf16.msra.mxu0 0
      %786 = vmatpush.bf16.msra.mxu0 0
      %787 = vmatpush.bf16.msra.mxu0 0
      %788 = vmatpush.bf16.msra.mxu0 %v779
      %789 = vmatpush.bf16.msra.mxu0 %v778
      %790 = vmatmul.bf16.gmra.mxu0 %v441
      %v791 = vpop.f32.mrf.mxu0
      %v792 = vadd.f32 %v586, %v791
      %v793 = vpop.f32.mrf.mxu0
      %794 = vdwg.mxu0
      %v795 = vpack.c.bf16 %v453, %v453
      %v796 = vpack.c.bf16 %v478, %v478
      %v797 = vpack.c.bf16 %v503, %v503
      %v798 = vpack.c.bf16 %v528, %v528
      %v799 = vpack.c.bf16 %v617, %v617
      %v800 = vpack.c.bf16 %v642, %v642
      %v801 = vpack.c.bf16 %v667, %v667
      %v802 = vpack.c.bf16 %v692, %v692
      %v803 = vld [vmem:[%s384] sm:$0xff]
      %vm804 = vcmask 64512
      %v806 = vsel %vm804, %v795, 0
      %v809 = vsel %vm804, %v799, 0
      %811 = vmatpush.bf16.xpose.msra.mxu0 0
      %812 = vmatpush.bf16.xpose.msra.mxu0 0
      %813 = vmatpush.bf16.xpose.msra.mxu0 0
      %814 = vmatpush.bf16.xpose.msra.mxu0 0
      %815 = vmatpush.bf16.xpose.msra.mxu0 0
      %816 = vmatpush.bf16.xpose.msra.mxu0 0
      %817 = vmatpush.bf16.xpose.msra.mxu0 0
      %818 = vmatpush.bf16.xpose.msra.mxu0 %v809
      %819 = vmatmul.bf16.gmra.mxu0 %v806
      %v820 = vpop.f32.mrf.mxu0
      %v821 = vadd.f32 %v803, %v820
      %v822 = vpop.f32.mrf.mxu0
      %823 = vdwg.mxu0
      %v825 = vsel %vm804, %v796, 0
      %v828 = vsel %vm804, %v800, 0
      %830 = vmatpush.bf16.xpose.msra.mxu0 0
      %831 = vmatpush.bf16.xpose.msra.mxu0 0
      %832 = vmatpush.bf16.xpose.msra.mxu0 0
      %833 = vmatpush.bf16.xpose.msra.mxu0 0
      %834 = vmatpush.bf16.xpose.msra.mxu0 0
      %835 = vmatpush.bf16.xpose.msra.mxu0 0
      %836 = vmatpush.bf16.xpose.msra.mxu0 0
      %837 = vmatpush.bf16.xpose.msra.mxu0 %v828
      %838 = vmatmul.bf16.gmra.mxu0 %v825
      %v839 = vpop.f32.mrf.mxu0
      %v840 = vadd.f32 %v803, %v839
      %v841 = vpop.f32.mrf.mxu0
      %842 = vdwg.mxu0
      %v844 = vsel %vm804, %v797, 0
      %v847 = vsel %vm804, %v801, 0
      %849 = vmatpush.bf16.xpose.msra.mxu0 0
      %850 = vmatpush.bf16.xpose.msra.mxu0 0
      %851 = vmatpush.bf16.xpose.msra.mxu0 0
      %852 = vmatpush.bf16.xpose.msra.mxu0 0
      %853 = vmatpush.bf16.xpose.msra.mxu0 0
      %854 = vmatpush.bf16.xpose.msra.mxu0 0
      %855 = vmatpush.bf16.xpose.msra.mxu0 0
      %856 = vmatpush.bf16.xpose.msra.mxu0 %v847
      %857 = vmatmul.bf16.gmra.mxu0 %v844
      %v858 = vpop.f32.mrf.mxu0
      %v859 = vadd.f32 %v803, %v858
      %v860 = vpop.f32.mrf.mxu0
      %861 = vdwg.mxu0
      %v863 = vsel %vm804, %v798, 0
      %v866 = vsel %vm804, %v802, 0
      %868 = vmatpush.bf16.xpose.msra.mxu0 0
      %869 = vmatpush.bf16.xpose.msra.mxu0 0
      %870 = vmatpush.bf16.xpose.msra.mxu0 0
      %871 = vmatpush.bf16.xpose.msra.mxu0 0
      %872 = vmatpush.bf16.xpose.msra.mxu0 0
      %873 = vmatpush.bf16.xpose.msra.mxu0 0
      %874 = vmatpush.bf16.xpose.msra.mxu0 0
      %875 = vmatpush.bf16.xpose.msra.mxu0 %v866
      %876 = vmatmul.bf16.gmra.mxu0 %v863
      %v877 = vpop.f32.mrf.mxu0
      %v878 = vadd.f32 %v803, %v877
      %v879 = vpop.f32.mrf.mxu0
      %880 = vdwg.mxu0
      %v881 = vsel %vm804, %v821, -inf
      %882 = vmax.xlane.f32.xlu0 %v881
      %v883 = vpop.xlane.xlu0 %882
      %v884 = vsel %vm804, %v840, -inf
      %885 = vmax.xlane.f32.xlu0 %v884
      %v886 = vpop.xlane.xlu0 %885
      %v887 = vsel %vm804, %v859, -inf
      %888 = vmax.xlane.f32.xlu0 %v887
      %v889 = vpop.xlane.xlu0 %888
      %v890 = vsel %vm804, %v878, -inf
      %891 = vmax.xlane.f32.xlu0 %v890
      %v892 = vpop.xlane.xlu0 %891
      %v893 = vsub.f32 %v821, %v883
      %v894 = vsub.f32 %v840, %v886
      %v895 = vsub.f32 %v859, %v889
      %v896 = vsub.f32 %v878, %v892
      %v897 = vmul.f32 %v893, 1.442695
      %v898 = vpow.pop %v897
      %v899 = vmul.f32 %v894, 1.442695
      %v900 = vpow.pop %v899
      %v901 = vmul.f32 %v895, 1.442695
      %v902 = vpow.pop %v901
      %v903 = vmul.f32 %v896, 1.442695
      %v904 = vpow.pop %v903
      %v905 = vsel %vm804, %v898, 0.0
      %906 = vadd.xlane.f32.xlu0 %v905
      %v907 = vpop.xlane.xlu0 %906
      %v908 = vsel %vm804, %v900, 0.0
      %909 = vadd.xlane.f32.xlu0 %v908
      %v910 = vpop.xlane.xlu0 %909
      %v911 = vsel %vm804, %v902, 0.0
      %912 = vadd.xlane.f32.xlu0 %v911
      %v913 = vpop.xlane.xlu0 %912
      %v914 = vsel %vm804, %v904, 0.0
      %915 = vadd.xlane.f32.xlu0 %v914
      %v916 = vpop.xlane.xlu0 %915
      %v917 = vrcp.pop %v907
      %v918 = vmul.f32 %v907, %v917
      %v919 = vsub.f32 1.0, %v918
      %v920 = vmul.f32 %v917, %v919
      %v921 = vadd.f32 %v917, %v920
      %vm922 = vweird.f32 %v907
      %vm923 = vweird.f32 %v917
      %vm924 = vmor %vm922, %vm923
      %v925 = vsel %vm924, %v917, %v921
      %v926 = vand.u32 2147483647, %v907
      %vm927 = vcmp.eq.f32.partialorder %v926, 8.507059e+37
      %v928 = vand.u32 %v907, 2147483648
      %v929 = vor.u32 1.1754944e-38, %v928
      %v930 = vsel %vm927, %v929, %v925
      %v931 = vmul.f32 %v898, %v930
      %v932 = vrcp.pop %v910
      %v933 = vmul.f32 %v910, %v932
      %v934 = vsub.f32 1.0, %v933
      %v935 = vmul.f32 %v932, %v934
      %v936 = vadd.f32 %v932, %v935
      %vm937 = vweird.f32 %v910
      %vm938 = vweird.f32 %v932
      %vm939 = vmor %vm937, %vm938
      %v940 = vsel %vm939, %v932, %v936
      %v941 = vand.u32 2147483647, %v910
      %vm942 = vcmp.eq.f32.partialorder %v941, 8.507059e+37
      %v943 = vand.u32 %v910, 2147483648
      %v944 = vor.u32 1.1754944e-38, %v943
      %v945 = vsel %vm942, %v944, %v940
      %v946 = vmul.f32 %v900, %v945
      %v947 = vrcp.pop %v913
      %v948 = vmul.f32 %v913, %v947
      %v949 = vsub.f32 1.0, %v948
      %v950 = vmul.f32 %v947, %v949
      %v951 = vadd.f32 %v947, %v950
      %vm952 = vweird.f32 %v913
      %vm953 = vweird.f32 %v947
      %vm954 = vmor %vm952, %vm953
      %v955 = vsel %vm954, %v947, %v951
      %v956 = vand.u32 2147483647, %v913
      %vm957 = vcmp.eq.f32.partialorder %v956, 8.507059e+37
      %v958 = vand.u32 %v913, 2147483648
      %v959 = vor.u32 1.1754944e-38, %v958
      %v960 = vsel %vm957, %v959, %v955
      %v961 = vmul.f32 %v902, %v960
      %v962 = vrcp.pop %v916
      %v963 = vmul.f32 %v916, %v962
      %v964 = vsub.f32 1.0, %v963
      %v965 = vmul.f32 %v962, %v964
      %v966 = vadd.f32 %v962, %v965
      %vm967 = vweird.f32 %v916
      %vm968 = vweird.f32 %v962
      %vm969 = vmor %vm967, %vm968
      %v970 = vsel %vm969, %v962, %v966
      %v971 = vand.u32 2147483647, %v916
      %vm972 = vcmp.eq.f32.partialorder %v971, 8.507059e+37
      %v973 = vand.u32 %v916, 2147483648
      %v974 = vor.u32 1.1754944e-38, %v973
      %v975 = vsel %vm972, %v974, %v970
      %v976 = vmul.f32 %v904, %v975
      %v977 = vpack.c.bf16 %v931, %v931
      %v978 = vpack.c.bf16 %v946, %v946
      %v979 = vpack.c.bf16 %v961, %v961
      %v980 = vpack.c.bf16 %v976, %v976
      %v981 = vpack.c.bf16 %v717, %v717
      %v982 = vpack.c.bf16 %v742, %v742
      %v983 = vpack.c.bf16 %v767, %v767
      %v984 = vpack.c.bf16 %v792, %v792
      %v986 = vsel %vm804, %v977, 0
      %vm988 = vcmask 1043456
      %v990 = vsel %vm988, %v981, 0
      %992 = vmatpush.bf16.msra.mxu0 0
      %993 = vmatpush.bf16.msra.mxu0 0
      %994 = vmatpush.bf16.msra.mxu0 0
      %995 = vmatpush.bf16.msra.mxu0 0
      %996 = vmatpush.bf16.msra.mxu0 0
      %997 = vmatpush.bf16.msra.mxu0 0
      %998 = vmatpush.bf16.msra.mxu0 0
      %999 = vmatpush.bf16.msra.mxu0 %v990
      %1000 = vmatmul.bf16.gmra.mxu0 %v986
      %v1001 = vpop.f32.mrf.mxu0
      %v1002 = vadd.f32 0.0, %v1001
      %v1003 = vpop.f32.mrf.mxu0
      %1004 = vdwg.mxu0
      %v1006 = vsel %vm804, %v978, 0
      %v1009 = vsel %vm988, %v982, 0
      %1011 = vmatpush.bf16.msra.mxu0 0
      %1012 = vmatpush.bf16.msra.mxu0 0
      %1013 = vmatpush.bf16.msra.mxu0 0
      %1014 = vmatpush.bf16.msra.mxu0 0
      %1015 = vmatpush.bf16.msra.mxu0 0
      %1016 = vmatpush.bf16.msra.mxu0 0
      %1017 = vmatpush.bf16.msra.mxu0 0
      %1018 = vmatpush.bf16.msra.mxu0 %v1009
      %1019 = vmatmul.bf16.gmra.mxu0 %v1006
      %v1020 = vpop.f32.mrf.mxu0
      %v1021 = vadd.f32 0.0, %v1020
      %v1022 = vpop.f32.mrf.mxu0
      %1023 = vdwg.mxu0
      %v1025 = vsel %vm804, %v979, 0
      %v1028 = vsel %vm988, %v983, 0
      %1030 = vmatpush.bf16.msra.mxu0 0
      %1031 = vmatpush.bf16.msra.mxu0 0
      %1032 = vmatpush.bf16.msra.mxu0 0
      %1033 = vmatpush.bf16.msra.mxu0 0
      %1034 = vmatpush.bf16.msra.mxu0 0
      %1035 = vmatpush.bf16.msra.mxu0 0
      %1036 = vmatpush.bf16.msra.mxu0 0
      %1037 = vmatpush.bf16.msra.mxu0 %v1028
      %1038 = vmatmul.bf16.gmra.mxu0 %v1025
      %v1039 = vpop.f32.mrf.mxu0
      %v1040 = vadd.f32 0.0, %v1039
      %v1041 = vpop.f32.mrf.mxu0
      %1042 = vdwg.mxu0
      %v1044 = vsel %vm804, %v980, 0
      %v1047 = vsel %vm988, %v984, 0
      %1049 = vmatpush.bf16.msra.mxu0 0
      %1050 = vmatpush.bf16.msra.mxu0 0
      %1051 = vmatpush.bf16.msra.mxu0 0
      %1052 = vmatpush.bf16.msra.mxu0 0
      %1053 = vmatpush.bf16.msra.mxu0 0
      %1054 = vmatpush.bf16.msra.mxu0 0
      %1055 = vmatpush.bf16.msra.mxu0 0
      %1056 = vmatpush.bf16.msra.mxu0 %v1047
      %1057 = vmatmul.bf16.gmra.mxu0 %v1044
      %v1058 = vpop.f32.mrf.mxu0
      %v1059 = vadd.f32 0.0, %v1058
      %v1060 = vpop.f32.mrf.mxu0
      %1061 = vdwg.mxu0
      %v1062 = vpack.c.bf16 %v1002, %v1002
      %v1063 = vpack.c.bf16 %v1021, %v1021
      %v1064 = vpack.c.bf16 %v1040, %v1040
      %v1065 = vpack.c.bf16 %v1059, %v1059
      %v1066 = vld [vmem:[%s6] sm:$0xf]
      %v1067 = vld [vmem:[%s6 + $0x4] sm:$0xf]
      %v1068 = vld [vmem:[%s6 + $0x8] sm:$0xf]
      %v1069 = vld [vmem:[%s6 + $0xc] sm:$0xf]
      %v1071 = vsel %vm804, %v1062, 0
      %v1074 = vsel %vm988, %v1066, 0
      %1076 = vmatpush.bf16.msra.mxu0 0
      %1077 = vmatpush.bf16.msra.mxu0 0
      %1078 = vmatpush.bf16.msra.mxu0 0
      %1079 = vmatpush.bf16.msra.mxu0 0
      %1080 = vmatpush.bf16.msra.mxu0 0
      %1081 = vmatpush.bf16.msra.mxu0 0
      %1082 = vmatpush.bf16.msra.mxu0 0
      %1083 = vmatpush.bf16.msra.mxu0 %v1074
      %1084 = vmatmul.bf16.gmra.mxu0 %v1071
      %v1085 = vpop.f32.mrf.mxu0
      %v1086 = vadd.f32 0.0, %v1085
      %v1087 = vpop.f32.mrf.mxu0
      %1088 = vdwg.mxu0
      %v1090 = vsel %vm804, %v1063, 0
      %v1093 = vsel %vm988, %v1067, 0
      %1095 = vmatpush.bf16.msra.mxu0 0
      %1096 = vmatpush.bf16.msra.mxu0 0
      %1097 = vmatpush.bf16.msra.mxu0 0
      %1098 = vmatpush.bf16.msra.mxu0 0
      %1099 = vmatpush.bf16.msra.mxu0 0
      %1100 = vmatpush.bf16.msra.mxu0 0
      %1101 = vmatpush.bf16.msra.mxu0 0
      %1102 = vmatpush.bf16.msra.mxu0 %v1093
      %1103 = vmatmul.bf16.gmra.mxu0 %v1090
      %v1104 = vpop.f32.mrf.mxu0
      %v1105 = vadd.f32 0.0, %v1104
      %v1106 = vpop.f32.mrf.mxu0
      %1107 = vdwg.mxu0
      %v1109 = vsel %vm804, %v1064, 0
      %v1112 = vsel %vm988, %v1068, 0
      %1114 = vmatpush.bf16.msra.mxu0 0
      %1115 = vmatpush.bf16.msra.mxu0 0
      %1116 = vmatpush.bf16.msra.mxu0 0
      %1117 = vmatpush.bf16.msra.mxu0 0
      %1118 = vmatpush.bf16.msra.mxu0 0
      %1119 = vmatpush.bf16.msra.mxu0 0
      %1120 = vmatpush.bf16.msra.mxu0 0
      %1121 = vmatpush.bf16.msra.mxu0 %v1112
      %1122 = vmatmul.bf16.gmra.mxu0 %v1109
      %v1123 = vpop.f32.mrf.mxu0
      %v1124 = vadd.f32 0.0, %v1123
      %v1125 = vpop.f32.mrf.mxu0
      %1126 = vdwg.mxu0
      %v1128 = vsel %vm804, %v1065, 0
      %v1131 = vsel %vm988, %v1069, 0
      %1133 = vmatpush.bf16.msra.mxu0 0
      %1134 = vmatpush.bf16.msra.mxu0 0
      %1135 = vmatpush.bf16.msra.mxu0 0
      %1136 = vmatpush.bf16.msra.mxu0 0
      %1137 = vmatpush.bf16.msra.mxu0 0
      %1138 = vmatpush.bf16.msra.mxu0 0
      %1139 = vmatpush.bf16.msra.mxu0 0
      %1140 = vmatpush.bf16.msra.mxu0 %v1131
      %1141 = vmatmul.bf16.gmra.mxu0 %v1128
      %v1142 = vpop.f32.mrf.mxu0
      %v1143 = vadd.f32 0.0, %v1142
      %v1144 = vpop.f32.mrf.mxu0
      %1145 = vdwg.mxu0
      %v1146 = vsel %vm439, %v1086, 0.0
      %v1147 = vsel %vm439, %v1105, 0.0
      %v1148 = vadd.f32 %v1146, %v1147
      %v1149 = vsel %vm439, %v1124, 0.0
      %v1150 = vadd.f32 %v1148, %v1149
      %v1151 = vsel %vm439, %v1143, 0.0
      %v1152 = vadd.f32 %v1150, %v1151
      %v1153 = vld [vmem:[%s7] sm:$0x1]
      %v1155 = vperm.slane %v1153, 0
      %v1157 = vadd.f32 %v1152, %v1155
      %v1158 = vadd.f32 %v393, %v1157
      %v1159 = vld [vmem:[%s8] sm:$0x1]
      %v1160 = vld [vmem:[%s9] sm:$0x1]
      %v1161 = vsel %vm439, %v1158, 0.0
      %1162 = vadd.xlane.f32.xlu0 %v1161
      %v1163 = vpop.xlane.xlu0 %1162
      %v1164 = vrcp.pop 32.0
      %v1165 = vmul.f32 32.0, %v1164
      %v1166 = vsub.f32 1.0, %v1165
      %v1167 = vmul.f32 %v1164, %v1166
      %v1168 = vadd.f32 %v1164, %v1167
      %vm1169 = vweird.f32 %v1164
      %v1170 = vsel %vm1169, %v1164, %v1168
      %v1171 = vmul.f32 %v1163, %v1170
      %v1172 = vsub.f32 %v1158, %v1171
      %v1173 = vmul.f32 %v1172, %v1172
      %v1174 = vsel %vm439, %v1173, 0.0
      %1175 = vadd.xlane.f32.xlu0 %v1174
      %v1176 = vpop.xlane.xlu0 %1175
      %v1177 = vmul.f32 %v1176, %v1170
      %v1178 = vadd.f32 %v1177, 1e-05
      %v1179 = vrsqrt.pop %v1178
      %v1180 = vmul.f32 %v1179, %v1178
      %v1181 = vmul.f32 %v1180, %v1179
      %v1182 = vmul.f32 0.5, %v1181
      %v1183 = vsub.f32 1.5, %v1182
      %v1184 = vmul.f32 %v1179, %v1183
      %vm1185 = vweird.f32 %v1178
      %vm1186 = vweird.f32 %v1179
      %vm1187 = vmor %vm1185, %vm1186
      %v1188 = vsel %vm1187, %v1179, %v1184
      %v1189 = vmul.f32 %v1172, %v1188
      %v1191 = vperm.slane %v1159, 0
      %v1193 = vmul.f32 %v1189, %v1191
      %v1195 = vperm.slane %v1160, 0
      %v1197 = vadd.f32 %v1193, %v1195
      %1198 = vst.msk [vmem:[%s391] sm:$0xff] %vm439, %v1197
      %p1199 = scmp.lt.s32.totalorder %s25, 1
      %s1200 = scalar_select %p1199, %s25, 1
      %p1201 = scmp.lt.s32.totalorder %s26, 0
      %s1202 = scalar_select %p1201, %s26, 0
      %s1203 = sadd.s32 %s1202, %s1200
      %s1204 = smul.addr %s1203, 8
      %s1205 = scalar_lea.vmem %s10, %s1204
      // Predicated region
      $region61: #{decoder_forward.8} parent=59 // pred_check
        %p1206 = pneg %p273
      $region62: #{decoder_forward.8} parent=59 // pred_check_branch
        %1208 = sbr.rel (%p1206) target = $region64
      $region63: #{decoder_forward.8} parent=59 // pred_region
        _
      $region64: #{decoder_forward.8} parent=59 // pred_fallthru
        _
    $region60: #{decoder_forward.8} parent=5 // pred_fallthru
      _
    %p1209 = scmp.le.s32.totalorder 2, %s16
    // Predicated region
    $region65: #{decoder_forward.8} parent=5 // pred_check
      %p1210 = pneg %p1209
    $region66: #{decoder_forward.8} parent=5 // pred_check_branch
      %1212 = sbr.rel (%p1210) target = $region68
    $region67: #{decoder_forward.8} parent=5 // pred_region
      %s1213 = ssub.s32 %s16, 2
      // Predicated region
      $region69: #{decoder_forward.8} parent=67 // pred_check
        %p1214 = pneg %p279
      $region70: #{decoder_forward.8} parent=67 // pred_check_branch
        %1216 = sbr.rel (%p1214) target = $region72
      $region71: #{decoder_forward.8} parent=67 // pred_region
        %p1217 = scmp.lt.s32.totalorder %s27, 1
        %s1218 = scalar_select %p1217, %s27, 1
        %p1219 = scmp.lt.s32.totalorder %s28, 0
        %s1220 = scalar_select %p1219, %s28, 0
        %s1221 = sadd.s32 %s1220, %s1218
        %s1222 = smul.addr %s1221, 8
        %s1223 = scalar_lea.vmem %s10, %s1222
      $region72: #{decoder_forward.8} parent=67 // pred_fallthru
        _
    $region68: #{decoder_forward.8} parent=5 // pred_fallthru
      _
  $region6: #{decoder_forward.8} parent=0 // loop_footer
    %s20 = sadd.s32 1, %s16
  $region7: #{decoder_forward.8} parent=0 // loop_footer_branch
    %15 = sbr.rel target = $region3
  $region8: #{decoder_forward.8} parent=0 // loop_exit
    _

// kernel: decoder_forward.13
$region0: #{decoder_forward.13}
  #allocation0 [shape = 'u32[]', space=smem, size = 0x4, offset = 0x4, fixed_abs, tag = 'smem constant byte address 0x4 - core index']
  #allocation1 [shape = 'u32[72,128]{1,0:T(1,128)}', space=vmem, size = 0x9000, scoped, tag = 'internal scratch']
  #allocation2 [shape = 'f32[16,32]{1,0:T(8,128)}', space=vmem, size = 0x2000, scoped, tag = 'scratch operand']
  %s0 = inlined_call_operand.vmem [shape: f32[16,32], index: 0, kind: input, shape index: {}]
  %s1 = inlined_call_operand.vmem [shape: bf16[32,64], index: 1, kind: input, shape index: {}]
  %s2 = inlined_call_operand.vmem [shape: f32[1,64], index: 2, kind: input, shape index: {}]
  %s3 = inlined_call_operand.vmem [shape: bf16[64,32], index: 3, kind: input, shape index: {}]
  %s4 = inlined_call_operand.vmem [shape: f32[1,32], index: 4, kind: input, shape index: {}]
  %s5 = inlined_call_operand.vmem [shape: f32[1,32], index: 5, kind: input, shape index: {}]
  %s6 = inlined_call_operand.vmem [shape: f32[1,32], index: 6, kind: input, shape index: {}]
  %s7 = inlined_call_operand.hbm [shape: f32[16,32], index: 7, kind: output, shape index: {}]
  %s8 = sld [smem:[#allocation0]]
  $region46: #{decoder_forward.13} parent=0
    _
  %s10 = ssub.s32 1, %s8
  %s11 = scalar_select 0, %s10, %s8
  $region1: #{decoder_forward.13} parent=0
    #allocation3 [shape = 'u8[8192]{0}', space=vmem, size = 0x2000, scoped, tag = 'output window, operand 0, single buffered']
    #allocation4 [shape = 's32[1]{0}', space=sflag, size = 0x4, scoped, tag = 'scoped memory for decoder_forward.13']
    %12 = vsyncpa [#allocation4], 0
    // Predicated region
    $region2: #{decoder_forward.13} parent=1 // pred_check
      _
    $region3: #{decoder_forward.13} parent=1 // pred_check_branch
      %14 = sbr.rel (0) target = $region5
    $region4: #{decoder_forward.13} parent=1 // pred_region
      _
    $region5: #{decoder_forward.13} parent=1 // pred_fallthru
      _
    // Predicated region
    $region6: #{decoder_forward.13} parent=1 // pred_check
      _
    $region7: #{decoder_forward.13} parent=1 // pred_check_branch
      %16 = sbr.rel (0) target = $region9
    $region8: #{decoder_forward.13} parent=1 // pred_region
      _
    $region9: #{decoder_forward.13} parent=1 // pred_fallthru
      _
    // Predicated region
    $region10: #{decoder_forward.13} parent=1 // pred_check
      _
    $region11: #{decoder_forward.13} parent=1 // pred_check_branch
      %18 = sbr.rel (0) target = $region13
    $region12: #{decoder_forward.13} parent=1 // pred_region
      _
    $region13: #{decoder_forward.13} parent=1 // pred_fallthru
      _
    // Predicated region
    $region14: #{decoder_forward.13} parent=1 // pred_check
      _
    $region15: #{decoder_forward.13} parent=1 // pred_check_branch
      %20 = sbr.rel (0) target = $region17
    $region16: #{decoder_forward.13} parent=1 // pred_region
      _
    $region17: #{decoder_forward.13} parent=1 // pred_fallthru
      _
    // Predicated region
    $region18: #{decoder_forward.13} parent=1 // pred_check
      _
    $region19: #{decoder_forward.13} parent=1 // pred_check_branch
      %22 = sbr.rel (0) target = $region21
    $region20: #{decoder_forward.13} parent=1 // pred_region
      _
    $region21: #{decoder_forward.13} parent=1 // pred_fallthru
      _
    // Predicated region
    $region22: #{decoder_forward.13} parent=1 // pred_check
      _
    $region23: #{decoder_forward.13} parent=1 // pred_check_branch
      %24 = sbr.rel (0) target = $region25
    $region24: #{decoder_forward.13} parent=1 // pred_region
      _
    $region25: #{decoder_forward.13} parent=1 // pred_fallthru
      _
    // Predicated region
    $region26: #{decoder_forward.13} parent=1 // pred_check
      _
    $region27: #{decoder_forward.13} parent=1 // pred_check_branch
      %26 = sbr.rel (0) target = $region29
    $region28: #{decoder_forward.13} parent=1 // pred_region
      _
    $region29: #{decoder_forward.13} parent=1 // pred_fallthru
      _
    %p28 = scmp.eq.s32.totalorder 0, 0
    // Predicated region
    $region30: #{decoder_forward.13} parent=1 // pred_check
      %p29 = pneg %p28
    $region31: #{decoder_forward.13} parent=1 // pred_check_branch
      %31 = sbr.rel (%p29) target = $region33
    $region32: #{decoder_forward.13} parent=1 // pred_region
      %vm32 = vcmask 261120
      %33 = vst.msk [vmem:[#allocation2] sm:$0xff] %vm32, 0.0
      %34 = vst.msk [vmem:[#allocation2 + $0x8] sm:$0xff] %vm32, 0.0
    $region33: #{decoder_forward.13} parent=1 // pred_fallthru
      _
    %v35 = vld [vmem:[%s0] sm:$0xff]
    %v36 = vld [vmem:[%s0 + $0x8] sm:$0xff]
    %v37 = vpack.c.bf16 %v36, %v35
    %v38 = vld [vmem:[%s1] sm:$0xf]
    %v39 = vld [vmem:[%s1 + $0x4] sm:$0xf]
    %v40 = vld [vmem:[%s1 + $0x8] sm:$0xf]
    %v41 = vld [vmem:[%s1 + $0xc] sm:$0xf]
    %v42 = vld [vmem:[%s2] sm:$0x1]
    %v44 = vperm.slane %v42, 0
    %v50 = vunpack.c.l.b16 %v38
    %v51 = vunpack.c.l.b16 %v39
    %v52 = vunpack.c.l.b16 %v40
    %v53 = vunpack.c.l.b16 %v41
    %v54 = vpack.c.b16 %v51, %v50
    %v55 = vpack.c.b16 %v53, %v52
    %vm58 = vcmask 261120
    %v60 = vsel %vm58, %v37, 0
    %62 = vmatpush.bf16.msra.mxu0 0
    %63 = vmatpush.bf16.msra.mxu0 0
    %64 = vmatpush.bf16.msra.mxu0 0
    %65 = vmatpush.bf16.msra.mxu0 0
    %66 = vmatpush.bf16.msra.mxu0 0
    %67 = vmatpush.bf16.msra.mxu0 0
    %68 = vmatpush.bf16.msra.mxu0 %v55
    %69 = vmatpush.bf16.msra.mxu0 %v54
    %70 = vmatmul.bf16.gmra.mxu0 %v60
    %v71 = vpop.f32.mrf.mxu0
    %v72 = vadd.f32 %v44, %v71
    %v73 = vpop.f32.mrf.mxu0
    %v74 = vadd.f32 %v44, %v73
    %75 = vdwg.mxu0
    %v76 = vmax.f32 %v72, 0.0
    %v77 = vmax.f32 %v74, 0.0
    %v78 = vld [vmem:[#allocation2] sm:$0xff]
    %v79 = vld [vmem:[#allocation2 + $0x8] sm:$0xff]
    %v80 = vpack.c.bf16 %v77, %v76
    %v81 = vld [vmem:[%s3] sm:$0xf]
    %v82 = vld [vmem:[%s3 + $0x4] sm:$0xf]
    %v83 = vld [vmem:[%s3 + $0x8] sm:$0xf]
    %v84 = vld [vmem:[%s3 + $0xc] sm:$0xf]
    %v85 = vld [vmem:[%s3 + $0x10] sm:$0xf]
    %v86 = vld [vmem:[%s3 + $0x14] sm:$0xf]
    %v87 = vld [vmem:[%s3 + $0x18] sm:$0xf]
    %v88 = vld [vmem:[%s3 + $0x1c] sm:$0xf]
    %v97 = vunpack.c.l.b16 %v81
    %v98 = vunpack.c.l.b16 %v82
    %v99 = vunpack.c.l.b16 %v83
    %v100 = vunpack.c.l.b16 %v84
    %v101 = vunpack.c.l.b16 %v85
    %v102 = vunpack.c.l.b16 %v86
    %v103 = vunpack.c.l.b16 %v87
    %v104 = vunpack.c.l.b16 %v88
    %v105 = vpack.c.b16 %v98, %v97
    %v106 = vpack.c.b16 %v100, %v99
    %v107 = vpack.c.b16 %v102, %v101
    %v108 = vpack.c.b16 %v104, %v103
    %vm113 = vcmask 523264
    %v115 = vsel %vm113, %v80, 0
    %117 = vmatpush.bf16.msra.mxu0 0
    %118 = vmatpush.bf16.msra.mxu0 0
    %119 = vmatpush.bf16.msra.mxu0 0
    %120 = vmatpush.bf16.msra.mxu0 0
    %121 = vmatpush.bf16.msra.mxu0 %v108
    %122 = vmatpush.bf16.msra.mxu0 %v107
    %123 = vmatpush.bf16.msra.mxu0 %v106
    %124 = vmatpush.bf16.msra.mxu0 %v105
    %125 = vmatmul.bf16.gmra.mxu0 %v115
    %v126 = vpop.f32.mrf.mxu0
    %v127 = vadd.f32 0.0, %v126
    %v128 = vpop.f32.mrf.mxu0
    %v129 = vadd.f32 0.0, %v128
    %130 = vdwg.mxu0
    %v131 = vadd.f32 %v78, %v127
    %v132 = vadd.f32 %v79, %v129
    %133 = vst.msk [vmem:[#allocation2] sm:$0xff] %vm58, %v131
    %134 = vst.msk [vmem:[#allocation2 + $0x8] sm:$0xff] %vm58, %v132
    // Predicated region
    $region34: #{decoder_forward.13} parent=1 // pred_check
      %p135 = pneg %p28
    $region35: #{decoder_forward.13} parent=1 // pred_check_branch
      %137 = sbr.rel (%p135) target = $region37
    $region36: #{decoder_forward.13} parent=1 // pred_region
      %v138 = vld [vmem:[#allocation2] sm:$0xff]
      %v139 = vld [vmem:[#allocation2 + $0x8] sm:$0xff]
      %v140 = vld [vmem:[%s4] sm:$0x1]
      %v142 = vperm.slane %v140, 0
      %v144 = vadd.f32 %v138, %v142
      %v145 = vadd.f32 %v139, %v142
      %v146 = vadd.f32 %v35, %v144
      %v147 = vadd.f32 %v36, %v145
      %v148 = vld [vmem:[%s5] sm:$0x1]
      %v149 = vld [vmem:[%s6] sm:$0x1]
      %v150 = vsel %vm58, %v146, 0.0
      %151 = vadd.xlane.f32.xlu0 %v150
      %v152 = vpop.xlane.xlu0 %151
      %v153 = vsel %vm58, %v147, 0.0
      %154 = vadd.xlane.f32.xlu0 %v153
      %v155 = vpop.xlane.xlu0 %154
      %v156 = vrcp.pop 32.0
      %v157 = vmul.f32 32.0, %v156
      %v158 = vsub.f32 1.0, %v157
      %v159 = vmul.f32 %v156, %v158
      %v160 = vadd.f32 %v156, %v159
      %vm161 = vweird.f32 %v156
      %v162 = vsel %vm161, %v156, %v160
      %v163 = vmul.f32 %v152, %v162
      %v164 = vmul.f32 %v155, %v162
      %v165 = vsub.f32 %v146, %v163
      %v166 = vsub.f32 %v147, %v164
      %v167 = vmul.f32 %v165, %v165
      %v168 = vmul.f32 %v166, %v166
      %v169 = vsel %vm58, %v167, 0.0
      %170 = vadd.xlane.f32.xlu0 %v169
      %v171 = vpop.xlane.xlu0 %170
      %v172 = vsel %vm58, %v168, 0.0
      %173 = vadd.xlane.f32.xlu0 %v172
      %v174 = vpop.xlane.xlu0 %173
      %v175 = vmul.f32 %v171, %v162
      %v176 = vmul.f32 %v174, %v162
      %v177 = vadd.f32 %v175, 1e-05
      %v178 = vadd.f32 %v176, 1e-05
      %v179 = vrsqrt.pop %v177
      %v180 = vmul.f32 %v179, %v177
      %v181 = vmul.f32 %v180, %v179
      %v182 = vmul.f32 0.5, %v181
      %v183 = vsub.f32 1.5, %v182
      %v184 = vmul.f32 %v179, %v183
      %vm185 = vweird.f32 %v177
      %vm186 = vweird.f32 %v179
      %vm187 = vmor %vm185, %vm186
      %v188 = vsel %vm187, %v179, %v184
      %v189 = vrsqrt.pop %v178
      %v190 = vmul.f32 %v189, %v178
      %v191 = vmul.f32 %v190, %v189
      %v192 = vmul.f32 0.5, %v191
      %v193 = vsub.f32 1.5, %v192
      %v194 = vmul.f32 %v189, %v193
      %vm195 = vweird.f32 %v178
      %vm196 = vweird.f32 %v189
      %vm197 = vmor %vm195, %vm196
      %v198 = vsel %vm197, %v189, %v194
      %v199 = vmul.f32 %v165, %v188
      %v200 = vmul.f32 %v166, %v198
      %v202 = vperm.slane %v148, 0
      %v204 = vmul.f32 %v199, %v202
      %v205 = vmul.f32 %v200, %v202
      %v207 = vperm.slane %v149, 0
      %v209 = vadd.f32 %v204, %v207
      %v210 = vadd.f32 %v205, %v207
      %211 = vst.msk [vmem:[#allocation3] sm:$0xff] %vm58, %v209
      %212 = vst.msk [vmem:[#allocation3 + $0x8] sm:$0xff] %vm58, %v210
    $region37: #{decoder_forward.13} parent=1 // pred_fallthru
      _
    // Predicated region
    $region38: #{decoder_forward.13} parent=1 // pred_check
      _
    $region39: #{decoder_forward.13} parent=1 // pred_check_branch
      %214 = sbr.rel (0) target = $region41
    $region40: #{decoder_forward.13} parent=1 // pred_region
      %216 = vsyncadd [#allocation4], 0
      %s217 = sshll.u32 [#allocation3], 4
      %s218 = int_to_ptr.vmem [resolvable:$true] %s217
      %s219 = sshll.u32 %s7, 4
      %s220 = int_to_ptr.hbm [resolvable:$true] %s219
      %225 = dma.vmem_to_hbm [thread:$0]  %s218, 256, %s220, [#allocation4], 128, 128, 8
    $region41: #{decoder_forward.13} parent=1 // pred_fallthru
      _
    // Predicated region
    $region42: #{decoder_forward.13} parent=1 // pred_check
      _
    $region43: #{decoder_forward.13} parent=1 // pred_check_branch
      %227 = sbr.rel (0) target = $region45
    $region44: #{decoder_forward.13} parent=1 // pred_region
      %229 = dma.done [#allocation4], 256
    $region45: #{decoder_forward.13} parent=1 // pred_fallthru
      _
    %230 = vsyncpa [#allocation4], 1

</llo_original>
